<compile_context>
chip_gen: v7x
topology: tpu7x:2x2x1
jax: 0.10.0
libtpu: 0.0.40
codegen_flags: <defaults>
</compile_context>

<pallas_src>
import functools
import math

import jax
import jax.numpy as jnp
from jax.experimental import pallas as pl
from jax.experimental.pallas import tpu as pltpu

CPAD = 128  # pad all output-channel / feature axes to one full 128-lane vreg width

_VMEM = pl.BlockSpec(memory_space=pltpu.MemorySpace.VMEM)


# -----------------------------------------------------------------------------
# Pallas kernels
# -----------------------------------------------------------------------------
def _conv_pool_kernel(cols_ref, w_ref, b_ref, out_ref, *, m_pool):
    """Fused 5x5 conv (as one MXU matmul over im2col patches) + bias + ReLU + 2x2 maxpool.

    Rows of `cols` are ordered (pool_dy, pool_dx, i, j, n): the four pool-window parities
    form four contiguous row blocks of size `m_pool`, so the maxpool is an elementwise max
    of four contiguous slices (no reshapes / strided ops inside the kernel).
    maxpool(relu(y + b)) == relu(max_parities(y) + b) since ReLU is monotone and b is shared.
    """
    y = jnp.dot(cols_ref[...], w_ref[...], preferred_element_type=jnp.float32)  # (4*m_pool, 128)
    m = jnp.maximum(jnp.maximum(y[0 * m_pool:1 * m_pool], y[1 * m_pool:2 * m_pool]),
                    jnp.maximum(y[2 * m_pool:3 * m_pool], y[3 * m_pool:4 * m_pool]))
    out_ref[...] = jnp.maximum(m + b_ref[...], 0.0)


def _conv_pool_fc_kernel(cols_ref, w_ref, b_ref, wf1_ref, bf1_ref, wf2_ref, bf2_ref,
                         wf3_ref, bf3_ref, out_ref, *, m_pool, n_batch, n_spatial, c_real):
    """Fused conv2 block + the entire fc1/fc2/fc3 head.

    Pooled conv2 features stay VMEM-resident; rows are ordered (i, j, n), so fc1 over the
    flattened 5*5*16 features is computed as 25 accumulated (N,16)x(16,120pad) matmuls
    (avoids any in-kernel flatten of the lane dim).  Padded lanes stay exactly zero end to
    end because all pad weights/biases are zero and ReLU(0)=0.
    """
    y = jnp.dot(cols_ref[...], w_ref[...], preferred_element_type=jnp.float32)
    m = jnp.maximum(jnp.maximum(y[0 * m_pool:1 * m_pool], y[1 * m_pool:2 * m_pool]),
                    jnp.maximum(y[2 * m_pool:3 * m_pool], y[3 * m_pool:4 * m_pool]))
    feat = jnp.maximum(m + b_ref[...], 0.0)            # (n_spatial*n_batch, 128), rows (i,j,n)

    # fc1: sum over the 25 spatial positions (mathematically identical to one (N,400) matmul)
    acc = jnp.zeros((n_batch, CPAD), jnp.float32)
    for s in range(n_spatial):                          # static unroll (25)
        x_s = feat[s * n_batch:(s + 1) * n_batch, 0:c_real].astype(jnp.bfloat16)   # (N, 16)
        acc = acc + jnp.dot(x_s, wf1_ref[s], preferred_element_type=jnp.float32)
    h1 = jnp.maximum(acc + bf1_ref[...], 0.0)           # (N, 128), real lanes 0:120

    h2 = jnp.maximum(jnp.dot(h1.astype(jnp.bfloat16), wf2_ref[...],
                             preferred_element_type=jnp.float32) + bf2_ref[...], 0.0)
    out_ref[...] = jnp.dot(h2.astype(jnp.bfloat16), wf3_ref[...],
                           preferred_element_type=jnp.float32) + bf3_ref[...]


# -----------------------------------------------------------------------------
# Wrapper-side glue (XLA): parity-major im2col, padding, layout plumbing
# -----------------------------------------------------------------------------
def _im2col_pool_major(x, k, ph, pw):
    """Patches for a k x k VALID conv that is followed by a 2x2 maxpool.

    Returns cols of shape (4 * ph * pw * N, k*k*C):
      rows ordered (pool_dy, pool_dx, i, j, n)  -- parity-major so the kernel pools with
      contiguous-slice maxes;  lanes ordered (ki, kj, c) to match W.reshape(k*k*C, Cout).
    """
    n, h, w, c = x.shape
    kk = k * k
    blocks = []
    for pi in range(2):
        for pj in range(2):
            taps = []
            for ki in range(k):
                for kj in range(k):
                    sl = jax.lax.slice(
                        x,
                        (0, pi + ki, pj + kj, 0),
                        (n, pi + ki + 2 * ph - 1, pj + kj + 2 * pw - 1, c),
                        (1, 2, 2, 1))                     # (n, ph, pw, c)
                    taps.append(sl)
            t = jnp.stack(taps, axis=3)                   # (n, ph, pw, k*k, c)
            t = t.reshape(n, ph, pw, kk * c)
            t = jnp.transpose(t, (1, 2, 0, 3))            # rows (i, j, batch)
            blocks.append(t.reshape(ph * pw * n, kk * c))
    return jnp.concatenate(blocks, axis=0)


def lenet5_forward(kp, x_nchw):
    n = x_nchw.shape[0]
    x = jnp.transpose(x_nchw, (0, 2, 3, 1)).astype(jnp.float32)       # NCHW -> NHWC (n,28,28,1)
    xp = jnp.pad(x, ((0, 0), (2, 2), (2, 2), (0, 0)))                 # conv1 padding=2 -> (n,32,32,1)

    # ---- stage 1: conv1 + bias + ReLU + maxpool2 (one fused kernel) ----
    cols1 = _im2col_pool_major(xp, 5, 14, 14).astype(jnp.bfloat16)    # (4*196*n, 25)
    mp1 = 14 * 14 * n
    pooled1 = pl.pallas_call(
        functools.partial(_conv_pool_kernel, m_pool=mp1),
        out_shape=jax.ShapeDtypeStruct((mp1, CPAD), jnp.float32),
        in_specs=[_VMEM] * 3,
        out_specs=_VMEM,
    )(cols1, kp["w1"], kp["b1"])
    # rows are (i, j, n); real channels are lanes 0:6 -> back to NHWC (n,14,14,6)
    p1 = pooled1[:, :6].reshape(14, 14, n, 6).transpose(2, 0, 1, 3)

    # ---- stage 2: conv2 block + the whole FC head (one fused kernel) ----
    cols2 = _im2col_pool_major(p1, 5, 5, 5).astype(jnp.bfloat16)      # (4*25*n, 150)
    mp2 = 5 * 5 * n
    logits_pad = pl.pallas_call(
        functools.partial(_conv_pool_fc_kernel, m_pool=mp2, n_batch=n,
                          n_spatial=25, c_real=16),
        out_shape=jax.ShapeDtypeStruct((n, CPAD), jnp.float32),
        in_specs=[_VMEM] * 9,
        out_specs=_VMEM,
    )(cols2, kp["w2"], kp["b2"], kp["wf1"], kp["bf1"],
      kp["wf2"], kp["bf2"], kp["wf3"], kp["bf3"])
    return logits_pad[:, :10]                                          # drop class padding


# -----------------------------------------------------------------------------
# Deterministic parameter init (PyTorch-default-style U(-1/sqrt(fan_in), 1/sqrt(fan_in)))
# -----------------------------------------------------------------------------
def init_lenet5_params(key):
    ks = jax.random.split(key, 10)

    def u(k, shape, fan_in):
        b = 1.0 / math.sqrt(fan_in)
        return jax.random.uniform(k, shape, jnp.float32, minval=-b, maxval=b)

    return dict(
        w1=u(ks[0], (5, 5, 1, 6), 25),      b1=u(ks[1], (6,), 25),       # conv1 (HWIO)
        w2=u(ks[2], (5, 5, 6, 16), 150),    b2=u(ks[3], (16,), 150),     # conv2 (HWIO)
        wf1=u(ks[4], (25, 16, 120), 400),   bf1=u(ks[5], (120,), 400),   # fc1 (per spatial pos)
        wf2=u(ks[6], (120, 84), 120),       bf2=u(ks[7], (84,), 120),    # fc2
        wf3=u(ks[8], (84, 10), 84),         bf3=u(ks[9], (10,), 84),     # fc3
    )


def _pad_lanes(a, target):
    return jnp.pad(a, [(0, 0)] * (a.ndim - 1) + [(0, target - a.shape[-1])])


def prep_kernel_params(p):
    """Flatten to matmul layout, zero-pad all output lanes to 128, bf16 matmul operands."""
    return dict(
        w1=_pad_lanes(p["w1"].reshape(25, 6), CPAD).astype(jnp.bfloat16),
        b1=_pad_lanes(p["b1"].reshape(1, 6), CPAD),
        w2=_pad_lanes(p["w2"].reshape(150, 16), CPAD).astype(jnp.bfloat16),
        b2=_pad_lanes(p["b2"].reshape(1, 16), CPAD),
        wf1=_pad_lanes(p["wf1"], CPAD).astype(jnp.bfloat16),                       # (25,16,128)
        bf1=_pad_lanes(p["bf1"].reshape(1, 120), CPAD),
        wf2=jnp.pad(p["wf2"], ((0, CPAD - 120), (0, CPAD - 84))).astype(jnp.bfloat16),
        bf2=_pad_lanes(p["bf2"].reshape(1, 84), CPAD),
        wf3=jnp.pad(p["wf3"], ((0, CPAD - 84), (0, CPAD - 10))).astype(jnp.bfloat16),
        bf3=_pad_lanes(p["bf3"].reshape(1, 10), CPAD),
    )


# -----------------------------------------------------------------------------
if __name__ == "__main__":
    key = jax.random.PRNGKey(0)
    k_params, k_x = jax.random.split(key)

    params = init_lenet5_params(k_params)
    kparams = prep_kernel_params(params)

    # LeNet5's 16*5*5 flatten implies 28x28 single-channel input (MNIST-sized); batch=2.
    x = jax.random.normal(k_x, (2, 1, 28, 28), jnp.float32)            # NCHW, like PyTorch

    fwd = jax.jit(lenet5_forward)
    logits = fwd(kparams, x)
    logits = jax.block_until_ready(logits)

    assert logits.shape == (2, 10), logits.shape
    assert bool(jnp.all(jnp.isfinite(logits)))
    print("KERNEL_OK")
</pallas_src>

<mosaic_0001>
module attributes {stable_mosaic.version = 11 : i64} {
  func.func @_conv_pool_kernel(%arg0: memref<1568x25xbf16, #tpu.memory_space<vmem>>, %arg1: memref<25x128xbf16, #tpu.memory_space<vmem>>, %arg2: memref<1x128xf32, #tpu.memory_space<vmem>>, %arg3: memref<392x128xf32, #tpu.memory_space<vmem>>) attributes {dimension_semantics = [], scalar_prefetch = 0 : i64, scratch_operands = 0 : i64, tpu.core_type = #tpu.core_type<tc>} {
    %c0 = arith.constant 0 : index
    %c0_0 = arith.constant 0 : index
    %0 = vector.load %arg0[%c0, %c0_0] : memref<1568x25xbf16, #tpu.memory_space<vmem>>, vector<1568x25xbf16>
    %c0_1 = arith.constant 0 : index
    %c0_2 = arith.constant 0 : index
    %1 = vector.load %arg1[%c0_1, %c0_2] : memref<25x128xbf16, #tpu.memory_space<vmem>>, vector<25x128xbf16>
    %cst = arith.constant dense<0.000000e+00> : vector<1568x128xf32>
    %2 = tpu.matmul %0, %1, %cst {dimension_numbers = #tpu.dot_dimension_numbers<[1], [0], [0], [1], [0, 0, 1, 1], [], []>} : vector<1568x25xbf16>, vector<25x128xbf16>, vector<1568x128xf32> -> vector<1568x128xf32>
    %3 = vector.extract_strided_slice %2 {offsets = [0, 0], sizes = [392, 128], strides = [1, 1]} : vector<1568x128xf32> to vector<392x128xf32>
    %4 = vector.extract_strided_slice %2 {offsets = [392, 0], sizes = [392, 128], strides = [1, 1]} : vector<1568x128xf32> to vector<392x128xf32>
    %5 = arith.maximumf %3, %4 : vector<392x128xf32>
    %6 = vector.extract_strided_slice %2 {offsets = [784, 0], sizes = [392, 128], strides = [1, 1]} : vector<1568x128xf32> to vector<392x128xf32>
    %7 = vector.extract_strided_slice %2 {offsets = [1176, 0], sizes = [392, 128], strides = [1, 1]} : vector<1568x128xf32> to vector<392x128xf32>
    %8 = arith.maximumf %6, %7 : vector<392x128xf32>
    %9 = arith.maximumf %5, %8 : vector<392x128xf32>
    %c0_3 = arith.constant 0 : index
    %c0_4 = arith.constant 0 : index
    %10 = vector.load %arg2[%c0_3, %c0_4] : memref<1x128xf32, #tpu.memory_space<vmem>>, vector<1x128xf32>
    %11 = vector.broadcast %10 : vector<1x128xf32> to vector<392x128xf32>
    %12 = arith.addf %9, %11 : vector<392x128xf32>
    %cst_5 = arith.constant 0.000000e+00 : f32
    %13 = vector.broadcast %cst_5 : f32 to vector<392x128xf32>
    %14 = arith.maximumf %12, %13 : vector<392x128xf32>
    %c0_6 = arith.constant 0 : index
    %c0_7 = arith.constant 0 : index
    %15 = vector.load %arg3[%c0_6, %c0_7] : memref<392x128xf32, #tpu.memory_space<vmem>>, vector<392x128xf32>
    tpu.vector_store %arg3[%c0_6, %c0_7], %14 {strides = array<i32>} : memref<392x128xf32, #tpu.memory_space<vmem>>, vector<392x128xf32>,
    return
  }
}

module attributes {stable_mosaic.version = 11 : i64} {
  func.func @_conv_pool_fc_kernel(%arg0: memref<200x150xbf16, #tpu.memory_space<vmem>>, %arg1: memref<150x128xbf16, #tpu.memory_space<vmem>>, %arg2: memref<1x128xf32, #tpu.memory_space<vmem>>, %arg3: memref<25x16x128xbf16, #tpu.memory_space<vmem>>, %arg4: memref<1x128xf32, #tpu.memory_space<vmem>>, %arg5: memref<128x128xbf16, #tpu.memory_space<vmem>>, %arg6: memref<1x128xf32, #tpu.memory_space<vmem>>, %arg7: memref<128x128xbf16, #tpu.memory_space<vmem>>, %arg8: memref<1x128xf32, #tpu.memory_space<vmem>>, %arg9: memref<2x128xf32, #tpu.memory_space<vmem>>) attributes {dimension_semantics = [], scalar_prefetch = 0 : i64, scratch_operands = 0 : i64, tpu.core_type = #tpu.core_type<tc>} {
    %c0 = arith.constant 0 : index
    %c0_0 = arith.constant 0 : index
    %0 = vector.load %arg0[%c0, %c0_0] : memref<200x150xbf16, #tpu.memory_space<vmem>>, vector<200x150xbf16>
    %c0_1 = arith.constant 0 : index
    %c0_2 = arith.constant 0 : index
    %1 = vector.load %arg1[%c0_1, %c0_2] : memref<150x128xbf16, #tpu.memory_space<vmem>>, vector<150x128xbf16>
    %cst = arith.constant dense<0.000000e+00> : vector<200x128xf32>
    %2 = tpu.matmul %0, %1, %cst {dimension_numbers = #tpu.dot_dimension_numbers<[1], [0], [0], [1], [0, 0, 1, 1], [], []>} : vector<200x150xbf16>, vector<150x128xbf16>, vector<200x128xf32> -> vector<200x128xf32>
    %3 = vector.extract_strided_slice %2 {offsets = [0, 0], sizes = [50, 128], strides = [1, 1]} : vector<200x128xf32> to vector<50x128xf32>
    %4 = vector.extract_strided_slice %2 {offsets = [50, 0], sizes = [50, 128], strides = [1, 1]} : vector<200x128xf32> to vector<50x128xf32>
    %5 = arith.maximumf %3, %4 : vector<50x128xf32>
    %6 = vector.extract_strided_slice %2 {offsets = [100, 0], sizes = [50, 128], strides = [1, 1]} : vector<200x128xf32> to vector<50x128xf32>
    %7 = vector.extract_strided_slice %2 {offsets = [150, 0], sizes = [50, 128], strides = [1, 1]} : vector<200x128xf32> to vector<50x128xf32>
    %8 = arith.maximumf %6, %7 : vector<50x128xf32>
    %9 = arith.maximumf %5, %8 : vector<50x128xf32>
    %c0_3 = arith.constant 0 : index
    %c0_4 = arith.constant 0 : index
    %10 = vector.load %arg2[%c0_3, %c0_4] : memref<1x128xf32, #tpu.memory_space<vmem>>, vector<1x128xf32>
    %11 = vector.broadcast %10 : vector<1x128xf32> to vector<50x128xf32>
    %12 = arith.addf %9, %11 : vector<50x128xf32>
    %cst_5 = arith.constant 0.000000e+00 : f32
    %13 = vector.broadcast %cst_5 : f32 to vector<50x128xf32>
    %14 = arith.maximumf %12, %13 : vector<50x128xf32>
    %cst_6 = arith.constant 0.000000e+00 : f32
    %15 = vector.broadcast %cst_6 : f32 to vector<2x128xf32>
    %16 = vector.extract_strided_slice %14 {offsets = [0, 0], sizes = [2, 16], strides = [1, 1]} : vector<50x128xf32> to vector<2x16xf32>
    %17 = arith.truncf %16 : vector<2x16xf32> to vector<2x16xbf16>
    %c0_7 = arith.constant 0 : index
    %c0_8 = arith.constant 0 : index
    %c0_9 = arith.constant 0 : index
    %18 = vector.load %arg3[%c0_7, %c0_8, %c0_9] : memref<25x16x128xbf16, #tpu.memory_space<vmem>>, vector<1x16x128xbf16>
    %19 = vector.shape_cast %18 : vector<1x16x128xbf16> to vector<16x128xbf16>
    %cst_10 = arith.constant dense<0.000000e+00> : vector<2x128xf32>
    %20 = tpu.matmul %17, %19, %cst_10 {dimension_numbers = #tpu.dot_dimension_numbers<[1], [0], [0], [1], [0, 0, 1, 1], [], []>} : vector<2x16xbf16>, vector<16x128xbf16>, vector<2x128xf32> -> vector<2x128xf32>
    %21 = arith.addf %15, %20 : vector<2x128xf32>
    %22 = vector.extract_strided_slice %14 {offsets = [2, 0], sizes = [2, 16], strides = [1, 1]} : vector<50x128xf32> to vector<2x16xf32>
    %23 = arith.truncf %22 : vector<2x16xf32> to vector<2x16xbf16>
    %c1 = arith.constant 1 : index
    %c0_11 = arith.constant 0 : index
    %c0_12 = arith.constant 0 : index
    %24 = vector.load %arg3[%c1, %c0_11, %c0_12] : memref<25x16x128xbf16, #tpu.memory_space<vmem>>, vector<1x16x128xbf16>
    %25 = vector.shape_cast %24 : vector<1x16x128xbf16> to vector<16x128xbf16>
    %cst_13 = arith.constant dense<0.000000e+00> : vector<2x128xf32>
    %26 = tpu.matmul %23, %25, %cst_13 {dimension_numbers = #tpu.dot_dimension_numbers<[1], [0], [0], [1], [0, 0, 1, 1], [], []>} : vector<2x16xbf16>, vector<16x128xbf16>, vector<2x128xf32> -> vector<2x128xf32>
    %27 = arith.addf %21, %26 : vector<2x128xf32>
    %28 = vector.extract_strided_slice %14 {offsets = [4, 0], sizes = [2, 16], strides = [1, 1]} : vector<50x128xf32> to vector<2x16xf32>
    %29 = arith.truncf %28 : vector<2x16xf32> to vector<2x16xbf16>
    %c2 = arith.constant 2 : index
    %c0_14 = arith.constant 0 : index
    %c0_15 = arith.constant 0 : index
    %30 = vector.load %arg3[%c2, %c0_14, %c0_15] : memref<25x16x128xbf16, #tpu.memory_space<vmem>>, vector<1x16x128xbf16>
    %31 = vector.shape_cast %30 : vector<1x16x128xbf16> to vector<16x128xbf16>
    %cst_16 = arith.constant dense<0.000000e+00> : vector<2x128xf32>
    %32 = tpu.matmul %29, %31, %cst_16 {dimension_numbers = #tpu.dot_dimension_numbers<[1], [0], [0], [1], [0, 0, 1, 1], [], []>} : vector<2x16xbf16>, vector<16x128xbf16>, vector<2x128xf32> -> vector<2x128xf32>
    %33 = arith.addf %27, %32 : vector<2x128xf32>
    %34 = vector.extract_strided_slice %14 {offsets = [6, 0], sizes = [2, 16], strides = [1, 1]} : vector<50x128xf32> to vector<2x16xf32>
    %35 = arith.truncf %34 : vector<2x16xf32> to vector<2x16xbf16>
    %c3 = arith.constant 3 : index
    %c0_17 = arith.constant 0 : index
    %c0_18 = arith.constant 0 : index
    %36 = vector.load %arg3[%c3, %c0_17, %c0_18] : memref<25x16x128xbf16, #tpu.memory_space<vmem>>, vector<1x16x128xbf16>
    %37 = vector.shape_cast %36 : vector<1x16x128xbf16> to vector<16x128xbf16>
    %cst_19 = arith.constant dense<0.000000e+00> : vector<2x128xf32>
    %38 = tpu.matmul %35, %37, %cst_19 {dimension_numbers = #tpu.dot_dimension_numbers<[1], [0], [0], [1], [0, 0, 1, 1], [], []>} : vector<2x16xbf16>, vector<16x128xbf16>, vector<2x128xf32> -> vector<2x128xf32>
    %39 = arith.addf %33, %38 : vector<2x128xf32>
    %40 = vector.extract_strided_slice %14 {offsets = [8, 0], sizes = [2, 16], strides = [1, 1]} : vector<50x128xf32> to vector<2x16xf32>
    %41 = arith.truncf %40 : vector<2x16xf32> to vector<2x16xbf16>
    %c4 = arith.constant 4 : index
    %c0_20 = arith.constant 0 : index
    %c0_21 = arith.constant 0 : index
    %42 = vector.load %arg3[%c4, %c0_20, %c0_21] : memref<25x16x128xbf16, #tpu.memory_space<vmem>>, vector<1x16x128xbf16>
    %43 = vector.shape_cast %42 : vector<1x16x128xbf16> to vector<16x128xbf16>
    %cst_22 = arith.constant dense<0.000000e+00> : vector<2x128xf32>
    %44 = tpu.matmul %41, %43, %cst_22 {dimension_numbers = #tpu.dot_dimension_numbers<[1], [0], [0], [1], [0, 0, 1, 1], [], []>} : vector<2x16xbf16>, vector<16x128xbf16>, vector<2x128xf32> -> vector<2x128xf32>
    %45 = arith.addf %39, %44 : vector<2x128xf32>
    %46 = vector.extract_strided_slice %14 {offsets = [10, 0], sizes = [2, 16], strides = [1, 1]} : vector<50x128xf32> to vector<2x16xf32>
    %47 = arith.truncf %46 : vector<2x16xf32> to vector<2x16xbf16>
    %c5 = arith.constant 5 : index
    %c0_23 = arith.constant 0 : index
    %c0_24 = arith.constant 0 : index
    %48 = vector.load %arg3[%c5, %c0_23, %c0_24] : memref<25x16x128xbf16, #tpu.memory_space<vmem>>, vector<1x16x128xbf16>
    %49 = vector.shape_cast %48 : vector<1x16x128xbf16> to vector<16x128xbf16>
    %cst_25 = arith.constant dense<0.000000e+00> : vector<2x128xf32>
    %50 = tpu.matmul %47, %49, %cst_25 {dimension_numbers = #tpu.dot_dimension_numbers<[1], [0], [0], [1], [0, 0, 1, 1], [], []>} : vector<2x16xbf16>, vector<16x128xbf16>, vector<2x128xf32> -> vector<2x128xf32>
    %51 = arith.addf %45, %50 : vector<2x128xf32>
    %52 = vector.extract_strided_slice %14 {offsets = [12, 0], sizes = [2, 16], strides = [1, 1]} : vector<50x128xf32> to vector<2x16xf32>
    %53 = arith.truncf %52 : vector<2x16xf32> to vector<2x16xbf16>
    %c6 = arith.constant 6 : index
    %c0_26 = arith.constant 0 : index
    %c0_27 = arith.constant 0 : index
    %54 = vector.load %arg3[%c6, %c0_26, %c0_27] : memref<25x16x128xbf16, #tpu.memory_space<vmem>>, vector<1x16x128xbf16>
    %55 = vector.shape_cast %54 : vector<1x16x128xbf16> to vector<16x128xbf16>
    %cst_28 = arith.constant dense<0.000000e+00> : vector<2x128xf32>
    %56 = tpu.matmul %53, %55, %cst_28 {dimension_numbers = #tpu.dot_dimension_numbers<[1], [0], [0], [1], [0, 0, 1, 1], [], []>} : vector<2x16xbf16>, vector<16x128xbf16>, vector<2x128xf32> -> vector<2x128xf32>
    %57 = arith.addf %51, %56 : vector<2x128xf32>
    %58 = vector.extract_strided_slice %14 {offsets = [14, 0], sizes = [2, 16], strides = [1, 1]} : vector<50x128xf32> to vector<2x16xf32>
    %59 = arith.truncf %58 : vector<2x16xf32> to vector<2x16xbf16>
    %c7 = arith.constant 7 : index
    %c0_29 = arith.constant 0 : index
    %c0_30 = arith.constant 0 : index
    %60 = vector.load %arg3[%c7, %c0_29, %c0_30] : memref<25x16x128xbf16, #tpu.memory_space<vmem>>, vector<1x16x128xbf16>
    %61 = vector.shape_cast %60 : vector<1x16x128xbf16> to vector<16x128xbf16>
    %cst_31 = arith.constant dense<0.000000e+00> : vector<2x128xf32>
    %62 = tpu.matmul %59, %61, %cst_31 {dimension_numbers = #tpu.dot_dimension_numbers<[1], [0], [0], [1], [0, 0, 1, 1], [], []>} : vector<2x16xbf16>, vector<16x128xbf16>, vector<2x128xf32> -> vector<2x128xf32>
    %63 = arith.addf %57, %62 : vector<2x128xf32>
    %64 = vector.extract_strided_slice %14 {offsets = [16, 0], sizes = [2, 16], strides = [1, 1]} : vector<50x128xf32> to vector<2x16xf32>
    %65 = arith.truncf %64 : vector<2x16xf32> to vector<2x16xbf16>
    %c8 = arith.constant 8 : index
    %c0_32 = arith.constant 0 : index
    %c0_33 = arith.constant 0 : index
    %66 = vector.load %arg3[%c8, %c0_32, %c0_33] : memref<25x16x128xbf16, #tpu.memory_space<vmem>>, vector<1x16x128xbf16>
    %67 = vector.shape_cast %66 : vector<1x16x128xbf16> to vector<16x128xbf16>
    %cst_34 = arith.constant dense<0.000000e+00> : vector<2x128xf32>
    %68 = tpu.matmul %65, %67, %cst_34 {dimension_numbers = #tpu.dot_dimension_numbers<[1], [0], [0], [1], [0, 0, 1, 1], [], []>} : vector<2x16xbf16>, vector<16x128xbf16>, vector<2x128xf32> -> vector<2x128xf32>
    %69 = arith.addf %63, %68 : vector<2x128xf32>
    %70 = vector.extract_strided_slice %14 {offsets = [18, 0], sizes = [2, 16], strides = [1, 1]} : vector<50x128xf32> to vector<2x16xf32>
    %71 = arith.truncf %70 : vector<2x16xf32> to vector<2x16xbf16>
    %c9 = arith.constant 9 : index
    %c0_35 = arith.constant 0 : index
    %c0_36 = arith.constant 0 : index
    %72 = vector.load %arg3[%c9, %c0_35, %c0_36] : memref<25x16x128xbf16, #tpu.memory_space<vmem>>, vector<1x16x128xbf16>
    %73 = vector.shape_cast %72 : vector<1x16x128xbf16> to vector<16x128xbf16>
    %cst_37 = arith.constant dense<0.000000e+00> : vector<2x128xf32>
    %74 = tpu.matmul %71, %73, %cst_37 {dimension_numbers = #tpu.dot_dimension_numbers<[1], [0], [0], [1], [0, 0, 1, 1], [], []>} : vector<2x16xbf16>, vector<16x128xbf16>, vector<2x128xf32> -> vector<2x128xf32>
    %75 = arith.addf %69, %74 : vector<2x128xf32>
    %76 = vector.extract_strided_slice %14 {offsets = [20, 0], sizes = [2, 16], strides = [1, 1]} : vector<50x128xf32> to vector<2x16xf32>
    %77 = arith.truncf %76 : vector<2x16xf32> to vector<2x16xbf16>
    %c10 = arith.constant 10 : index
    %c0_38 = arith.constant 0 : index
    %c0_39 = arith.constant 0 : index
    %78 = vector.load %arg3[%c10, %c0_38, %c0_39] : memref<25x16x128xbf16, #tpu.memory_space<vmem>>, vector<1x16x128xbf16>
    %79 = vector.shape_cast %78 : vector<1x16x128xbf16> to vector<16x128xbf16>
    %cst_40 = arith.constant dense<0.000000e+00> : vector<2x128xf32>
    %80 = tpu.matmul %77, %79, %cst_40 {dimension_numbers = #tpu.dot_dimension_numbers<[1], [0], [0], [1], [0, 0, 1, 1], [], []>} : vector<2x16xbf16>, vector<16x128xbf16>, vector<2x128xf32> -> vector<2x128xf32>
    %81 = arith.addf %75, %80 : vector<2x128xf32>
    %82 = vector.extract_strided_slice %14 {offsets = [22, 0], sizes = [2, 16], strides = [1, 1]} : vector<50x128xf32> to vector<2x16xf32>
    %83 = arith.truncf %82 : vector<2x16xf32> to vector<2x16xbf16>
    %c11 = arith.constant 11 : index
    %c0_41 = arith.constant 0 : index
    %c0_42 = arith.constant 0 : index
    %84 = vector.load %arg3[%c11, %c0_41, %c0_42] : memref<25x16x128xbf16, #tpu.memory_space<vmem>>, vector<1x16x128xbf16>
    %85 = vector.shape_cast %84 : vector<1x16x128xbf16> to vector<16x128xbf16>
    %cst_43 = arith.constant dense<0.000000e+00> : vector<2x128xf32>
    %86 = tpu.matmul %83, %85, %cst_43 {dimension_numbers = #tpu.dot_dimension_numbers<[1], [0], [0], [1], [0, 0, 1, 1], [], []>} : vector<2x16xbf16>, vector<16x128xbf16>, vector<2x128xf32> -> vector<2x128xf32>
    %87 = arith.addf %81, %86 : vector<2x128xf32>
    %88 = vector.extract_strided_slice %14 {offsets = [24, 0], sizes = [2, 16], strides = [1, 1]} : vector<50x128xf32> to vector<2x16xf32>
    %89 = arith.truncf %88 : vector<2x16xf32> to vector<2x16xbf16>
    %c12 = arith.constant 12 : index
    %c0_44 = arith.constant 0 : index
    %c0_45 = arith.constant 0 : index
    %90 = vector.load %arg3[%c12, %c0_44, %c0_45] : memref<25x16x128xbf16, #tpu.memory_space<vmem>>, vector<1x16x128xbf16>
    %91 = vector.shape_cast %90 : vector<1x16x128xbf16> to vector<16x128xbf16>
    %cst_46 = arith.constant dense<0.000000e+00> : vector<2x128xf32>
    %92 = tpu.matmul %89, %91, %cst_46 {dimension_numbers = #tpu.dot_dimension_numbers<[1], [0], [0], [1], [0, 0, 1, 1], [], []>} : vector<2x16xbf16>, vector<16x128xbf16>, vector<2x128xf32> -> vector<2x128xf32>
    %93 = arith.addf %87, %92 : vector<2x128xf32>
    %94 = vector.extract_strided_slice %14 {offsets = [26, 0], sizes = [2, 16], strides = [1, 1]} : vector<50x128xf32> to vector<2x16xf32>
    %95 = arith.truncf %94 : vector<2x16xf32> to vector<2x16xbf16>
    %c13 = arith.constant 13 : index
    %c0_47 = arith.constant 0 : index
    %c0_48 = arith.constant 0 : index
    %96 = vector.load %arg3[%c13, %c0_47, %c0_48] : memref<25x16x128xbf16, #tpu.memory_space<vmem>>, vector<1x16x128xbf16>
    %97 = vector.shape_cast %96 : vector<1x16x128xbf16> to vector<16x128xbf16>
    %cst_49 = arith.constant dense<0.000000e+00> : vector<2x128xf32>
    %98 = tpu.matmul %95, %97, %cst_49 {dimension_numbers = #tpu.dot_dimension_numbers<[1], [0], [0], [1], [0, 0, 1, 1], [], []>} : vector<2x16xbf16>, vector<16x128xbf16>, vector<2x128xf32> -> vector<2x128xf32>
    %99 = arith.addf %93, %98 : vector<2x128xf32>
    %100 = vector.extract_strided_slice %14 {offsets = [28, 0], sizes = [2, 16], strides = [1, 1]} : vector<50x128xf32> to vector<2x16xf32>
    %101 = arith.truncf %100 : vector<2x16xf32> to vector<2x16xbf16>
    %c14 = arith.constant 14 : index
    %c0_50 = arith.constant 0 : index
    %c0_51 = arith.constant 0 : index
    %102 = vector.load %arg3[%c14, %c0_50, %c0_51] : memref<25x16x128xbf16, #tpu.memory_space<vmem>>, vector<1x16x128xbf16>
    %103 = vector.shape_cast %102 : vector<1x16x128xbf16> to vector<16x128xbf16>
    %cst_52 = arith.constant dense<0.000000e+00> : vector<2x128xf32>
    %104 = tpu.matmul %101, %103, %cst_52 {dimension_numbers = #tpu.dot_dimension_numbers<[1], [0], [0], [1], [0, 0, 1, 1], [], []>} : vector<2x16xbf16>, vector<16x128xbf16>, vector<2x128xf32> -> vector<2x128xf32>
    %105 = arith.addf %99, %104 : vector<2x128xf32>
    %106 = vector.extract_strided_slice %14 {offsets = [30, 0], sizes = [2, 16], strides = [1, 1]} : vector<50x128xf32> to vector<2x16xf32>
    %107 = arith.truncf %106 : vector<2x16xf32> to vector<2x16xbf16>
    %c15 = arith.constant 15 : index
    %c0_53 = arith.constant 0 : index
    %c0_54 = arith.constant 0 : index
    %108 = vector.load %arg3[%c15, %c0_53, %c0_54] : memref<25x16x128xbf16, #tpu.memory_space<vmem>>, vector<1x16x128xbf16>
    %109 = vector.shape_cast %108 : vector<1x16x128xbf16> to vector<16x128xbf16>
    %cst_55 = arith.constant dense<0.000000e+00> : vector<2x128xf32>
    %110 = tpu.matmul %107, %109, %cst_55 {dimension_numbers = #tpu.dot_dimension_numbers<[1], [0], [0], [1], [0, 0, 1, 1], [], []>} : vector<2x16xbf16>, vector<16x128xbf16>, vector<2x128xf32> -> vector<2x128xf32>
    %111 = arith.addf %105, %110 : vector<2x128xf32>
    %112 = vector.extract_strided_slice %14 {offsets = [32, 0], sizes = [2, 16], strides = [1, 1]} : vector<50x128xf32> to vector<2x16xf32>
    %113 = arith.truncf %112 : vector<2x16xf32> to vector<2x16xbf16>
    %c16 = arith.constant 16 : index
    %c0_56 = arith.constant 0 : index
    %c0_57 = arith.constant 0 : index
    %114 = vector.load %arg3[%c16, %c0_56, %c0_57] : memref<25x16x128xbf16, #tpu.memory_space<vmem>>, vector<1x16x128xbf16>
    %115 = vector.shape_cast %114 : vector<1x16x128xbf16> to vector<16x128xbf16>
    %cst_58 = arith.constant dense<0.000000e+00> : vector<2x128xf32>
    %116 = tpu.matmul %113, %115, %cst_58 {dimension_numbers = #tpu.dot_dimension_numbers<[1], [0], [0], [1], [0, 0, 1, 1], [], []>} : vector<2x16xbf16>, vector<16x128xbf16>, vector<2x128xf32> -> vector<2x128xf32>
    %117 = arith.addf %111, %116 : vector<2x128xf32>
    %118 = vector.extract_strided_slice %14 {offsets = [34, 0], sizes = [2, 16], strides = [1, 1]} : vector<50x128xf32> to vector<2x16xf32>
    %119 = arith.truncf %118 : vector<2x16xf32> to vector<2x16xbf16>
    %c17 = arith.constant 17 : index
    %c0_59 = arith.constant 0 : index
    %c0_60 = arith.constant 0 : index
    %120 = vector.load %arg3[%c17, %c0_59, %c0_60] : memref<25x16x128xbf16, #tpu.memory_space<vmem>>, vector<1x16x128xbf16>
    %121 = vector.shape_cast %120 : vector<1x16x128xbf16> to vector<16x128xbf16>
    %cst_61 = arith.constant dense<0.000000e+00> : vector<2x128xf32>
    %122 = tpu.matmul %119, %121, %cst_61 {dimension_numbers = #tpu.dot_dimension_numbers<[1], [0], [0], [1], [0, 0, 1, 1], [], []>} : vector<2x16xbf16>, vector<16x128xbf16>, vector<2x128xf32> -> vector<2x128xf32>
    %123 = arith.addf %117, %122 : vector<2x128xf32>
    %124 = vector.extract_strided_slice %14 {offsets = [36, 0], sizes = [2, 16], strides = [1, 1]} : vector<50x128xf32> to vector<2x16xf32>
    %125 = arith.truncf %124 : vector<2x16xf32> to vector<2x16xbf16>
    %c18 = arith.constant 18 : index
    %c0_62 = arith.constant 0 : index
    %c0_63 = arith.constant 0 : index
    %126 = vector.load %arg3[%c18, %c0_62, %c0_63] : memref<25x16x128xbf16, #tpu.memory_space<vmem>>, vector<1x16x128xbf16>
    %127 = vector.shape_cast %126 : vector<1x16x128xbf16> to vector<16x128xbf16>
    %cst_64 = arith.constant dense<0.000000e+00> : vector<2x128xf32>
    %128 = tpu.matmul %125, %127, %cst_64 {dimension_numbers = #tpu.dot_dimension_numbers<[1], [0], [0], [1], [0, 0, 1, 1], [], []>} : vector<2x16xbf16>, vector<16x128xbf16>, vector<2x128xf32> -> vector<2x128xf32>
    %129 = arith.addf %123, %128 : vector<2x128xf32>
    %130 = vector.extract_strided_slice %14 {offsets = [38, 0], sizes = [2, 16], strides = [1, 1]} : vector<50x128xf32> to vector<2x16xf32>
    %131 = arith.truncf %130 : vector<2x16xf32> to vector<2x16xbf16>
    %c19 = arith.constant 19 : index
    %c0_65 = arith.constant 0 : index
    %c0_66 = arith.constant 0 : index
    %132 = vector.load %arg3[%c19, %c0_65, %c0_66] : memref<25x16x128xbf16, #tpu.memory_space<vmem>>, vector<1x16x128xbf16>
    %133 = vector.shape_cast %132 : vector<1x16x128xbf16> to vector<16x128xbf16>
    %cst_67 = arith.constant dense<0.000000e+00> : vector<2x128xf32>
    %134 = tpu.matmul %131, %133, %cst_67 {dimension_numbers = #tpu.dot_dimension_numbers<[1], [0], [0], [1], [0, 0, 1, 1], [], []>} : vector<2x16xbf16>, vector<16x128xbf16>, vector<2x128xf32> -> vector<2x128xf32>
    %135 = arith.addf %129, %134 : vector<2x128xf32>
    %136 = vector.extract_strided_slice %14 {offsets = [40, 0], sizes = [2, 16], strides = [1, 1]} : vector<50x128xf32> to vector<2x16xf32>
    %137 = arith.truncf %136 : vector<2x16xf32> to vector<2x16xbf16>
    %c20 = arith.constant 20 : index
    %c0_68 = arith.constant 0 : index
    %c0_69 = arith.constant 0 : index
    %138 = vector.load %arg3[%c20, %c0_68, %c0_69] : memref<25x16x128xbf16, #tpu.memory_space<vmem>>, vector<1x16x128xbf16>
    %139 = vector.shape_cast %138 : vector<1x16x128xbf16> to vector<16x128xbf16>
    %cst_70 = arith.constant dense<0.000000e+00> : vector<2x128xf32>
    %140 = tpu.matmul %137, %139, %cst_70 {dimension_numbers = #tpu.dot_dimension_numbers<[1], [0], [0], [1], [0, 0, 1, 1], [], []>} : vector<2x16xbf16>, vector<16x128xbf16>, vector<2x128xf32> -> vector<2x128xf32>
    %141 = arith.addf %135, %140 : vector<2x128xf32>
    %142 = vector.extract_strided_slice %14 {offsets = [42, 0], sizes = [2, 16], strides = [1, 1]} : vector<50x128xf32> to vector<2x16xf32>
    %143 = arith.truncf %142 : vector<2x16xf32> to vector<2x16xbf16>
    %c21 = arith.constant 21 : index
    %c0_71 = arith.constant 0 : index
    %c0_72 = arith.constant 0 : index
    %144 = vector.load %arg3[%c21, %c0_71, %c0_72] : memref<25x16x128xbf16, #tpu.memory_space<vmem>>, vector<1x16x128xbf16>
    %145 = vector.shape_cast %144 : vector<1x16x128xbf16> to vector<16x128xbf16>
    %cst_73 = arith.constant dense<0.000000e+00> : vector<2x128xf32>
    %146 = tpu.matmul %143, %145, %cst_73 {dimension_numbers = #tpu.dot_dimension_numbers<[1], [0], [0], [1], [0, 0, 1, 1], [], []>} : vector<2x16xbf16>, vector<16x128xbf16>, vector<2x128xf32> -> vector<2x128xf32>
    %147 = arith.addf %141, %146 : vector<2x128xf32>
    %148 = vector.extract_strided_slice %14 {offsets = [44, 0], sizes = [2, 16], strides = [1, 1]} : vector<50x128xf32> to vector<2x16xf32>
    %149 = arith.truncf %148 : vector<2x16xf32> to vector<2x16xbf16>
    %c22 = arith.constant 22 : index
    %c0_74 = arith.constant 0 : index
    %c0_75 = arith.constant 0 : index
    %150 = vector.load %arg3[%c22, %c0_74, %c0_75] : memref<25x16x128xbf16, #tpu.memory_space<vmem>>, vector<1x16x128xbf16>
    %151 = vector.shape_cast %150 : vector<1x16x128xbf16> to vector<16x128xbf16>
    %cst_76 = arith.constant dense<0.000000e+00> : vector<2x128xf32>
    %152 = tpu.matmul %149, %151, %cst_76 {dimension_numbers = #tpu.dot_dimension_numbers<[1], [0], [0], [1], [0, 0, 1, 1], [], []>} : vector<2x16xbf16>, vector<16x128xbf16>, vector<2x128xf32> -> vector<2x128xf32>
    %153 = arith.addf %147, %152 : vector<2x128xf32>
    %154 = vector.extract_strided_slice %14 {offsets = [46, 0], sizes = [2, 16], strides = [1, 1]} : vector<50x128xf32> to vector<2x16xf32>
    %155 = arith.truncf %154 : vector<2x16xf32> to vector<2x16xbf16>
    %c23 = arith.constant 23 : index
    %c0_77 = arith.constant 0 : index
    %c0_78 = arith.constant 0 : index
    %156 = vector.load %arg3[%c23, %c0_77, %c0_78] : memref<25x16x128xbf16, #tpu.memory_space<vmem>>, vector<1x16x128xbf16>
    %157 = vector.shape_cast %156 : vector<1x16x128xbf16> to vector<16x128xbf16>
    %cst_79 = arith.constant dense<0.000000e+00> : vector<2x128xf32>
    %158 = tpu.matmul %155, %157, %cst_79 {dimension_numbers = #tpu.dot_dimension_numbers<[1], [0], [0], [1], [0, 0, 1, 1], [], []>} : vector<2x16xbf16>, vector<16x128xbf16>, vector<2x128xf32> -> vector<2x128xf32>
    %159 = arith.addf %153, %158 : vector<2x128xf32>
    %160 = vector.extract_strided_slice %14 {offsets = [48, 0], sizes = [2, 16], strides = [1, 1]} : vector<50x128xf32> to vector<2x16xf32>
    %161 = arith.truncf %160 : vector<2x16xf32> to vector<2x16xbf16>
    %c24 = arith.constant 24 : index
    %c0_80 = arith.constant 0 : index
    %c0_81 = arith.constant 0 : index
    %162 = vector.load %arg3[%c24, %c0_80, %c0_81] : memref<25x16x128xbf16, #tpu.memory_space<vmem>>, vector<1x16x128xbf16>
    %163 = vector.shape_cast %162 : vector<1x16x128xbf16> to vector<16x128xbf16>
    %cst_82 = arith.constant dense<0.000000e+00> : vector<2x128xf32>
    %164 = tpu.matmul %161, %163, %cst_82 {dimension_numbers = #tpu.dot_dimension_numbers<[1], [0], [0], [1], [0, 0, 1, 1], [], []>} : vector<2x16xbf16>, vector<16x128xbf16>, vector<2x128xf32> -> vector<2x128xf32>
    %165 = arith.addf %159, %164 : vector<2x128xf32>
    %c0_83 = arith.constant 0 : index
    %c0_84 = arith.constant 0 : index
    %166 = vector.load %arg4[%c0_83, %c0_84] : memref<1x128xf32, #tpu.memory_space<vmem>>, vector<1x128xf32>
    %167 = vector.broadcast %166 : vector<1x128xf32> to vector<2x128xf32>
    %168 = arith.addf %165, %167 : vector<2x128xf32>
    %cst_85 = arith.constant 0.000000e+00 : f32
    %169 = vector.broadcast %cst_85 : f32 to vector<2x128xf32>
    %170 = arith.maximumf %168, %169 : vector<2x128xf32>
    %171 = arith.truncf %170 : vector<2x128xf32> to vector<2x128xbf16>
    %c0_86 = arith.constant 0 : index
    %c0_87 = arith.constant 0 : index
    %172 = vector.load %arg5[%c0_86, %c0_87] : memref<128x128xbf16, #tpu.memory_space<vmem>>, vector<128x128xbf16>
    %cst_88 = arith.constant dense<0.000000e+00> : vector<2x128xf32>
    %173 = tpu.matmul %171, %172, %cst_88 {dimension_numbers = #tpu.dot_dimension_numbers<[1], [0], [0], [1], [0, 0, 1, 1], [], []>} : vector<2x128xbf16>, vector<128x128xbf16>, vector<2x128xf32> -> vector<2x128xf32>
    %c0_89 = arith.constant 0 : index
    %c0_90 = arith.constant 0 : index
    %174 = vector.load %arg6[%c0_89, %c0_90] : memref<1x128xf32, #tpu.memory_space<vmem>>, vector<1x128xf32>
    %175 = vector.broadcast %174 : vector<1x128xf32> to vector<2x128xf32>
    %176 = arith.addf %173, %175 : vector<2x128xf32>
    %cst_91 = arith.constant 0.000000e+00 : f32
    %177 = vector.broadcast %cst_91 : f32 to vector<2x128xf32>
    %178 = arith.maximumf %176, %177 : vector<2x128xf32>
    %179 = arith.truncf %178 : vector<2x128xf32> to vector<2x128xbf16>
    %c0_92 = arith.constant 0 : index
    %c0_93 = arith.constant 0 : index
    %180 = vector.load %arg7[%c0_92, %c0_93] : memref<128x128xbf16, #tpu.memory_space<vmem>>, vector<128x128xbf16>
    %cst_94 = arith.constant dense<0.000000e+00> : vector<2x128xf32>
    %181 = tpu.matmul %179, %180, %cst_94 {dimension_numbers = #tpu.dot_dimension_numbers<[1], [0], [0], [1], [0, 0, 1, 1], [], []>} : vector<2x128xbf16>, vector<128x128xbf16>, vector<2x128xf32> -> vector<2x128xf32>
    %c0_95 = arith.constant 0 : index
    %c0_96 = arith.constant 0 : index
    %182 = vector.load %arg8[%c0_95, %c0_96] : memref<1x128xf32, #tpu.memory_space<vmem>>, vector<1x128xf32>
    %183 = vector.broadcast %182 : vector<1x128xf32> to vector<2x128xf32>
    %184 = arith.addf %181, %183 : vector<2x128xf32>
    %c0_97 = arith.constant 0 : index
    %c0_98 = arith.constant 0 : index
    %185 = vector.load %arg9[%c0_97, %c0_98] : memref<2x128xf32, #tpu.memory_space<vmem>>, vector<2x128xf32>
    tpu.vector_store %arg9[%c0_97, %c0_98], %184 {strides = array<i32>} : memref<2x128xf32, #tpu.memory_space<vmem>>, vector<2x128xf32>,
    return
  }
}

</mosaic_0001>

<llo_original>
// kernel: lenet5_forward.2
$region0: #{lenet5_forward.2}
  #allocation0 [shape = 'u32[]', space=smem, size = 0x4, offset = 0x4, fixed_abs, tag = 'smem constant byte address 0x4 - core index']
  #allocation1 [shape = 'u32[144,128]{1,0:T(1,128)}', space=vmem, size = 0x12000, scoped, tag = 'internal scratch']
  %s0 = inlined_call_operand.vmem [shape: bf16[1568,25], index: 0, kind: input, shape index: {}]
  %s1 = inlined_call_operand.vmem [shape: bf16[25,128], index: 1, kind: input, shape index: {}]
  %s2 = inlined_call_operand.vmem [shape: f32[1,128], index: 2, kind: input, shape index: {}]
  %s3 = inlined_call_operand.vmem [shape: f32[392,128], index: 3, kind: output, shape index: {}]
  %s4 = sld [smem:[#allocation0]]
  $region22: #{lenet5_forward.2} parent=0
    _
  %s6 = ssub.s32 1, %s4
  %s7 = scalar_select 0, %s6, %s4
  // Predicated region
  $region2: #{lenet5_forward.2} parent=0 // pred_check
    _
  $region3: #{lenet5_forward.2} parent=0 // pred_check_branch
    %9 = sbr.rel (0) target = $region5
  $region4: #{lenet5_forward.2} parent=0 // pred_region
    _
  $region5: #{lenet5_forward.2} parent=0 // pred_fallthru
    _
  // Predicated region
  $region6: #{lenet5_forward.2} parent=0 // pred_check
    _
  $region7: #{lenet5_forward.2} parent=0 // pred_check_branch
    %11 = sbr.rel (0) target = $region9
  $region8: #{lenet5_forward.2} parent=0 // pred_region
    _
  $region9: #{lenet5_forward.2} parent=0 // pred_fallthru
    _
  // Predicated region
  $region10: #{lenet5_forward.2} parent=0 // pred_check
    _
  $region11: #{lenet5_forward.2} parent=0 // pred_check_branch
    %13 = sbr.rel (0) target = $region13
  $region12: #{lenet5_forward.2} parent=0 // pred_region
    _
  $region13: #{lenet5_forward.2} parent=0 // pred_fallthru
    _
  %v15 = vld [vmem:[%s0] sm:$0xf]
  %v16 = vld [vmem:[%s0 + $0x4] sm:$0xf]
  %v17 = vld [vmem:[%s0 + $0x8] sm:$0xf]
  %v18 = vld [vmem:[%s0 + $0xc] sm:$0xf]
  %v19 = vld [vmem:[%s0 + $0x10] sm:$0xf]
  %v20 = vld [vmem:[%s0 + $0x14] sm:$0xf]
  %v21 = vld [vmem:[%s0 + $0x18] sm:$0xf]
  %v22 = vld [vmem:[%s0 + $0x1c] sm:$0xf]
  %v23 = vld [vmem:[%s0 + $0x20] sm:$0xf]
  %v24 = vld [vmem:[%s0 + $0x24] sm:$0xf]
  %v25 = vld [vmem:[%s0 + $0x28] sm:$0xf]
  %v26 = vld [vmem:[%s0 + $0x2c] sm:$0xf]
  %v27 = vld [vmem:[%s0 + $0x30] sm:$0xf]
  %v28 = vld [vmem:[%s0 + $0x34] sm:$0xf]
  %v29 = vld [vmem:[%s0 + $0x38] sm:$0xf]
  %v30 = vld [vmem:[%s0 + $0x3c] sm:$0xf]
  %v31 = vld [vmem:[%s0 + $0x40] sm:$0xf]
  %v32 = vld [vmem:[%s0 + $0x44] sm:$0xf]
  %v33 = vld [vmem:[%s0 + $0x48] sm:$0xf]
  %v34 = vld [vmem:[%s0 + $0x4c] sm:$0xf]
  %v35 = vld [vmem:[%s0 + $0x50] sm:$0xf]
  %v36 = vld [vmem:[%s0 + $0x54] sm:$0xf]
  %v37 = vld [vmem:[%s0 + $0x58] sm:$0xf]
  %v38 = vld [vmem:[%s0 + $0x5c] sm:$0xf]
  %v39 = vld [vmem:[%s0 + $0x60] sm:$0xf]
  %v40 = vld [vmem:[%s0 + $0x64] sm:$0xf]
  %v41 = vld [vmem:[%s0 + $0x68] sm:$0xf]
  %v42 = vld [vmem:[%s0 + $0x6c] sm:$0xf]
  %v43 = vld [vmem:[%s0 + $0x70] sm:$0xf]
  %v44 = vld [vmem:[%s0 + $0x74] sm:$0xf]
  %v45 = vld [vmem:[%s0 + $0x78] sm:$0xf]
  %v46 = vld [vmem:[%s0 + $0x7c] sm:$0xf]
  %v47 = vld [vmem:[%s0 + $0x80] sm:$0xf]
  %v48 = vld [vmem:[%s0 + $0x84] sm:$0xf]
  %v49 = vld [vmem:[%s0 + $0x88] sm:$0xf]
  %v50 = vld [vmem:[%s0 + $0x8c] sm:$0xf]
  %v51 = vld [vmem:[%s0 + $0x90] sm:$0xf]
  %v52 = vld [vmem:[%s0 + $0x94] sm:$0xf]
  %v53 = vld [vmem:[%s0 + $0x98] sm:$0xf]
  %v54 = vld [vmem:[%s0 + $0x9c] sm:$0xf]
  %v55 = vld [vmem:[%s0 + $0xa0] sm:$0xf]
  %v56 = vld [vmem:[%s0 + $0xa4] sm:$0xf]
  %v57 = vld [vmem:[%s0 + $0xa8] sm:$0xf]
  %v58 = vld [vmem:[%s0 + $0xac] sm:$0xf]
  %v59 = vld [vmem:[%s0 + $0xb0] sm:$0xf]
  %v60 = vld [vmem:[%s0 + $0xb4] sm:$0xf]
  %v61 = vld [vmem:[%s0 + $0xb8] sm:$0xf]
  %v62 = vld [vmem:[%s0 + $0xbc] sm:$0xf]
  %v63 = vld [vmem:[%s0 + $0xc0] sm:$0xf]
  %v64 = vld [vmem:[%s0 + $0xc4] sm:$0xf]
  %v65 = vld [vmem:[%s0 + $0xc8] sm:$0xf]
  %v66 = vld [vmem:[%s0 + $0xcc] sm:$0xf]
  %v67 = vld [vmem:[%s0 + $0xd0] sm:$0xf]
  %v68 = vld [vmem:[%s0 + $0xd4] sm:$0xf]
  %v69 = vld [vmem:[%s0 + $0xd8] sm:$0xf]
  %v70 = vld [vmem:[%s0 + $0xdc] sm:$0xf]
  %v71 = vld [vmem:[%s0 + $0xe0] sm:$0xf]
  %v72 = vld [vmem:[%s0 + $0xe4] sm:$0xf]
  %v73 = vld [vmem:[%s0 + $0xe8] sm:$0xf]
  %v74 = vld [vmem:[%s0 + $0xec] sm:$0xf]
  %v75 = vld [vmem:[%s0 + $0xf0] sm:$0xf]
  %v76 = vld [vmem:[%s0 + $0xf4] sm:$0xf]
  %v77 = vld [vmem:[%s0 + $0xf8] sm:$0xf]
  %v78 = vld [vmem:[%s0 + $0xfc] sm:$0xf]
  %v79 = vld [vmem:[%s0 + $0x100] sm:$0xf]
  %v80 = vld [vmem:[%s0 + $0x104] sm:$0xf]
  %v81 = vld [vmem:[%s0 + $0x108] sm:$0xf]
  %v82 = vld [vmem:[%s0 + $0x10c] sm:$0xf]
  %v83 = vld [vmem:[%s0 + $0x110] sm:$0xf]
  %v84 = vld [vmem:[%s0 + $0x114] sm:$0xf]
  %v85 = vld [vmem:[%s0 + $0x118] sm:$0xf]
  %v86 = vld [vmem:[%s0 + $0x11c] sm:$0xf]
  %v87 = vld [vmem:[%s0 + $0x120] sm:$0xf]
  %v88 = vld [vmem:[%s0 + $0x124] sm:$0xf]
  %v89 = vld [vmem:[%s0 + $0x128] sm:$0xf]
  %v90 = vld [vmem:[%s0 + $0x12c] sm:$0xf]
  %v91 = vld [vmem:[%s0 + $0x130] sm:$0xf]
  %v92 = vld [vmem:[%s0 + $0x134] sm:$0xf]
  %v93 = vld [vmem:[%s0 + $0x138] sm:$0xf]
  %v94 = vld [vmem:[%s0 + $0x13c] sm:$0xf]
  %v95 = vld [vmem:[%s0 + $0x140] sm:$0xf]
  %v96 = vld [vmem:[%s0 + $0x144] sm:$0xf]
  %v97 = vld [vmem:[%s0 + $0x148] sm:$0xf]
  %v98 = vld [vmem:[%s0 + $0x14c] sm:$0xf]
  %v99 = vld [vmem:[%s0 + $0x150] sm:$0xf]
  %v100 = vld [vmem:[%s0 + $0x154] sm:$0xf]
  %v101 = vld [vmem:[%s0 + $0x158] sm:$0xf]
  %v102 = vld [vmem:[%s0 + $0x15c] sm:$0xf]
  %v103 = vld [vmem:[%s0 + $0x160] sm:$0xf]
  %v104 = vld [vmem:[%s0 + $0x164] sm:$0xf]
  %v105 = vld [vmem:[%s0 + $0x168] sm:$0xf]
  %v106 = vld [vmem:[%s0 + $0x16c] sm:$0xf]
  %v107 = vld [vmem:[%s0 + $0x170] sm:$0xf]
  %v108 = vld [vmem:[%s0 + $0x174] sm:$0xf]
  %v109 = vld [vmem:[%s0 + $0x178] sm:$0xf]
  %v110 = vld [vmem:[%s0 + $0x17c] sm:$0xf]
  %v111 = vld [vmem:[%s0 + $0x180] sm:$0xf]
  %v112 = vld [vmem:[%s0 + $0x184] sm:$0xf]
  %v113 = vld [vmem:[%s0 + $0x188] sm:$0xf]
  %v114 = vld [vmem:[%s0 + $0x18c] sm:$0xf]
  %v115 = vld [vmem:[%s0 + $0x190] sm:$0xf]
  %v116 = vld [vmem:[%s0 + $0x194] sm:$0xf]
  %v117 = vld [vmem:[%s0 + $0x198] sm:$0xf]
  %v118 = vld [vmem:[%s0 + $0x19c] sm:$0xf]
  %v119 = vld [vmem:[%s0 + $0x1a0] sm:$0xf]
  %v120 = vld [vmem:[%s0 + $0x1a4] sm:$0xf]
  %v121 = vld [vmem:[%s0 + $0x1a8] sm:$0xf]
  %v122 = vld [vmem:[%s0 + $0x1ac] sm:$0xf]
  %v123 = vld [vmem:[%s0 + $0x1b0] sm:$0xf]
  %v124 = vld [vmem:[%s0 + $0x1b4] sm:$0xf]
  %v125 = vld [vmem:[%s0 + $0x1b8] sm:$0xf]
  %v126 = vld [vmem:[%s0 + $0x1bc] sm:$0xf]
  %v127 = vld [vmem:[%s0 + $0x1c0] sm:$0xf]
  %v128 = vld [vmem:[%s0 + $0x1c4] sm:$0xf]
  %v129 = vld [vmem:[%s0 + $0x1c8] sm:$0xf]
  %v130 = vld [vmem:[%s0 + $0x1cc] sm:$0xf]
  %v131 = vld [vmem:[%s0 + $0x1d0] sm:$0xf]
  %v132 = vld [vmem:[%s0 + $0x1d4] sm:$0xf]
  %v133 = vld [vmem:[%s0 + $0x1d8] sm:$0xf]
  %v134 = vld [vmem:[%s0 + $0x1dc] sm:$0xf]
  %v135 = vld [vmem:[%s0 + $0x1e0] sm:$0xf]
  %v136 = vld [vmem:[%s0 + $0x1e4] sm:$0xf]
  %v137 = vld [vmem:[%s0 + $0x1e8] sm:$0xf]
  %v138 = vld [vmem:[%s0 + $0x1ec] sm:$0xf]
  %v139 = vld [vmem:[%s0 + $0x1f0] sm:$0xf]
  %v140 = vld [vmem:[%s0 + $0x1f4] sm:$0xf]
  %v141 = vld [vmem:[%s0 + $0x1f8] sm:$0xf]
  %v142 = vld [vmem:[%s0 + $0x1fc] sm:$0xf]
  %v143 = vld [vmem:[%s0 + $0x200] sm:$0xf]
  %v144 = vld [vmem:[%s0 + $0x204] sm:$0xf]
  %v145 = vld [vmem:[%s0 + $0x208] sm:$0xf]
  %v146 = vld [vmem:[%s0 + $0x20c] sm:$0xf]
  %v147 = vld [vmem:[%s0 + $0x210] sm:$0xf]
  %v148 = vld [vmem:[%s0 + $0x214] sm:$0xf]
  %v149 = vld [vmem:[%s0 + $0x218] sm:$0xf]
  %v150 = vld [vmem:[%s0 + $0x21c] sm:$0xf]
  %v151 = vld [vmem:[%s0 + $0x220] sm:$0xf]
  %v152 = vld [vmem:[%s0 + $0x224] sm:$0xf]
  %v153 = vld [vmem:[%s0 + $0x228] sm:$0xf]
  %v154 = vld [vmem:[%s0 + $0x22c] sm:$0xf]
  %v155 = vld [vmem:[%s0 + $0x230] sm:$0xf]
  %v156 = vld [vmem:[%s0 + $0x234] sm:$0xf]
  %v157 = vld [vmem:[%s0 + $0x238] sm:$0xf]
  %v158 = vld [vmem:[%s0 + $0x23c] sm:$0xf]
  %v159 = vld [vmem:[%s0 + $0x240] sm:$0xf]
  %v160 = vld [vmem:[%s0 + $0x244] sm:$0xf]
  %v161 = vld [vmem:[%s0 + $0x248] sm:$0xf]
  %v162 = vld [vmem:[%s0 + $0x24c] sm:$0xf]
  %v163 = vld [vmem:[%s0 + $0x250] sm:$0xf]
  %v164 = vld [vmem:[%s0 + $0x254] sm:$0xf]
  %v165 = vld [vmem:[%s0 + $0x258] sm:$0xf]
  %v166 = vld [vmem:[%s0 + $0x25c] sm:$0xf]
  %v167 = vld [vmem:[%s0 + $0x260] sm:$0xf]
  %v168 = vld [vmem:[%s0 + $0x264] sm:$0xf]
  %v169 = vld [vmem:[%s0 + $0x268] sm:$0xf]
  %v170 = vld [vmem:[%s0 + $0x26c] sm:$0xf]
  %v171 = vld [vmem:[%s0 + $0x270] sm:$0xf]
  %v172 = vld [vmem:[%s0 + $0x274] sm:$0xf]
  %v173 = vld [vmem:[%s0 + $0x278] sm:$0xf]
  %v174 = vld [vmem:[%s0 + $0x27c] sm:$0xf]
  %v175 = vld [vmem:[%s0 + $0x280] sm:$0xf]
  %v176 = vld [vmem:[%s0 + $0x284] sm:$0xf]
  %v177 = vld [vmem:[%s0 + $0x288] sm:$0xf]
  %v178 = vld [vmem:[%s0 + $0x28c] sm:$0xf]
  %v179 = vld [vmem:[%s0 + $0x290] sm:$0xf]
  %v180 = vld [vmem:[%s0 + $0x294] sm:$0xf]
  %v181 = vld [vmem:[%s0 + $0x298] sm:$0xf]
  %v182 = vld [vmem:[%s0 + $0x29c] sm:$0xf]
  %v183 = vld [vmem:[%s0 + $0x2a0] sm:$0xf]
  %v184 = vld [vmem:[%s0 + $0x2a4] sm:$0xf]
  %v185 = vld [vmem:[%s0 + $0x2a8] sm:$0xf]
  %v186 = vld [vmem:[%s0 + $0x2ac] sm:$0xf]
  %v187 = vld [vmem:[%s0 + $0x2b0] sm:$0xf]
  %v188 = vld [vmem:[%s0 + $0x2b4] sm:$0xf]
  %v189 = vld [vmem:[%s0 + $0x2b8] sm:$0xf]
  %v190 = vld [vmem:[%s0 + $0x2bc] sm:$0xf]
  %v191 = vld [vmem:[%s0 + $0x2c0] sm:$0xf]
  %v192 = vld [vmem:[%s0 + $0x2c4] sm:$0xf]
  %v193 = vld [vmem:[%s0 + $0x2c8] sm:$0xf]
  %v194 = vld [vmem:[%s0 + $0x2cc] sm:$0xf]
  %v195 = vld [vmem:[%s0 + $0x2d0] sm:$0xf]
  %v196 = vld [vmem:[%s0 + $0x2d4] sm:$0xf]
  %v197 = vld [vmem:[%s0 + $0x2d8] sm:$0xf]
  %v198 = vld [vmem:[%s0 + $0x2dc] sm:$0xf]
  %v199 = vld [vmem:[%s0 + $0x2e0] sm:$0xf]
  %v200 = vld [vmem:[%s0 + $0x2e4] sm:$0xf]
  %v201 = vld [vmem:[%s0 + $0x2e8] sm:$0xf]
  %v202 = vld [vmem:[%s0 + $0x2ec] sm:$0xf]
  %v203 = vld [vmem:[%s0 + $0x2f0] sm:$0xf]
  %v204 = vld [vmem:[%s0 + $0x2f4] sm:$0xf]
  %v205 = vld [vmem:[%s0 + $0x2f8] sm:$0xf]
  %v206 = vld [vmem:[%s0 + $0x2fc] sm:$0xf]
  %v207 = vld [vmem:[%s0 + $0x300] sm:$0xf]
  %v208 = vld [vmem:[%s0 + $0x304] sm:$0xf]
  %v209 = vld [vmem:[%s0 + $0x308] sm:$0xf]
  %v210 = vld [vmem:[%s0 + $0x30c] sm:$0xf]
  %v211 = vld [vmem:[%s1] sm:$0xf]
  %v212 = vld [vmem:[%s1 + $0x4] sm:$0xf]
  %v213 = vld [vmem:[%s1 + $0x8] sm:$0xf]
  %v214 = vld [vmem:[%s1 + $0xc] sm:$0x1]
  %v411 = vunpack.c.l.b16 %v15
  %v412 = vunpack.c.l.b16 %v16
  %v413 = vunpack.c.l.b16 %v17
  %v414 = vunpack.c.l.b16 %v18
  %v415 = vunpack.c.l.b16 %v19
  %v416 = vunpack.c.l.b16 %v20
  %v417 = vunpack.c.l.b16 %v21
  %v418 = vunpack.c.l.b16 %v22
  %v419 = vunpack.c.l.b16 %v23
  %v420 = vunpack.c.l.b16 %v24
  %v421 = vunpack.c.l.b16 %v25
  %v422 = vunpack.c.l.b16 %v26
  %v423 = vunpack.c.l.b16 %v27
  %v424 = vunpack.c.l.b16 %v28
  %v425 = vunpack.c.l.b16 %v29
  %v426 = vunpack.c.l.b16 %v30
  %v427 = vunpack.c.l.b16 %v31
  %v428 = vunpack.c.l.b16 %v32
  %v429 = vunpack.c.l.b16 %v33
  %v430 = vunpack.c.l.b16 %v34
  %v431 = vunpack.c.l.b16 %v35
  %v432 = vunpack.c.l.b16 %v36
  %v433 = vunpack.c.l.b16 %v37
  %v434 = vunpack.c.l.b16 %v38
  %v435 = vunpack.c.l.b16 %v39
  %v436 = vunpack.c.l.b16 %v40
  %v437 = vunpack.c.l.b16 %v41
  %v438 = vunpack.c.l.b16 %v42
  %v439 = vunpack.c.l.b16 %v43
  %v440 = vunpack.c.l.b16 %v44
  %v441 = vunpack.c.l.b16 %v45
  %v442 = vunpack.c.l.b16 %v46
  %v443 = vunpack.c.l.b16 %v47
  %v444 = vunpack.c.l.b16 %v48
  %v445 = vunpack.c.l.b16 %v49
  %v446 = vunpack.c.l.b16 %v50
  %v447 = vunpack.c.l.b16 %v51
  %v448 = vunpack.c.l.b16 %v52
  %v449 = vunpack.c.l.b16 %v53
  %v450 = vunpack.c.l.b16 %v54
  %v451 = vunpack.c.l.b16 %v55
  %v452 = vunpack.c.l.b16 %v56
  %v453 = vunpack.c.l.b16 %v57
  %v454 = vunpack.c.l.b16 %v58
  %v455 = vunpack.c.l.b16 %v59
  %v456 = vunpack.c.l.b16 %v60
  %v457 = vunpack.c.l.b16 %v61
  %v458 = vunpack.c.l.b16 %v62
  %v459 = vunpack.c.l.b16 %v63
  %v460 = vunpack.c.l.b16 %v64
  %v461 = vunpack.c.l.b16 %v65
  %v462 = vunpack.c.l.b16 %v66
  %v463 = vunpack.c.l.b16 %v67
  %v464 = vunpack.c.l.b16 %v68
  %v465 = vunpack.c.l.b16 %v69
  %v466 = vunpack.c.l.b16 %v70
  %v467 = vunpack.c.l.b16 %v71
  %v468 = vunpack.c.l.b16 %v72
  %v469 = vunpack.c.l.b16 %v73
  %v470 = vunpack.c.l.b16 %v74
  %v471 = vunpack.c.l.b16 %v75
  %v472 = vunpack.c.l.b16 %v76
  %v473 = vunpack.c.l.b16 %v77
  %v474 = vunpack.c.l.b16 %v78
  %v475 = vunpack.c.l.b16 %v79
  %v476 = vunpack.c.l.b16 %v80
  %v477 = vunpack.c.l.b16 %v81
  %v478 = vunpack.c.l.b16 %v82
  %v479 = vunpack.c.l.b16 %v83
  %v480 = vunpack.c.l.b16 %v84
  %v481 = vunpack.c.l.b16 %v85
  %v482 = vunpack.c.l.b16 %v86
  %v483 = vunpack.c.l.b16 %v87
  %v484 = vunpack.c.l.b16 %v88
  %v485 = vunpack.c.l.b16 %v89
  %v486 = vunpack.c.l.b16 %v90
  %v487 = vunpack.c.l.b16 %v91
  %v488 = vunpack.c.l.b16 %v92
  %v489 = vunpack.c.l.b16 %v93
  %v490 = vunpack.c.l.b16 %v94
  %v491 = vunpack.c.l.b16 %v95
  %v492 = vunpack.c.l.b16 %v96
  %v493 = vunpack.c.l.b16 %v97
  %v494 = vunpack.c.l.b16 %v98
  %v495 = vunpack.c.l.b16 %v99
  %v496 = vunpack.c.l.b16 %v100
  %v497 = vunpack.c.l.b16 %v101
  %v498 = vunpack.c.l.b16 %v102
  %v499 = vunpack.c.l.b16 %v103
  %v500 = vunpack.c.l.b16 %v104
  %v501 = vunpack.c.l.b16 %v105
  %v502 = vunpack.c.l.b16 %v106
  %v503 = vunpack.c.l.b16 %v107
  %v504 = vunpack.c.l.b16 %v108
  %v505 = vunpack.c.l.b16 %v109
  %v506 = vunpack.c.l.b16 %v110
  %v507 = vunpack.c.l.b16 %v111
  %v508 = vunpack.c.l.b16 %v112
  %v509 = vunpack.c.l.b16 %v113
  %v510 = vunpack.c.l.b16 %v114
  %v511 = vunpack.c.l.b16 %v115
  %v512 = vunpack.c.l.b16 %v116
  %v513 = vunpack.c.l.b16 %v117
  %v514 = vunpack.c.l.b16 %v118
  %v515 = vunpack.c.l.b16 %v119
  %v516 = vunpack.c.l.b16 %v120
  %v517 = vunpack.c.l.b16 %v121
  %v518 = vunpack.c.l.b16 %v122
  %v519 = vunpack.c.l.b16 %v123
  %v520 = vunpack.c.l.b16 %v124
  %v521 = vunpack.c.l.b16 %v125
  %v522 = vunpack.c.l.b16 %v126
  %v523 = vunpack.c.l.b16 %v127
  %v524 = vunpack.c.l.b16 %v128
  %v525 = vunpack.c.l.b16 %v129
  %v526 = vunpack.c.l.b16 %v130
  %v527 = vunpack.c.l.b16 %v131
  %v528 = vunpack.c.l.b16 %v132
  %v529 = vunpack.c.l.b16 %v133
  %v530 = vunpack.c.l.b16 %v134
  %v531 = vunpack.c.l.b16 %v135
  %v532 = vunpack.c.l.b16 %v136
  %v533 = vunpack.c.l.b16 %v137
  %v534 = vunpack.c.l.b16 %v138
  %v535 = vunpack.c.l.b16 %v139
  %v536 = vunpack.c.l.b16 %v140
  %v537 = vunpack.c.l.b16 %v141
  %v538 = vunpack.c.l.b16 %v142
  %v539 = vunpack.c.l.b16 %v143
  %v540 = vunpack.c.l.b16 %v144
  %v541 = vunpack.c.l.b16 %v145
  %v542 = vunpack.c.l.b16 %v146
  %v543 = vunpack.c.l.b16 %v147
  %v544 = vunpack.c.l.b16 %v148
  %v545 = vunpack.c.l.b16 %v149
  %v546 = vunpack.c.l.b16 %v150
  %v547 = vunpack.c.l.b16 %v151
  %v548 = vunpack.c.l.b16 %v152
  %v549 = vunpack.c.l.b16 %v153
  %v550 = vunpack.c.l.b16 %v154
  %v551 = vunpack.c.l.b16 %v155
  %v552 = vunpack.c.l.b16 %v156
  %v553 = vunpack.c.l.b16 %v157
  %v554 = vunpack.c.l.b16 %v158
  %v555 = vunpack.c.l.b16 %v159
  %v556 = vunpack.c.l.b16 %v160
  %v557 = vunpack.c.l.b16 %v161
  %v558 = vunpack.c.l.b16 %v162
  %v559 = vunpack.c.l.b16 %v163
  %v560 = vunpack.c.l.b16 %v164
  %v561 = vunpack.c.l.b16 %v165
  %v562 = vunpack.c.l.b16 %v166
  %v563 = vunpack.c.l.b16 %v167
  %v564 = vunpack.c.l.b16 %v168
  %v565 = vunpack.c.l.b16 %v169
  %v566 = vunpack.c.l.b16 %v170
  %v567 = vunpack.c.l.b16 %v171
  %v568 = vunpack.c.l.b16 %v172
  %v569 = vunpack.c.l.b16 %v173
  %v570 = vunpack.c.l.b16 %v174
  %v571 = vunpack.c.l.b16 %v175
  %v572 = vunpack.c.l.b16 %v176
  %v573 = vunpack.c.l.b16 %v177
  %v574 = vunpack.c.l.b16 %v178
  %v575 = vunpack.c.l.b16 %v179
  %v576 = vunpack.c.l.b16 %v180
  %v577 = vunpack.c.l.b16 %v181
  %v578 = vunpack.c.l.b16 %v182
  %v579 = vunpack.c.l.b16 %v183
  %v580 = vunpack.c.l.b16 %v184
  %v581 = vunpack.c.l.b16 %v185
  %v582 = vunpack.c.l.b16 %v186
  %v583 = vunpack.c.l.b16 %v187
  %v584 = vunpack.c.l.b16 %v188
  %v585 = vunpack.c.l.b16 %v189
  %v586 = vunpack.c.l.b16 %v190
  %v587 = vunpack.c.l.b16 %v191
  %v588 = vunpack.c.l.b16 %v192
  %v589 = vunpack.c.l.b16 %v193
  %v590 = vunpack.c.l.b16 %v194
  %v591 = vunpack.c.l.b16 %v195
  %v592 = vunpack.c.l.b16 %v196
  %v593 = vunpack.c.l.b16 %v197
  %v594 = vunpack.c.l.b16 %v198
  %v595 = vunpack.c.l.b16 %v199
  %v596 = vunpack.c.l.b16 %v200
  %v597 = vunpack.c.l.b16 %v201
  %v598 = vunpack.c.l.b16 %v202
  %v599 = vunpack.c.l.b16 %v203
  %v600 = vunpack.c.l.b16 %v204
  %v601 = vunpack.c.l.b16 %v205
  %v602 = vunpack.c.l.b16 %v206
  %v603 = vunpack.c.l.b16 %v207
  %v604 = vunpack.c.l.b16 %v208
  %v605 = vunpack.c.l.b16 %v209
  %v606 = vunpack.c.l.b16 %v210
  %v607 = vpack.c.b16 %v412, %v411
  %v608 = vpack.c.b16 %v414, %v413
  %v609 = vpack.c.b16 %v416, %v415
  %v610 = vpack.c.b16 %v418, %v417
  %v611 = vpack.c.b16 %v420, %v419
  %v612 = vpack.c.b16 %v422, %v421
  %v613 = vpack.c.b16 %v424, %v423
  %v614 = vpack.c.b16 %v426, %v425
  %v615 = vpack.c.b16 %v428, %v427
  %v616 = vpack.c.b16 %v430, %v429
  %v617 = vpack.c.b16 %v432, %v431
  %v618 = vpack.c.b16 %v434, %v433
  %v619 = vpack.c.b16 %v436, %v435
  %v620 = vpack.c.b16 %v438, %v437
  %v621 = vpack.c.b16 %v440, %v439
  %v622 = vpack.c.b16 %v442, %v441
  %v623 = vpack.c.b16 %v444, %v443
  %v624 = vpack.c.b16 %v446, %v445
  %v625 = vpack.c.b16 %v448, %v447
  %v626 = vpack.c.b16 %v450, %v449
  %v627 = vpack.c.b16 %v452, %v451
  %v628 = vpack.c.b16 %v454, %v453
  %v629 = vpack.c.b16 %v456, %v455
  %v630 = vpack.c.b16 %v458, %v457
  %v631 = vpack.c.b16 %v460, %v459
  %v632 = vpack.c.b16 %v462, %v461
  %v633 = vpack.c.b16 %v464, %v463
  %v634 = vpack.c.b16 %v466, %v465
  %v635 = vpack.c.b16 %v468, %v467
  %v636 = vpack.c.b16 %v470, %v469
  %v637 = vpack.c.b16 %v472, %v471
  %v638 = vpack.c.b16 %v474, %v473
  %v639 = vpack.c.b16 %v476, %v475
  %v640 = vpack.c.b16 %v478, %v477
  %v641 = vpack.c.b16 %v480, %v479
  %v642 = vpack.c.b16 %v482, %v481
  %v643 = vpack.c.b16 %v484, %v483
  %v644 = vpack.c.b16 %v486, %v485
  %v645 = vpack.c.b16 %v488, %v487
  %v646 = vpack.c.b16 %v490, %v489
  %v647 = vpack.c.b16 %v492, %v491
  %v648 = vpack.c.b16 %v494, %v493
  %v649 = vpack.c.b16 %v496, %v495
  %v650 = vpack.c.b16 %v498, %v497
  %v651 = vpack.c.b16 %v500, %v499
  %v652 = vpack.c.b16 %v502, %v501
  %v653 = vpack.c.b16 %v504, %v503
  %v654 = vpack.c.b16 %v506, %v505
  %v655 = vpack.c.b16 %v508, %v507
  %v656 = vpack.c.b16 %v510, %v509
  %v657 = vpack.c.b16 %v512, %v511
  %v658 = vpack.c.b16 %v514, %v513
  %v659 = vpack.c.b16 %v516, %v515
  %v660 = vpack.c.b16 %v518, %v517
  %v661 = vpack.c.b16 %v520, %v519
  %v662 = vpack.c.b16 %v522, %v521
  %v663 = vpack.c.b16 %v524, %v523
  %v664 = vpack.c.b16 %v526, %v525
  %v665 = vpack.c.b16 %v528, %v527
  %v666 = vpack.c.b16 %v530, %v529
  %v667 = vpack.c.b16 %v532, %v531
  %v668 = vpack.c.b16 %v534, %v533
  %v669 = vpack.c.b16 %v536, %v535
  %v670 = vpack.c.b16 %v538, %v537
  %v671 = vpack.c.b16 %v540, %v539
  %v672 = vpack.c.b16 %v542, %v541
  %v673 = vpack.c.b16 %v544, %v543
  %v674 = vpack.c.b16 %v546, %v545
  %v675 = vpack.c.b16 %v548, %v547
  %v676 = vpack.c.b16 %v550, %v549
  %v677 = vpack.c.b16 %v552, %v551
  %v678 = vpack.c.b16 %v554, %v553
  %v679 = vpack.c.b16 %v556, %v555
  %v680 = vpack.c.b16 %v558, %v557
  %v681 = vpack.c.b16 %v560, %v559
  %v682 = vpack.c.b16 %v562, %v561
  %v683 = vpack.c.b16 %v564, %v563
  %v684 = vpack.c.b16 %v566, %v565
  %v685 = vpack.c.b16 %v568, %v567
  %v686 = vpack.c.b16 %v570, %v569
  %v687 = vpack.c.b16 %v572, %v571
  %v688 = vpack.c.b16 %v574, %v573
  %v689 = vpack.c.b16 %v576, %v575
  %v690 = vpack.c.b16 %v578, %v577
  %v691 = vpack.c.b16 %v580, %v579
  %v692 = vpack.c.b16 %v582, %v581
  %v693 = vpack.c.b16 %v584, %v583
  %v694 = vpack.c.b16 %v586, %v585
  %v695 = vpack.c.b16 %v588, %v587
  %v696 = vpack.c.b16 %v590, %v589
  %v697 = vpack.c.b16 %v592, %v591
  %v698 = vpack.c.b16 %v594, %v593
  %v699 = vpack.c.b16 %v596, %v595
  %v700 = vpack.c.b16 %v598, %v597
  %v701 = vpack.c.b16 %v600, %v599
  %v702 = vpack.c.b16 %v602, %v601
  %v703 = vpack.c.b16 %v604, %v603
  %v704 = vpack.c.b16 %v606, %v605
  %v709 = vunpack.c.l.b16 %v211
  %v710 = vunpack.c.l.b16 %v212
  %v711 = vunpack.c.l.b16 %v213
  %v712 = vunpack.c.l.b16 %v214
  %v713 = vpack.c.b16 %v710, %v709
  %v714 = vpack.c.b16 %v712, %v711
  %vm716 = vcmask 203776
  %v718 = vsel %vm716, %v607, 0
  %v721 = vsel %vm716, %v608, 0
  %v724 = vsel %vm716, %v609, 0
  %v727 = vsel %vm716, %v610, 0
  %v730 = vsel %vm716, %v611, 0
  %v733 = vsel %vm716, %v612, 0
  %v736 = vsel %vm716, %v613, 0
  %v739 = vsel %vm716, %v614, 0
  %v742 = vsel %vm716, %v615, 0
  %v745 = vsel %vm716, %v616, 0
  %v748 = vsel %vm716, %v617, 0
  %v751 = vsel %vm716, %v618, 0
  %v754 = vsel %vm716, %v619, 0
  %v757 = vsel %vm716, %v620, 0
  %v760 = vsel %vm716, %v621, 0
  %v763 = vsel %vm716, %v622, 0
  %v766 = vsel %vm716, %v623, 0
  %v769 = vsel %vm716, %v624, 0
  %v772 = vsel %vm716, %v625, 0
  %v775 = vsel %vm716, %v626, 0
  %v778 = vsel %vm716, %v627, 0
  %v781 = vsel %vm716, %v628, 0
  %v784 = vsel %vm716, %v629, 0
  %v787 = vsel %vm716, %v630, 0
  %v790 = vsel %vm716, %v631, 0
  %v793 = vsel %vm716, %v632, 0
  %v796 = vsel %vm716, %v633, 0
  %v799 = vsel %vm716, %v634, 0
  %v802 = vsel %vm716, %v635, 0
  %v805 = vsel %vm716, %v636, 0
  %v808 = vsel %vm716, %v637, 0
  %v811 = vsel %vm716, %v638, 0
  %v814 = vsel %vm716, %v639, 0
  %v817 = vsel %vm716, %v640, 0
  %v820 = vsel %vm716, %v641, 0
  %v823 = vsel %vm716, %v642, 0
  %v826 = vsel %vm716, %v643, 0
  %v829 = vsel %vm716, %v644, 0
  %v832 = vsel %vm716, %v645, 0
  %v835 = vsel %vm716, %v646, 0
  %v838 = vsel %vm716, %v647, 0
  %v841 = vsel %vm716, %v648, 0
  %v844 = vsel %vm716, %v649, 0
  %v847 = vsel %vm716, %v650, 0
  %v850 = vsel %vm716, %v651, 0
  %v853 = vsel %vm716, %v652, 0
  %v856 = vsel %vm716, %v653, 0
  %v859 = vsel %vm716, %v654, 0
  %v862 = vsel %vm716, %v655, 0
  %v865 = vsel %vm716, %v656, 0
  %v868 = vsel %vm716, %v657, 0
  %v871 = vsel %vm716, %v658, 0
  %v874 = vsel %vm716, %v659, 0
  %v877 = vsel %vm716, %v660, 0
  %v880 = vsel %vm716, %v661, 0
  %v883 = vsel %vm716, %v662, 0
  %v886 = vsel %vm716, %v663, 0
  %v889 = vsel %vm716, %v664, 0
  %v892 = vsel %vm716, %v665, 0
  %v895 = vsel %vm716, %v666, 0
  %v898 = vsel %vm716, %v667, 0
  %v901 = vsel %vm716, %v668, 0
  %v904 = vsel %vm716, %v669, 0
  %v907 = vsel %vm716, %v670, 0
  %v910 = vsel %vm716, %v671, 0
  %v913 = vsel %vm716, %v672, 0
  %v916 = vsel %vm716, %v673, 0
  %v919 = vsel %vm716, %v674, 0
  %v922 = vsel %vm716, %v675, 0
  %v925 = vsel %vm716, %v676, 0
  %v928 = vsel %vm716, %v677, 0
  %v931 = vsel %vm716, %v678, 0
  %v934 = vsel %vm716, %v679, 0
  %v937 = vsel %vm716, %v680, 0
  %v940 = vsel %vm716, %v681, 0
  %v943 = vsel %vm716, %v682, 0
  %v946 = vsel %vm716, %v683, 0
  %v949 = vsel %vm716, %v684, 0
  %v952 = vsel %vm716, %v685, 0
  %v955 = vsel %vm716, %v686, 0
  %v958 = vsel %vm716, %v687, 0
  %v961 = vsel %vm716, %v688, 0
  %v964 = vsel %vm716, %v689, 0
  %v967 = vsel %vm716, %v690, 0
  %v970 = vsel %vm716, %v691, 0
  %v973 = vsel %vm716, %v692, 0
  %v976 = vsel %vm716, %v693, 0
  %v979 = vsel %vm716, %v694, 0
  %v982 = vsel %vm716, %v695, 0
  %v985 = vsel %vm716, %v696, 0
  %v988 = vsel %vm716, %v697, 0
  %v991 = vsel %vm716, %v698, 0
  %v994 = vsel %vm716, %v699, 0
  %v997 = vsel %vm716, %v700, 0
  %v1000 = vsel %vm716, %v701, 0
  %v1003 = vsel %vm716, %v702, 0
  %v1006 = vsel %vm716, %v703, 0
  %v1009 = vsel %vm716, %v704, 0
  %vm1011 = vcmask 1043456
  %vm1012 = vcmask 1044480
  %v1013 = vsel %vm1011, 4294967295, 65535
  %v1014 = vsel %vm1012, %v1013, 0
  %v1016 = vand.u32 %v714, %v1014
  %1018 = vmatprep.subr.bf16.mxu0 0
  %1019 = vmatpush1.bf16.msra.mxu0 %v713
  %1020 = vmatprep.subr.bf16.mxu0 0
  %1021 = vmatpush1.bf16.msra.mxu0 %v1016
  %1022 = vmatprep.subr.bf16.mxu0 0
  %1023 = vmatpush1.bf16.msra.mxu0 0
  %1024 = vmatprep.subr.bf16.mxu0 0
  %1025 = vmatpush1.bf16.msra.mxu0 0
  %1026 = vmatprep.subr.bf16.mxu0 0
  %1027 = vmatpush1.bf16.msra.mxu0 0
  %1028 = vmatprep.subr.bf16.mxu0 0
  %1029 = vmatpush1.bf16.msra.mxu0 0
  %1030 = vmatprep.subr.bf16.mxu0 0
  %1031 = vmatpush1.bf16.msra.mxu0 0
  %1032 = vmatprep.subr.bf16.mxu0 0
  %1033 = vmatpush1.bf16.msra.mxu0 0
  %1034 = vmatprep.subr.bf16.mxu0 0
  %1035 = vmatpush1.bf16.msra.mxu0 0
  %1036 = vmatprep.subr.bf16.mxu0 0
  %1037 = vmatpush1.bf16.msra.mxu0 0
  %1038 = vmatprep.subr.bf16.mxu0 0
  %1039 = vmatpush1.bf16.msra.mxu0 0
  %1040 = vmatprep.subr.bf16.mxu0 0
  %1041 = vmatpush1.bf16.msra.mxu0 0
  %1042 = vmatprep.subr.bf16.mxu0 0
  %1043 = vmatpush1.bf16.msra.mxu0 0
  %1044 = vmatprep.subr.bf16.mxu0 0
  %1045 = vmatpush1.bf16.msra.mxu0 0
  %1046 = vmatprep.subr.bf16.mxu0 0
  %1047 = vmatpush1.bf16.msra.mxu0 0
  %1048 = vmatprep.subr.bf16.mxu0 0
  %1049 = vmatpush1.bf16.msra.mxu0 0
  %1050 = vmatprep.mubr.bf16.mxu0 0
  %1051 = vmatmul.mubr.bf16.gmra.mrb[0].mxu0 %v718
  %v1052 = vpop.f32.mrb[0].mxu0
  %v1053 = vadd.f32 0.0, %v1052
  %v1054 = vpop.f32.mrb[0].mxu0
  %v1055 = vpop.f32.mrb[0].mxu0
  %v1056 = vadd.f32 0.0, %v1055
  %v1057 = vpop.f32.mrb[0].mxu0
  %1058 = vmatprep.mubr.bf16.mxu0 0
  %1059 = vmatmul.mubr.bf16.gmra.mrb[0].mxu0 %v721
  %v1060 = vpop.f32.mrb[0].mxu0
  %v1061 = vadd.f32 0.0, %v1060
  %v1062 = vpop.f32.mrb[0].mxu0
  %v1063 = vpop.f32.mrb[0].mxu0
  %v1064 = vadd.f32 0.0, %v1063
  %v1065 = vpop.f32.mrb[0].mxu0
  %1066 = vmatprep.mubr.bf16.mxu0 0
  %1067 = vmatmul.mubr.bf16.gmra.mrb[0].mxu0 %v724
  %v1068 = vpop.f32.mrb[0].mxu0
  %v1069 = vadd.f32 0.0, %v1068
  %v1070 = vpop.f32.mrb[0].mxu0
  %v1071 = vpop.f32.mrb[0].mxu0
  %v1072 = vadd.f32 0.0, %v1071
  %v1073 = vpop.f32.mrb[0].mxu0
  %1074 = vmatprep.mubr.bf16.mxu0 0
  %1075 = vmatmul.mubr.bf16.gmra.mrb[0].mxu0 %v727
  %v1076 = vpop.f32.mrb[0].mxu0
  %v1077 = vadd.f32 0.0, %v1076
  %v1078 = vpop.f32.mrb[0].mxu0
  %v1079 = vpop.f32.mrb[0].mxu0
  %v1080 = vadd.f32 0.0, %v1079
  %v1081 = vpop.f32.mrb[0].mxu0
  %1082 = vmatprep.mubr.bf16.mxu0 0
  %1083 = vmatmul.mubr.bf16.gmra.mrb[0].mxu0 %v730
  %v1084 = vpop.f32.mrb[0].mxu0
  %v1085 = vadd.f32 0.0, %v1084
  %v1086 = vpop.f32.mrb[0].mxu0
  %v1087 = vpop.f32.mrb[0].mxu0
  %v1088 = vadd.f32 0.0, %v1087
  %v1089 = vpop.f32.mrb[0].mxu0
  %1090 = vmatprep.mubr.bf16.mxu0 0
  %1091 = vmatmul.mubr.bf16.gmra.mrb[0].mxu0 %v733
  %v1092 = vpop.f32.mrb[0].mxu0
  %v1093 = vadd.f32 0.0, %v1092
  %v1094 = vpop.f32.mrb[0].mxu0
  %v1095 = vpop.f32.mrb[0].mxu0
  %v1096 = vadd.f32 0.0, %v1095
  %v1097 = vpop.f32.mrb[0].mxu0
  %1098 = vmatprep.mubr.bf16.mxu0 0
  %1099 = vmatmul.mubr.bf16.gmra.mrb[0].mxu0 %v736
  %v1100 = vpop.f32.mrb[0].mxu0
  %v1101 = vadd.f32 0.0, %v1100
  %v1102 = vpop.f32.mrb[0].mxu0
  %v1103 = vpop.f32.mrb[0].mxu0
  %v1104 = vadd.f32 0.0, %v1103
  %v1105 = vpop.f32.mrb[0].mxu0
  %1106 = vmatprep.mubr.bf16.mxu0 0
  %1107 = vmatmul.mubr.bf16.gmra.mrb[0].mxu0 %v739
  %v1108 = vpop.f32.mrb[0].mxu0
  %v1109 = vadd.f32 0.0, %v1108
  %v1110 = vpop.f32.mrb[0].mxu0
  %v1111 = vpop.f32.mrb[0].mxu0
  %v1112 = vadd.f32 0.0, %v1111
  %v1113 = vpop.f32.mrb[0].mxu0
  %1114 = vmatprep.mubr.bf16.mxu0 0
  %1115 = vmatmul.mubr.bf16.gmra.mrb[0].mxu0 %v742
  %v1116 = vpop.f32.mrb[0].mxu0
  %v1117 = vadd.f32 0.0, %v1116
  %v1118 = vpop.f32.mrb[0].mxu0
  %v1119 = vpop.f32.mrb[0].mxu0
  %v1120 = vadd.f32 0.0, %v1119
  %v1121 = vpop.f32.mrb[0].mxu0
  %1122 = vmatprep.mubr.bf16.mxu0 0
  %1123 = vmatmul.mubr.bf16.gmra.mrb[0].mxu0 %v745
  %v1124 = vpop.f32.mrb[0].mxu0
  %v1125 = vadd.f32 0.0, %v1124
  %v1126 = vpop.f32.mrb[0].mxu0
  %v1127 = vpop.f32.mrb[0].mxu0
  %v1128 = vadd.f32 0.0, %v1127
  %v1129 = vpop.f32.mrb[0].mxu0
  %1130 = vmatprep.mubr.bf16.mxu0 0
  %1131 = vmatmul.mubr.bf16.gmra.mrb[0].mxu0 %v748
  %v1132 = vpop.f32.mrb[0].mxu0
  %v1133 = vadd.f32 0.0, %v1132
  %v1134 = vpop.f32.mrb[0].mxu0
  %v1135 = vpop.f32.mrb[0].mxu0
  %v1136 = vadd.f32 0.0, %v1135
  %v1137 = vpop.f32.mrb[0].mxu0
  %1138 = vmatprep.mubr.bf16.mxu0 0
  %1139 = vmatmul.mubr.bf16.gmra.mrb[0].mxu0 %v751
  %v1140 = vpop.f32.mrb[0].mxu0
  %v1141 = vadd.f32 0.0, %v1140
  %v1142 = vpop.f32.mrb[0].mxu0
  %v1143 = vpop.f32.mrb[0].mxu0
  %v1144 = vadd.f32 0.0, %v1143
  %v1145 = vpop.f32.mrb[0].mxu0
  %1146 = vmatprep.mubr.bf16.mxu0 0
  %1147 = vmatmul.mubr.bf16.gmra.mrb[0].mxu0 %v754
  %v1148 = vpop.f32.mrb[0].mxu0
  %v1149 = vadd.f32 0.0, %v1148
  %v1150 = vpop.f32.mrb[0].mxu0
  %v1151 = vpop.f32.mrb[0].mxu0
  %v1152 = vadd.f32 0.0, %v1151
  %v1153 = vpop.f32.mrb[0].mxu0
  %1154 = vmatprep.mubr.bf16.mxu0 0
  %1155 = vmatmul.mubr.bf16.gmra.mrb[0].mxu0 %v757
  %v1156 = vpop.f32.mrb[0].mxu0
  %v1157 = vadd.f32 0.0, %v1156
  %v1158 = vpop.f32.mrb[0].mxu0
  %v1159 = vpop.f32.mrb[0].mxu0
  %v1160 = vadd.f32 0.0, %v1159
  %v1161 = vpop.f32.mrb[0].mxu0
  %1162 = vmatprep.mubr.bf16.mxu0 0
  %1163 = vmatmul.mubr.bf16.gmra.mrb[0].mxu0 %v760
  %v1164 = vpop.f32.mrb[0].mxu0
  %v1165 = vadd.f32 0.0, %v1164
  %v1166 = vpop.f32.mrb[0].mxu0
  %v1167 = vpop.f32.mrb[0].mxu0
  %v1168 = vadd.f32 0.0, %v1167
  %v1169 = vpop.f32.mrb[0].mxu0
  %1170 = vmatprep.mubr.bf16.mxu0 0
  %1171 = vmatmul.mubr.bf16.gmra.mrb[0].mxu0 %v763
  %v1172 = vpop.f32.mrb[0].mxu0
  %v1173 = vadd.f32 0.0, %v1172
  %v1174 = vpop.f32.mrb[0].mxu0
  %v1175 = vpop.f32.mrb[0].mxu0
  %v1176 = vadd.f32 0.0, %v1175
  %v1177 = vpop.f32.mrb[0].mxu0
  %1178 = vmatprep.mubr.bf16.mxu0 0
  %1179 = vmatmul.mubr.bf16.gmra.mrb[0].mxu0 %v766
  %v1180 = vpop.f32.mrb[0].mxu0
  %v1181 = vadd.f32 0.0, %v1180
  %v1182 = vpop.f32.mrb[0].mxu0
  %v1183 = vpop.f32.mrb[0].mxu0
  %v1184 = vadd.f32 0.0, %v1183
  %v1185 = vpop.f32.mrb[0].mxu0
  %1186 = vmatprep.mubr.bf16.mxu0 0
  %1187 = vmatmul.mubr.bf16.gmra.mrb[0].mxu0 %v769
  %v1188 = vpop.f32.mrb[0].mxu0
  %v1189 = vadd.f32 0.0, %v1188
  %v1190 = vpop.f32.mrb[0].mxu0
  %v1191 = vpop.f32.mrb[0].mxu0
  %v1192 = vadd.f32 0.0, %v1191
  %v1193 = vpop.f32.mrb[0].mxu0
  %1194 = vmatprep.mubr.bf16.mxu0 0
  %1195 = vmatmul.mubr.bf16.gmra.mrb[0].mxu0 %v772
  %v1196 = vpop.f32.mrb[0].mxu0
  %v1197 = vadd.f32 0.0, %v1196
  %v1198 = vpop.f32.mrb[0].mxu0
  %v1199 = vpop.f32.mrb[0].mxu0
  %v1200 = vadd.f32 0.0, %v1199
  %v1201 = vpop.f32.mrb[0].mxu0
  %1202 = vmatprep.mubr.bf16.mxu0 0
  %1203 = vmatmul.mubr.bf16.gmra.mrb[0].mxu0 %v775
  %v1204 = vpop.f32.mrb[0].mxu0
  %v1205 = vadd.f32 0.0, %v1204
  %v1206 = vpop.f32.mrb[0].mxu0
  %v1207 = vpop.f32.mrb[0].mxu0
  %v1208 = vadd.f32 0.0, %v1207
  %v1209 = vpop.f32.mrb[0].mxu0
  %1210 = vmatprep.mubr.bf16.mxu0 0
  %1211 = vmatmul.mubr.bf16.gmra.mrb[0].mxu0 %v778
  %v1212 = vpop.f32.mrb[0].mxu0
  %v1213 = vadd.f32 0.0, %v1212
  %v1214 = vpop.f32.mrb[0].mxu0
  %v1215 = vpop.f32.mrb[0].mxu0
  %v1216 = vadd.f32 0.0, %v1215
  %v1217 = vpop.f32.mrb[0].mxu0
  %1218 = vmatprep.mubr.bf16.mxu0 0
  %1219 = vmatmul.mubr.bf16.gmra.mrb[0].mxu0 %v781
  %v1220 = vpop.f32.mrb[0].mxu0
  %v1221 = vadd.f32 0.0, %v1220
  %v1222 = vpop.f32.mrb[0].mxu0
  %v1223 = vpop.f32.mrb[0].mxu0
  %v1224 = vadd.f32 0.0, %v1223
  %v1225 = vpop.f32.mrb[0].mxu0
  %1226 = vmatprep.mubr.bf16.mxu0 0
  %1227 = vmatmul.mubr.bf16.gmra.mrb[0].mxu0 %v784
  %v1228 = vpop.f32.mrb[0].mxu0
  %v1229 = vadd.f32 0.0, %v1228
  %v1230 = vpop.f32.mrb[0].mxu0
  %v1231 = vpop.f32.mrb[0].mxu0
  %v1232 = vadd.f32 0.0, %v1231
  %v1233 = vpop.f32.mrb[0].mxu0
  %1234 = vmatprep.mubr.bf16.mxu0 0
  %1235 = vmatmul.mubr.bf16.gmra.mrb[0].mxu0 %v787
  %v1236 = vpop.f32.mrb[0].mxu0
  %v1237 = vadd.f32 0.0, %v1236
  %v1238 = vpop.f32.mrb[0].mxu0
  %v1239 = vpop.f32.mrb[0].mxu0
  %v1240 = vadd.f32 0.0, %v1239
  %v1241 = vpop.f32.mrb[0].mxu0
  %1242 = vmatprep.mubr.bf16.mxu0 0
  %1243 = vmatmul.mubr.bf16.gmra.mrb[0].mxu0 %v790
  %v1244 = vpop.f32.mrb[0].mxu0
  %v1245 = vadd.f32 0.0, %v1244
  %v1246 = vpop.f32.mrb[0].mxu0
  %v1247 = vpop.f32.mrb[0].mxu0
  %v1248 = vadd.f32 0.0, %v1247
  %v1249 = vpop.f32.mrb[0].mxu0
  %1250 = vmatprep.mubr.bf16.mxu0 0
  %1251 = vmatmul.mubr.bf16.gmra.mrb[0].mxu0 %v793
  %v1252 = vpop.f32.mrb[0].mxu0
  %v1253 = vadd.f32 0.0, %v1252
  %v1254 = vpop.f32.mrb[0].mxu0
  %v1255 = vpop.f32.mrb[0].mxu0
  %v1256 = vadd.f32 0.0, %v1255
  %v1257 = vpop.f32.mrb[0].mxu0
  %1258 = vmatprep.mubr.bf16.mxu0 0
  %1259 = vmatmul.mubr.bf16.gmra.mrb[0].mxu0 %v796
  %v1260 = vpop.f32.mrb[0].mxu0
  %v1261 = vadd.f32 0.0, %v1260
  %v1262 = vpop.f32.mrb[0].mxu0
  %v1263 = vpop.f32.mrb[0].mxu0
  %v1264 = vadd.f32 0.0, %v1263
  %v1265 = vpop.f32.mrb[0].mxu0
  %1266 = vmatprep.mubr.bf16.mxu0 0
  %1267 = vmatmul.mubr.bf16.gmra.mrb[0].mxu0 %v799
  %v1268 = vpop.f32.mrb[0].mxu0
  %v1269 = vadd.f32 0.0, %v1268
  %v1270 = vpop.f32.mrb[0].mxu0
  %v1271 = vpop.f32.mrb[0].mxu0
  %v1272 = vadd.f32 0.0, %v1271
  %v1273 = vpop.f32.mrb[0].mxu0
  %1274 = vmatprep.mubr.bf16.mxu0 0
  %1275 = vmatmul.mubr.bf16.gmra.mrb[0].mxu0 %v802
  %v1276 = vpop.f32.mrb[0].mxu0
  %v1277 = vadd.f32 0.0, %v1276
  %v1278 = vpop.f32.mrb[0].mxu0
  %v1279 = vpop.f32.mrb[0].mxu0
  %v1280 = vadd.f32 0.0, %v1279
  %v1281 = vpop.f32.mrb[0].mxu0
  %1282 = vmatprep.mubr.bf16.mxu0 0
  %1283 = vmatmul.mubr.bf16.gmra.mrb[0].mxu0 %v805
  %v1284 = vpop.f32.mrb[0].mxu0
  %v1285 = vadd.f32 0.0, %v1284
  %v1286 = vpop.f32.mrb[0].mxu0
  %v1287 = vpop.f32.mrb[0].mxu0
  %v1288 = vadd.f32 0.0, %v1287
  %v1289 = vpop.f32.mrb[0].mxu0
  %1290 = vmatprep.mubr.bf16.mxu0 0
  %1291 = vmatmul.mubr.bf16.gmra.mrb[0].mxu0 %v808
  %v1292 = vpop.f32.mrb[0].mxu0
  %v1293 = vadd.f32 0.0, %v1292
  %v1294 = vpop.f32.mrb[0].mxu0
  %v1295 = vpop.f32.mrb[0].mxu0
  %v1296 = vadd.f32 0.0, %v1295
  %v1297 = vpop.f32.mrb[0].mxu0
  %1298 = vmatprep.mubr.bf16.mxu0 0
  %1299 = vmatmul.mubr.bf16.gmra.mrb[0].mxu0 %v811
  %v1300 = vpop.f32.mrb[0].mxu0
  %v1301 = vadd.f32 0.0, %v1300
  %v1302 = vpop.f32.mrb[0].mxu0
  %v1303 = vpop.f32.mrb[0].mxu0
  %v1304 = vadd.f32 0.0, %v1303
  %v1305 = vpop.f32.mrb[0].mxu0
  %1306 = vmatprep.mubr.bf16.mxu0 0
  %1307 = vmatmul.mubr.bf16.gmra.mrb[0].mxu0 %v814
  %v1308 = vpop.f32.mrb[0].mxu0
  %v1309 = vadd.f32 0.0, %v1308
  %v1310 = vpop.f32.mrb[0].mxu0
  %v1311 = vpop.f32.mrb[0].mxu0
  %v1312 = vadd.f32 0.0, %v1311
  %v1313 = vpop.f32.mrb[0].mxu0
  %1314 = vmatprep.mubr.bf16.mxu0 0
  %1315 = vmatmul.mubr.bf16.gmra.mrb[0].mxu0 %v817
  %v1316 = vpop.f32.mrb[0].mxu0
  %v1317 = vadd.f32 0.0, %v1316
  %v1318 = vpop.f32.mrb[0].mxu0
  %v1319 = vpop.f32.mrb[0].mxu0
  %v1320 = vadd.f32 0.0, %v1319
  %v1321 = vpop.f32.mrb[0].mxu0
  %1322 = vmatprep.mubr.bf16.mxu0 0
  %1323 = vmatmul.mubr.bf16.gmra.mrb[0].mxu0 %v820
  %v1324 = vpop.f32.mrb[0].mxu0
  %v1325 = vadd.f32 0.0, %v1324
  %v1326 = vpop.f32.mrb[0].mxu0
  %v1327 = vpop.f32.mrb[0].mxu0
  %v1328 = vadd.f32 0.0, %v1327
  %v1329 = vpop.f32.mrb[0].mxu0
  %1330 = vmatprep.mubr.bf16.mxu0 0
  %1331 = vmatmul.mubr.bf16.gmra.mrb[0].mxu0 %v823
  %v1332 = vpop.f32.mrb[0].mxu0
  %v1333 = vadd.f32 0.0, %v1332
  %v1334 = vpop.f32.mrb[0].mxu0
  %v1335 = vpop.f32.mrb[0].mxu0
  %v1336 = vadd.f32 0.0, %v1335
  %v1337 = vpop.f32.mrb[0].mxu0
  %1338 = vmatprep.mubr.bf16.mxu0 0
  %1339 = vmatmul.mubr.bf16.gmra.mrb[0].mxu0 %v826
  %v1340 = vpop.f32.mrb[0].mxu0
  %v1341 = vadd.f32 0.0, %v1340
  %v1342 = vpop.f32.mrb[0].mxu0
  %v1343 = vpop.f32.mrb[0].mxu0
  %v1344 = vadd.f32 0.0, %v1343
  %v1345 = vpop.f32.mrb[0].mxu0
  %1346 = vmatprep.mubr.bf16.mxu0 0
  %1347 = vmatmul.mubr.bf16.gmra.mrb[0].mxu0 %v829
  %v1348 = vpop.f32.mrb[0].mxu0
  %v1349 = vadd.f32 0.0, %v1348
  %v1350 = vpop.f32.mrb[0].mxu0
  %v1351 = vpop.f32.mrb[0].mxu0
  %v1352 = vadd.f32 0.0, %v1351
  %v1353 = vpop.f32.mrb[0].mxu0
  %1354 = vmatprep.mubr.bf16.mxu0 0
  %1355 = vmatmul.mubr.bf16.gmra.mrb[0].mxu0 %v832
  %v1356 = vpop.f32.mrb[0].mxu0
  %v1357 = vadd.f32 0.0, %v1356
  %v1358 = vpop.f32.mrb[0].mxu0
  %v1359 = vpop.f32.mrb[0].mxu0
  %v1360 = vadd.f32 0.0, %v1359
  %v1361 = vpop.f32.mrb[0].mxu0
  %1362 = vmatprep.mubr.bf16.mxu0 0
  %1363 = vmatmul.mubr.bf16.gmra.mrb[0].mxu0 %v835
  %v1364 = vpop.f32.mrb[0].mxu0
  %v1365 = vadd.f32 0.0, %v1364
  %v1366 = vpop.f32.mrb[0].mxu0
  %v1367 = vpop.f32.mrb[0].mxu0
  %v1368 = vadd.f32 0.0, %v1367
  %v1369 = vpop.f32.mrb[0].mxu0
  %1370 = vmatprep.mubr.bf16.mxu0 0
  %1371 = vmatmul.mubr.bf16.gmra.mrb[0].mxu0 %v838
  %v1372 = vpop.f32.mrb[0].mxu0
  %v1373 = vadd.f32 0.0, %v1372
  %v1374 = vpop.f32.mrb[0].mxu0
  %v1375 = vpop.f32.mrb[0].mxu0
  %v1376 = vadd.f32 0.0, %v1375
  %v1377 = vpop.f32.mrb[0].mxu0
  %1378 = vmatprep.mubr.bf16.mxu0 0
  %1379 = vmatmul.mubr.bf16.gmra.mrb[0].mxu0 %v841
  %v1380 = vpop.f32.mrb[0].mxu0
  %v1381 = vadd.f32 0.0, %v1380
  %v1382 = vpop.f32.mrb[0].mxu0
  %v1383 = vpop.f32.mrb[0].mxu0
  %v1384 = vadd.f32 0.0, %v1383
  %v1385 = vpop.f32.mrb[0].mxu0
  %1386 = vmatprep.mubr.bf16.mxu0 0
  %1387 = vmatmul.mubr.bf16.gmra.mrb[0].mxu0 %v844
  %v1388 = vpop.f32.mrb[0].mxu0
  %v1389 = vadd.f32 0.0, %v1388
  %v1390 = vpop.f32.mrb[0].mxu0
  %v1391 = vpop.f32.mrb[0].mxu0
  %v1392 = vadd.f32 0.0, %v1391
  %v1393 = vpop.f32.mrb[0].mxu0
  %1394 = vmatprep.mubr.bf16.mxu0 0
  %1395 = vmatmul.mubr.bf16.gmra.mrb[0].mxu0 %v847
  %v1396 = vpop.f32.mrb[0].mxu0
  %v1397 = vadd.f32 0.0, %v1396
  %v1398 = vpop.f32.mrb[0].mxu0
  %v1399 = vpop.f32.mrb[0].mxu0
  %v1400 = vadd.f32 0.0, %v1399
  %v1401 = vpop.f32.mrb[0].mxu0
  %1402 = vmatprep.mubr.bf16.mxu0 0
  %1403 = vmatmul.mubr.bf16.gmra.mrb[0].mxu0 %v850
  %v1404 = vpop.f32.mrb[0].mxu0
  %v1405 = vadd.f32 0.0, %v1404
  %v1406 = vpop.f32.mrb[0].mxu0
  %v1407 = vpop.f32.mrb[0].mxu0
  %v1408 = vadd.f32 0.0, %v1407
  %v1409 = vpop.f32.mrb[0].mxu0
  %1410 = vmatprep.mubr.bf16.mxu0 0
  %1411 = vmatmul.mubr.bf16.gmra.mrb[0].mxu0 %v853
  %v1412 = vpop.f32.mrb[0].mxu0
  %v1413 = vadd.f32 0.0, %v1412
  %v1414 = vpop.f32.mrb[0].mxu0
  %v1415 = vpop.f32.mrb[0].mxu0
  %v1416 = vadd.f32 0.0, %v1415
  %v1417 = vpop.f32.mrb[0].mxu0
  %1418 = vmatprep.mubr.bf16.mxu0 0
  %1419 = vmatmul.mubr.bf16.gmra.mrb[0].mxu0 %v856
  %v1420 = vpop.f32.mrb[0].mxu0
  %v1421 = vadd.f32 0.0, %v1420
  %v1422 = vpop.f32.mrb[0].mxu0
  %v1423 = vpop.f32.mrb[0].mxu0
  %v1424 = vadd.f32 0.0, %v1423
  %v1425 = vpop.f32.mrb[0].mxu0
  %1426 = vmatprep.mubr.bf16.mxu0 0
  %1427 = vmatmul.mubr.bf16.gmra.mrb[0].mxu0 %v859
  %v1428 = vpop.f32.mrb[0].mxu0
  %v1429 = vadd.f32 0.0, %v1428
  %v1430 = vpop.f32.mrb[0].mxu0
  %v1431 = vpop.f32.mrb[0].mxu0
  %v1432 = vadd.f32 0.0, %v1431
  %v1433 = vpop.f32.mrb[0].mxu0
  %1434 = vmatprep.mubr.bf16.mxu0 0
  %1435 = vmatmul.mubr.bf16.gmra.mrb[0].mxu0 %v862
  %v1436 = vpop.f32.mrb[0].mxu0
  %v1437 = vadd.f32 0.0, %v1436
  %v1438 = vpop.f32.mrb[0].mxu0
  %v1439 = vpop.f32.mrb[0].mxu0
  %v1440 = vadd.f32 0.0, %v1439
  %v1441 = vpop.f32.mrb[0].mxu0
  %1442 = vmatprep.mubr.bf16.mxu0 0
  %1443 = vmatmul.mubr.bf16.gmra.mrb[0].mxu0 %v865
  %v1444 = vpop.f32.mrb[0].mxu0
  %v1445 = vadd.f32 0.0, %v1444
  %v1446 = vpop.f32.mrb[0].mxu0
  %v1447 = vpop.f32.mrb[0].mxu0
  %v1448 = vadd.f32 0.0, %v1447
  %v1449 = vpop.f32.mrb[0].mxu0
  %1450 = vmatprep.mubr.bf16.mxu0 0
  %1451 = vmatmul.mubr.bf16.gmra.mrb[0].mxu0 %v868
  %v1452 = vpop.f32.mrb[0].mxu0
  %v1453 = vadd.f32 0.0, %v1452
  %v1454 = vpop.f32.mrb[0].mxu0
  %v1455 = vpop.f32.mrb[0].mxu0
  %v1456 = vadd.f32 0.0, %v1455
  %v1457 = vpop.f32.mrb[0].mxu0
  %1458 = vmatprep.mubr.bf16.mxu0 0
  %1459 = vmatmul.mubr.bf16.gmra.mrb[0].mxu0 %v871
  %v1460 = vpop.f32.mrb[0].mxu0
  %v1461 = vadd.f32 0.0, %v1460
  %v1462 = vpop.f32.mrb[0].mxu0
  %v1463 = vpop.f32.mrb[0].mxu0
  %v1464 = vadd.f32 0.0, %v1463
  %v1465 = vpop.f32.mrb[0].mxu0
  %1466 = vmatprep.mubr.bf16.mxu0 0
  %1467 = vmatmul.mubr.bf16.gmra.mrb[0].mxu0 %v874
  %v1468 = vpop.f32.mrb[0].mxu0
  %v1469 = vadd.f32 0.0, %v1468
  %v1470 = vpop.f32.mrb[0].mxu0
  %v1471 = vpop.f32.mrb[0].mxu0
  %v1472 = vadd.f32 0.0, %v1471
  %v1473 = vpop.f32.mrb[0].mxu0
  %1474 = vmatprep.mubr.bf16.mxu0 0
  %1475 = vmatmul.mubr.bf16.gmra.mrb[0].mxu0 %v877
  %v1476 = vpop.f32.mrb[0].mxu0
  %v1477 = vadd.f32 0.0, %v1476
  %v1478 = vpop.f32.mrb[0].mxu0
  %v1479 = vpop.f32.mrb[0].mxu0
  %v1480 = vadd.f32 0.0, %v1479
  %v1481 = vpop.f32.mrb[0].mxu0
  %1482 = vmatprep.mubr.bf16.mxu0 0
  %1483 = vmatmul.mubr.bf16.gmra.mrb[0].mxu0 %v880
  %v1484 = vpop.f32.mrb[0].mxu0
  %v1485 = vadd.f32 0.0, %v1484
  %v1486 = vpop.f32.mrb[0].mxu0
  %v1487 = vpop.f32.mrb[0].mxu0
  %v1488 = vadd.f32 0.0, %v1487
  %v1489 = vpop.f32.mrb[0].mxu0
  %1490 = vmatprep.mubr.bf16.mxu0 0
  %1491 = vmatmul.mubr.bf16.gmra.mrb[0].mxu0 %v883
  %v1492 = vpop.f32.mrb[0].mxu0
  %v1493 = vadd.f32 0.0, %v1492
  %v1494 = vpop.f32.mrb[0].mxu0
  %v1495 = vpop.f32.mrb[0].mxu0
  %v1496 = vadd.f32 0.0, %v1495
  %v1497 = vpop.f32.mrb[0].mxu0
  %1498 = vmatprep.mubr.bf16.mxu0 0
  %1499 = vmatmul.mubr.bf16.gmra.mrb[0].mxu0 %v886
  %v1500 = vpop.f32.mrb[0].mxu0
  %v1501 = vadd.f32 0.0, %v1500
  %v1502 = vpop.f32.mrb[0].mxu0
  %v1503 = vpop.f32.mrb[0].mxu0
  %v1504 = vadd.f32 0.0, %v1503
  %v1505 = vpop.f32.mrb[0].mxu0
  %1506 = vmatprep.mubr.bf16.mxu0 0
  %1507 = vmatmul.mubr.bf16.gmra.mrb[0].mxu0 %v889
  %v1508 = vpop.f32.mrb[0].mxu0
  %v1509 = vadd.f32 0.0, %v1508
  %v1510 = vpop.f32.mrb[0].mxu0
  %v1511 = vpop.f32.mrb[0].mxu0
  %v1512 = vadd.f32 0.0, %v1511
  %v1513 = vpop.f32.mrb[0].mxu0
  %1514 = vmatprep.mubr.bf16.mxu0 0
  %1515 = vmatmul.mubr.bf16.gmra.mrb[0].mxu0 %v892
  %v1516 = vpop.f32.mrb[0].mxu0
  %v1517 = vadd.f32 0.0, %v1516
  %v1518 = vpop.f32.mrb[0].mxu0
  %v1519 = vpop.f32.mrb[0].mxu0
  %v1520 = vadd.f32 0.0, %v1519
  %v1521 = vpop.f32.mrb[0].mxu0
  %1522 = vmatprep.mubr.bf16.mxu0 0
  %1523 = vmatmul.mubr.bf16.gmra.mrb[0].mxu0 %v895
  %v1524 = vpop.f32.mrb[0].mxu0
  %v1525 = vadd.f32 0.0, %v1524
  %v1526 = vpop.f32.mrb[0].mxu0
  %v1527 = vpop.f32.mrb[0].mxu0
  %v1528 = vadd.f32 0.0, %v1527
  %v1529 = vpop.f32.mrb[0].mxu0
  %1530 = vmatprep.mubr.bf16.mxu0 0
  %1531 = vmatmul.mubr.bf16.gmra.mrb[0].mxu0 %v898
  %v1532 = vpop.f32.mrb[0].mxu0
  %v1533 = vadd.f32 0.0, %v1532
  %v1534 = vpop.f32.mrb[0].mxu0
  %v1535 = vpop.f32.mrb[0].mxu0
  %v1536 = vadd.f32 0.0, %v1535
  %v1537 = vpop.f32.mrb[0].mxu0
  %1538 = vmatprep.mubr.bf16.mxu0 0
  %1539 = vmatmul.mubr.bf16.gmra.mrb[0].mxu0 %v901
  %v1540 = vpop.f32.mrb[0].mxu0
  %v1541 = vadd.f32 0.0, %v1540
  %v1542 = vpop.f32.mrb[0].mxu0
  %v1543 = vpop.f32.mrb[0].mxu0
  %v1544 = vadd.f32 0.0, %v1543
  %v1545 = vpop.f32.mrb[0].mxu0
  %1546 = vmatprep.mubr.bf16.mxu0 0
  %1547 = vmatmul.mubr.bf16.gmra.mrb[0].mxu0 %v904
  %v1548 = vpop.f32.mrb[0].mxu0
  %v1549 = vadd.f32 0.0, %v1548
  %v1550 = vpop.f32.mrb[0].mxu0
  %v1551 = vpop.f32.mrb[0].mxu0
  %v1552 = vadd.f32 0.0, %v1551
  %v1553 = vpop.f32.mrb[0].mxu0
  %1554 = vmatprep.mubr.bf16.mxu0 0
  %1555 = vmatmul.mubr.bf16.gmra.mrb[0].mxu0 %v907
  %v1556 = vpop.f32.mrb[0].mxu0
  %v1557 = vadd.f32 0.0, %v1556
  %v1558 = vpop.f32.mrb[0].mxu0
  %v1559 = vpop.f32.mrb[0].mxu0
  %v1560 = vadd.f32 0.0, %v1559
  %v1561 = vpop.f32.mrb[0].mxu0
  %1562 = vmatprep.mubr.bf16.mxu0 0
  %1563 = vmatmul.mubr.bf16.gmra.mrb[0].mxu0 %v910
  %v1564 = vpop.f32.mrb[0].mxu0
  %v1565 = vadd.f32 0.0, %v1564
  %v1566 = vpop.f32.mrb[0].mxu0
  %v1567 = vpop.f32.mrb[0].mxu0
  %v1568 = vadd.f32 0.0, %v1567
  %v1569 = vpop.f32.mrb[0].mxu0
  %1570 = vmatprep.mubr.bf16.mxu0 0
  %1571 = vmatmul.mubr.bf16.gmra.mrb[0].mxu0 %v913
  %v1572 = vpop.f32.mrb[0].mxu0
  %v1573 = vadd.f32 0.0, %v1572
  %v1574 = vpop.f32.mrb[0].mxu0
  %v1575 = vpop.f32.mrb[0].mxu0
  %v1576 = vadd.f32 0.0, %v1575
  %v1577 = vpop.f32.mrb[0].mxu0
  %1578 = vmatprep.mubr.bf16.mxu0 0
  %1579 = vmatmul.mubr.bf16.gmra.mrb[0].mxu0 %v916
  %v1580 = vpop.f32.mrb[0].mxu0
  %v1581 = vadd.f32 0.0, %v1580
  %v1582 = vpop.f32.mrb[0].mxu0
  %v1583 = vpop.f32.mrb[0].mxu0
  %v1584 = vadd.f32 0.0, %v1583
  %v1585 = vpop.f32.mrb[0].mxu0
  %1586 = vmatprep.mubr.bf16.mxu0 0
  %1587 = vmatmul.mubr.bf16.gmra.mrb[0].mxu0 %v919
  %v1588 = vpop.f32.mrb[0].mxu0
  %v1589 = vadd.f32 0.0, %v1588
  %v1590 = vpop.f32.mrb[0].mxu0
  %v1591 = vpop.f32.mrb[0].mxu0
  %v1592 = vadd.f32 0.0, %v1591
  %v1593 = vpop.f32.mrb[0].mxu0
  %1594 = vmatprep.mubr.bf16.mxu0 0
  %1595 = vmatmul.mubr.bf16.gmra.mrb[0].mxu0 %v922
  %v1596 = vpop.f32.mrb[0].mxu0
  %v1597 = vadd.f32 0.0, %v1596
  %v1598 = vpop.f32.mrb[0].mxu0
  %v1599 = vpop.f32.mrb[0].mxu0
  %v1600 = vadd.f32 0.0, %v1599
  %v1601 = vpop.f32.mrb[0].mxu0
  %1602 = vmatprep.mubr.bf16.mxu0 0
  %1603 = vmatmul.mubr.bf16.gmra.mrb[0].mxu0 %v925
  %v1604 = vpop.f32.mrb[0].mxu0
  %v1605 = vadd.f32 0.0, %v1604
  %v1606 = vpop.f32.mrb[0].mxu0
  %v1607 = vpop.f32.mrb[0].mxu0
  %v1608 = vadd.f32 0.0, %v1607
  %v1609 = vpop.f32.mrb[0].mxu0
  %1610 = vmatprep.mubr.bf16.mxu0 0
  %1611 = vmatmul.mubr.bf16.gmra.mrb[0].mxu0 %v928
  %v1612 = vpop.f32.mrb[0].mxu0
  %v1613 = vadd.f32 0.0, %v1612
  %v1614 = vpop.f32.mrb[0].mxu0
  %v1615 = vpop.f32.mrb[0].mxu0
  %v1616 = vadd.f32 0.0, %v1615
  %v1617 = vpop.f32.mrb[0].mxu0
  %1618 = vmatprep.mubr.bf16.mxu0 0
  %1619 = vmatmul.mubr.bf16.gmra.mrb[0].mxu0 %v931
  %v1620 = vpop.f32.mrb[0].mxu0
  %v1621 = vadd.f32 0.0, %v1620
  %v1622 = vpop.f32.mrb[0].mxu0
  %v1623 = vpop.f32.mrb[0].mxu0
  %v1624 = vadd.f32 0.0, %v1623
  %v1625 = vpop.f32.mrb[0].mxu0
  %1626 = vmatprep.mubr.bf16.mxu0 0
  %1627 = vmatmul.mubr.bf16.gmra.mrb[0].mxu0 %v934
  %v1628 = vpop.f32.mrb[0].mxu0
  %v1629 = vadd.f32 0.0, %v1628
  %v1630 = vpop.f32.mrb[0].mxu0
  %v1631 = vpop.f32.mrb[0].mxu0
  %v1632 = vadd.f32 0.0, %v1631
  %v1633 = vpop.f32.mrb[0].mxu0
  %1634 = vmatprep.mubr.bf16.mxu0 0
  %1635 = vmatmul.mubr.bf16.gmra.mrb[0].mxu0 %v937
  %v1636 = vpop.f32.mrb[0].mxu0
  %v1637 = vadd.f32 0.0, %v1636
  %v1638 = vpop.f32.mrb[0].mxu0
  %v1639 = vpop.f32.mrb[0].mxu0
  %v1640 = vadd.f32 0.0, %v1639
  %v1641 = vpop.f32.mrb[0].mxu0
  %1642 = vmatprep.mubr.bf16.mxu0 0
  %1643 = vmatmul.mubr.bf16.gmra.mrb[0].mxu0 %v940
  %v1644 = vpop.f32.mrb[0].mxu0
  %v1645 = vadd.f32 0.0, %v1644
  %v1646 = vpop.f32.mrb[0].mxu0
  %v1647 = vpop.f32.mrb[0].mxu0
  %v1648 = vadd.f32 0.0, %v1647
  %v1649 = vpop.f32.mrb[0].mxu0
  %1650 = vmatprep.mubr.bf16.mxu0 0
  %1651 = vmatmul.mubr.bf16.gmra.mrb[0].mxu0 %v943
  %v1652 = vpop.f32.mrb[0].mxu0
  %v1653 = vadd.f32 0.0, %v1652
  %v1654 = vpop.f32.mrb[0].mxu0
  %v1655 = vpop.f32.mrb[0].mxu0
  %v1656 = vadd.f32 0.0, %v1655
  %v1657 = vpop.f32.mrb[0].mxu0
  %1658 = vmatprep.mubr.bf16.mxu0 0
  %1659 = vmatmul.mubr.bf16.gmra.mrb[0].mxu0 %v946
  %v1660 = vpop.f32.mrb[0].mxu0
  %v1661 = vadd.f32 0.0, %v1660
  %v1662 = vpop.f32.mrb[0].mxu0
  %v1663 = vpop.f32.mrb[0].mxu0
  %v1664 = vadd.f32 0.0, %v1663
  %v1665 = vpop.f32.mrb[0].mxu0
  %1666 = vmatprep.mubr.bf16.mxu0 0
  %1667 = vmatmul.mubr.bf16.gmra.mrb[0].mxu0 %v949
  %v1668 = vpop.f32.mrb[0].mxu0
  %v1669 = vadd.f32 0.0, %v1668
  %v1670 = vpop.f32.mrb[0].mxu0
  %v1671 = vpop.f32.mrb[0].mxu0
  %v1672 = vadd.f32 0.0, %v1671
  %v1673 = vpop.f32.mrb[0].mxu0
  %1674 = vmatprep.mubr.bf16.mxu0 0
  %1675 = vmatmul.mubr.bf16.gmra.mrb[0].mxu0 %v952
  %v1676 = vpop.f32.mrb[0].mxu0
  %v1677 = vadd.f32 0.0, %v1676
  %v1678 = vpop.f32.mrb[0].mxu0
  %v1679 = vpop.f32.mrb[0].mxu0
  %v1680 = vadd.f32 0.0, %v1679
  %v1681 = vpop.f32.mrb[0].mxu0
  %1682 = vmatprep.mubr.bf16.mxu0 0
  %1683 = vmatmul.mubr.bf16.gmra.mrb[0].mxu0 %v955
  %v1684 = vpop.f32.mrb[0].mxu0
  %v1685 = vadd.f32 0.0, %v1684
  %v1686 = vpop.f32.mrb[0].mxu0
  %v1687 = vpop.f32.mrb[0].mxu0
  %v1688 = vadd.f32 0.0, %v1687
  %v1689 = vpop.f32.mrb[0].mxu0
  %1690 = vmatprep.mubr.bf16.mxu0 0
  %1691 = vmatmul.mubr.bf16.gmra.mrb[0].mxu0 %v958
  %v1692 = vpop.f32.mrb[0].mxu0
  %v1693 = vadd.f32 0.0, %v1692
  %v1694 = vpop.f32.mrb[0].mxu0
  %v1695 = vpop.f32.mrb[0].mxu0
  %v1696 = vadd.f32 0.0, %v1695
  %v1697 = vpop.f32.mrb[0].mxu0
  %1698 = vmatprep.mubr.bf16.mxu0 0
  %1699 = vmatmul.mubr.bf16.gmra.mrb[0].mxu0 %v961
  %v1700 = vpop.f32.mrb[0].mxu0
  %v1701 = vadd.f32 0.0, %v1700
  %v1702 = vpop.f32.mrb[0].mxu0
  %v1703 = vpop.f32.mrb[0].mxu0
  %v1704 = vadd.f32 0.0, %v1703
  %v1705 = vpop.f32.mrb[0].mxu0
  %1706 = vmatprep.mubr.bf16.mxu0 0
  %1707 = vmatmul.mubr.bf16.gmra.mrb[0].mxu0 %v964
  %v1708 = vpop.f32.mrb[0].mxu0
  %v1709 = vadd.f32 0.0, %v1708
  %v1710 = vpop.f32.mrb[0].mxu0
  %v1711 = vpop.f32.mrb[0].mxu0
  %v1712 = vadd.f32 0.0, %v1711
  %v1713 = vpop.f32.mrb[0].mxu0
  %1714 = vmatprep.mubr.bf16.mxu0 0
  %1715 = vmatmul.mubr.bf16.gmra.mrb[0].mxu0 %v967
  %v1716 = vpop.f32.mrb[0].mxu0
  %v1717 = vadd.f32 0.0, %v1716
  %v1718 = vpop.f32.mrb[0].mxu0
  %v1719 = vpop.f32.mrb[0].mxu0
  %v1720 = vadd.f32 0.0, %v1719
  %v1721 = vpop.f32.mrb[0].mxu0
  %1722 = vmatprep.mubr.bf16.mxu0 0
  %1723 = vmatmul.mubr.bf16.gmra.mrb[0].mxu0 %v970
  %v1724 = vpop.f32.mrb[0].mxu0
  %v1725 = vadd.f32 0.0, %v1724
  %v1726 = vpop.f32.mrb[0].mxu0
  %v1727 = vpop.f32.mrb[0].mxu0
  %v1728 = vadd.f32 0.0, %v1727
  %v1729 = vpop.f32.mrb[0].mxu0
  %1730 = vmatprep.mubr.bf16.mxu0 0
  %1731 = vmatmul.mubr.bf16.gmra.mrb[0].mxu0 %v973
  %v1732 = vpop.f32.mrb[0].mxu0
  %v1733 = vadd.f32 0.0, %v1732
  %v1734 = vpop.f32.mrb[0].mxu0
  %v1735 = vpop.f32.mrb[0].mxu0
  %v1736 = vadd.f32 0.0, %v1735
  %v1737 = vpop.f32.mrb[0].mxu0
  %1738 = vmatprep.mubr.bf16.mxu0 0
  %1739 = vmatmul.mubr.bf16.gmra.mrb[0].mxu0 %v976
  %v1740 = vpop.f32.mrb[0].mxu0
  %v1741 = vadd.f32 0.0, %v1740
  %v1742 = vpop.f32.mrb[0].mxu0
  %v1743 = vpop.f32.mrb[0].mxu0
  %v1744 = vadd.f32 0.0, %v1743
  %v1745 = vpop.f32.mrb[0].mxu0
  %1746 = vmatprep.mubr.bf16.mxu0 0
  %1747 = vmatmul.mubr.bf16.gmra.mrb[0].mxu0 %v979
  %v1748 = vpop.f32.mrb[0].mxu0
  %v1749 = vadd.f32 0.0, %v1748
  %v1750 = vpop.f32.mrb[0].mxu0
  %v1751 = vpop.f32.mrb[0].mxu0
  %v1752 = vadd.f32 0.0, %v1751
  %v1753 = vpop.f32.mrb[0].mxu0
  %1754 = vmatprep.mubr.bf16.mxu0 0
  %1755 = vmatmul.mubr.bf16.gmra.mrb[0].mxu0 %v982
  %v1756 = vpop.f32.mrb[0].mxu0
  %v1757 = vadd.f32 0.0, %v1756
  %v1758 = vpop.f32.mrb[0].mxu0
  %v1759 = vpop.f32.mrb[0].mxu0
  %v1760 = vadd.f32 0.0, %v1759
  %v1761 = vpop.f32.mrb[0].mxu0
  %1762 = vmatprep.mubr.bf16.mxu0 0
  %1763 = vmatmul.mubr.bf16.gmra.mrb[0].mxu0 %v985
  %v1764 = vpop.f32.mrb[0].mxu0
  %v1765 = vadd.f32 0.0, %v1764
  %v1766 = vpop.f32.mrb[0].mxu0
  %v1767 = vpop.f32.mrb[0].mxu0
  %v1768 = vadd.f32 0.0, %v1767
  %v1769 = vpop.f32.mrb[0].mxu0
  %1770 = vmatprep.mubr.bf16.mxu0 0
  %1771 = vmatmul.mubr.bf16.gmra.mrb[0].mxu0 %v988
  %v1772 = vpop.f32.mrb[0].mxu0
  %v1773 = vadd.f32 0.0, %v1772
  %v1774 = vpop.f32.mrb[0].mxu0
  %v1775 = vpop.f32.mrb[0].mxu0
  %v1776 = vadd.f32 0.0, %v1775
  %v1777 = vpop.f32.mrb[0].mxu0
  %1778 = vmatprep.mubr.bf16.mxu0 0
  %1779 = vmatmul.mubr.bf16.gmra.mrb[0].mxu0 %v991
  %v1780 = vpop.f32.mrb[0].mxu0
  %v1781 = vadd.f32 0.0, %v1780
  %v1782 = vpop.f32.mrb[0].mxu0
  %v1783 = vpop.f32.mrb[0].mxu0
  %v1784 = vadd.f32 0.0, %v1783
  %v1785 = vpop.f32.mrb[0].mxu0
  %1786 = vmatprep.mubr.bf16.mxu0 0
  %1787 = vmatmul.mubr.bf16.gmra.mrb[0].mxu0 %v994
  %v1788 = vpop.f32.mrb[0].mxu0
  %v1789 = vadd.f32 0.0, %v1788
  %v1790 = vpop.f32.mrb[0].mxu0
  %v1791 = vpop.f32.mrb[0].mxu0
  %v1792 = vadd.f32 0.0, %v1791
  %v1793 = vpop.f32.mrb[0].mxu0
  %1794 = vmatprep.mubr.bf16.mxu0 0
  %1795 = vmatmul.mubr.bf16.gmra.mrb[0].mxu0 %v997
  %v1796 = vpop.f32.mrb[0].mxu0
  %v1797 = vadd.f32 0.0, %v1796
  %v1798 = vpop.f32.mrb[0].mxu0
  %v1799 = vpop.f32.mrb[0].mxu0
  %v1800 = vadd.f32 0.0, %v1799
  %v1801 = vpop.f32.mrb[0].mxu0
  %1802 = vmatprep.mubr.bf16.mxu0 0
  %1803 = vmatmul.mubr.bf16.gmra.mrb[0].mxu0 %v1000
  %v1804 = vpop.f32.mrb[0].mxu0
  %v1805 = vadd.f32 0.0, %v1804
  %v1806 = vpop.f32.mrb[0].mxu0
  %v1807 = vpop.f32.mrb[0].mxu0
  %v1808 = vadd.f32 0.0, %v1807
  %v1809 = vpop.f32.mrb[0].mxu0
  %1810 = vmatprep.mubr.bf16.mxu0 0
  %1811 = vmatmul.mubr.bf16.gmra.mrb[0].mxu0 %v1003
  %v1812 = vpop.f32.mrb[0].mxu0
  %v1813 = vadd.f32 0.0, %v1812
  %v1814 = vpop.f32.mrb[0].mxu0
  %v1815 = vpop.f32.mrb[0].mxu0
  %v1816 = vadd.f32 0.0, %v1815
  %v1817 = vpop.f32.mrb[0].mxu0
  %1818 = vmatprep.mubr.bf16.mxu0 0
  %1819 = vmatmul.mubr.bf16.gmra.mrb[0].mxu0 %v1006
  %v1820 = vpop.f32.mrb[0].mxu0
  %v1821 = vadd.f32 0.0, %v1820
  %v1822 = vpop.f32.mrb[0].mxu0
  %v1823 = vpop.f32.mrb[0].mxu0
  %v1824 = vadd.f32 0.0, %v1823
  %v1825 = vpop.f32.mrb[0].mxu0
  %1826 = vmatprep.mubr.bf16.mxu0 0
  %1827 = vmatmul.mubr.bf16.gmra.mrb[0].mxu0 %v1009
  %v1828 = vpop.f32.mrb[0].mxu0
  %v1829 = vadd.f32 0.0, %v1828
  %v1830 = vpop.f32.mrb[0].mxu0
  %v1831 = vpop.f32.mrb[0].mxu0
  %v1832 = vadd.f32 0.0, %v1831
  %v1833 = vpop.f32.mrb[0].mxu0
  %1834 = vdwg.mxu0
  %v1835 = vmax.f32 %v1053, %v1248
  %v1836 = vmax.f32 %v1056, %v1253
  %v1837 = vmax.f32 %v1061, %v1256
  %v1838 = vmax.f32 %v1064, %v1261
  %v1839 = vmax.f32 %v1069, %v1264
  %v1840 = vmax.f32 %v1072, %v1269
  %v1841 = vmax.f32 %v1077, %v1272
  %v1842 = vmax.f32 %v1080, %v1277
  %v1843 = vmax.f32 %v1085, %v1280
  %v1844 = vmax.f32 %v1088, %v1285
  %v1845 = vmax.f32 %v1093, %v1288
  %v1846 = vmax.f32 %v1096, %v1293
  %v1847 = vmax.f32 %v1101, %v1296
  %v1848 = vmax.f32 %v1104, %v1301
  %v1849 = vmax.f32 %v1109, %v1304
  %v1850 = vmax.f32 %v1112, %v1309
  %v1851 = vmax.f32 %v1117, %v1312
  %v1852 = vmax.f32 %v1120, %v1317
  %v1853 = vmax.f32 %v1125, %v1320
  %v1854 = vmax.f32 %v1128, %v1325
  %v1855 = vmax.f32 %v1133, %v1328
  %v1856 = vmax.f32 %v1136, %v1333
  %v1857 = vmax.f32 %v1141, %v1336
  %v1858 = vmax.f32 %v1144, %v1341
  %v1859 = vmax.f32 %v1149, %v1344
  %v1860 = vmax.f32 %v1152, %v1349
  %v1861 = vmax.f32 %v1157, %v1352
  %v1862 = vmax.f32 %v1160, %v1357
  %v1863 = vmax.f32 %v1165, %v1360
  %v1864 = vmax.f32 %v1168, %v1365
  %v1865 = vmax.f32 %v1173, %v1368
  %v1866 = vmax.f32 %v1176, %v1373
  %v1867 = vmax.f32 %v1181, %v1376
  %v1868 = vmax.f32 %v1184, %v1381
  %v1869 = vmax.f32 %v1189, %v1384
  %v1870 = vmax.f32 %v1192, %v1389
  %v1871 = vmax.f32 %v1197, %v1392
  %v1872 = vmax.f32 %v1200, %v1397
  %v1873 = vmax.f32 %v1205, %v1400
  %v1874 = vmax.f32 %v1208, %v1405
  %v1875 = vmax.f32 %v1213, %v1408
  %v1876 = vmax.f32 %v1216, %v1413
  %v1877 = vmax.f32 %v1221, %v1416
  %v1878 = vmax.f32 %v1224, %v1421
  %v1879 = vmax.f32 %v1229, %v1424
  %v1880 = vmax.f32 %v1232, %v1429
  %v1881 = vmax.f32 %v1237, %v1432
  %v1882 = vmax.f32 %v1240, %v1437
  %v1883 = vmax.f32 %v1245, %v1440
  %v1884 = vmax.f32 %v1445, %v1640
  %v1885 = vmax.f32 %v1448, %v1645
  %v1886 = vmax.f32 %v1453, %v1648
  %v1887 = vmax.f32 %v1456, %v1653
  %v1888 = vmax.f32 %v1461, %v1656
  %v1889 = vmax.f32 %v1464, %v1661
  %v1890 = vmax.f32 %v1469, %v1664
  %v1891 = vmax.f32 %v1472, %v1669
  %v1892 = vmax.f32 %v1477, %v1672
  %v1893 = vmax.f32 %v1480, %v1677
  %v1894 = vmax.f32 %v1485, %v1680
  %v1895 = vmax.f32 %v1488, %v1685
  %v1896 = vmax.f32 %v1493, %v1688
  %v1897 = vmax.f32 %v1496, %v1693
  %v1898 = vmax.f32 %v1501, %v1696
  %v1899 = vmax.f32 %v1504, %v1701
  %v1900 = vmax.f32 %v1509, %v1704
  %v1901 = vmax.f32 %v1512, %v1709
  %v1902 = vmax.f32 %v1517, %v1712
  %v1903 = vmax.f32 %v1520, %v1717
  %v1904 = vmax.f32 %v1525, %v1720
  %v1905 = vmax.f32 %v1528, %v1725
  %v1906 = vmax.f32 %v1533, %v1728
  %v1907 = vmax.f32 %v1536, %v1733
  %v1908 = vmax.f32 %v1541, %v1736
  %v1909 = vmax.f32 %v1544, %v1741
  %v1910 = vmax.f32 %v1549, %v1744
  %v1911 = vmax.f32 %v1552, %v1749
  %v1912 = vmax.f32 %v1557, %v1752
  %v1913 = vmax.f32 %v1560, %v1757
  %v1914 = vmax.f32 %v1565, %v1760
  %v1915 = vmax.f32 %v1568, %v1765
  %v1916 = vmax.f32 %v1573, %v1768
  %v1917 = vmax.f32 %v1576, %v1773
  %v1918 = vmax.f32 %v1581, %v1776
  %v1919 = vmax.f32 %v1584, %v1781
  %v1920 = vmax.f32 %v1589, %v1784
  %v1921 = vmax.f32 %v1592, %v1789
  %v1922 = vmax.f32 %v1597, %v1792
  %v1923 = vmax.f32 %v1600, %v1797
  %v1924 = vmax.f32 %v1605, %v1800
  %v1925 = vmax.f32 %v1608, %v1805
  %v1926 = vmax.f32 %v1613, %v1808
  %v1927 = vmax.f32 %v1616, %v1813
  %v1928 = vmax.f32 %v1621, %v1816
  %v1929 = vmax.f32 %v1624, %v1821
  %v1930 = vmax.f32 %v1629, %v1824
  %v1931 = vmax.f32 %v1632, %v1829
  %v1932 = vmax.f32 %v1637, %v1832
  %v1933 = vmax.f32 %v1835, %v1884
  %v1934 = vmax.f32 %v1836, %v1885
  %v1935 = vmax.f32 %v1837, %v1886
  %v1936 = vmax.f32 %v1838, %v1887
  %v1937 = vmax.f32 %v1839, %v1888
  %v1938 = vmax.f32 %v1840, %v1889
  %v1939 = vmax.f32 %v1841, %v1890
  %v1940 = vmax.f32 %v1842, %v1891
  %v1941 = vmax.f32 %v1843, %v1892
  %v1942 = vmax.f32 %v1844, %v1893
  %v1943 = vmax.f32 %v1845, %v1894
  %v1944 = vmax.f32 %v1846, %v1895
  %v1945 = vmax.f32 %v1847, %v1896
  %v1946 = vmax.f32 %v1848, %v1897
  %v1947 = vmax.f32 %v1849, %v1898
  %v1948 = vmax.f32 %v1850, %v1899
  %v1949 = vmax.f32 %v1851, %v1900
  %v1950 = vmax.f32 %v1852, %v1901
  %v1951 = vmax.f32 %v1853, %v1902
  %v1952 = vmax.f32 %v1854, %v1903
  %v1953 = vmax.f32 %v1855, %v1904
  %v1954 = vmax.f32 %v1856, %v1905
  %v1955 = vmax.f32 %v1857, %v1906
  %v1956 = vmax.f32 %v1858, %v1907
  %v1957 = vmax.f32 %v1859, %v1908
  %v1958 = vmax.f32 %v1860, %v1909
  %v1959 = vmax.f32 %v1861, %v1910
  %v1960 = vmax.f32 %v1862, %v1911
  %v1961 = vmax.f32 %v1863, %v1912
  %v1962 = vmax.f32 %v1864, %v1913
  %v1963 = vmax.f32 %v1865, %v1914
  %v1964 = vmax.f32 %v1866, %v1915
  %v1965 = vmax.f32 %v1867, %v1916
  %v1966 = vmax.f32 %v1868, %v1917
  %v1967 = vmax.f32 %v1869, %v1918
  %v1968 = vmax.f32 %v1870, %v1919
  %v1969 = vmax.f32 %v1871, %v1920
  %v1970 = vmax.f32 %v1872, %v1921
  %v1971 = vmax.f32 %v1873, %v1922
  %v1972 = vmax.f32 %v1874, %v1923
  %v1973 = vmax.f32 %v1875, %v1924
  %v1974 = vmax.f32 %v1876, %v1925
  %v1975 = vmax.f32 %v1877, %v1926
  %v1976 = vmax.f32 %v1878, %v1927
  %v1977 = vmax.f32 %v1879, %v1928
  %v1978 = vmax.f32 %v1880, %v1929
  %v1979 = vmax.f32 %v1881, %v1930
  %v1980 = vmax.f32 %v1882, %v1931
  %v1981 = vmax.f32 %v1883, %v1932
  %v1982 = vld [vmem:[%s2] sm:$0x1]
  %v1984 = vlaneseq
  %v1985 = vshrl.u32 %v1984, 7
  %v1986 = vsub.s32 0, %v1985
  %v1987 = vrot.slane %v1982, %v1986
  %v1989 = vadd.f32 %v1933, %v1987
  %v1990 = vadd.f32 %v1934, %v1987
  %v1991 = vadd.f32 %v1935, %v1987
  %v1992 = vadd.f32 %v1936, %v1987
  %v1993 = vadd.f32 %v1937, %v1987
  %v1994 = vadd.f32 %v1938, %v1987
  %v1995 = vadd.f32 %v1939, %v1987
  %v1996 = vadd.f32 %v1940, %v1987
  %v1997 = vadd.f32 %v1941, %v1987
  %v1998 = vadd.f32 %v1942, %v1987
  %v1999 = vadd.f32 %v1943, %v1987
  %v2000 = vadd.f32 %v1944, %v1987
  %v2001 = vadd.f32 %v1945, %v1987
  %v2002 = vadd.f32 %v1946, %v1987
  %v2003 = vadd.f32 %v1947, %v1987
  %v2004 = vadd.f32 %v1948, %v1987
  %v2005 = vadd.f32 %v1949, %v1987
  %v2006 = vadd.f32 %v1950, %v1987
  %v2007 = vadd.f32 %v1951, %v1987
  %v2008 = vadd.f32 %v1952, %v1987
  %v2009 = vadd.f32 %v1953, %v1987
  %v2010 = vadd.f32 %v1954, %v1987
  %v2011 = vadd.f32 %v1955, %v1987
  %v2012 = vadd.f32 %v1956, %v1987
  %v2013 = vadd.f32 %v1957, %v1987
  %v2014 = vadd.f32 %v1958, %v1987
  %v2015 = vadd.f32 %v1959, %v1987
  %v2016 = vadd.f32 %v1960, %v1987
  %v2017 = vadd.f32 %v1961, %v1987
  %v2018 = vadd.f32 %v1962, %v1987
  %v2019 = vadd.f32 %v1963, %v1987
  %v2020 = vadd.f32 %v1964, %v1987
  %v2021 = vadd.f32 %v1965, %v1987
  %v2022 = vadd.f32 %v1966, %v1987
  %v2023 = vadd.f32 %v1967, %v1987
  %v2024 = vadd.f32 %v1968, %v1987
  %v2025 = vadd.f32 %v1969, %v1987
  %v2026 = vadd.f32 %v1970, %v1987
  %v2027 = vadd.f32 %v1971, %v1987
  %v2028 = vadd.f32 %v1972, %v1987
  %v2029 = vadd.f32 %v1973, %v1987
  %v2030 = vadd.f32 %v1974, %v1987
  %v2031 = vadd.f32 %v1975, %v1987
  %v2032 = vadd.f32 %v1976, %v1987
  %v2033 = vadd.f32 %v1977, %v1987
  %v2034 = vadd.f32 %v1978, %v1987
  %v2035 = vadd.f32 %v1979, %v1987
  %v2036 = vadd.f32 %v1980, %v1987
  %v2037 = vadd.f32 %v1981, %v1987
  %v2038 = vmax.f32 %v1989, 0.0
  %v2039 = vmax.f32 %v1990, 0.0
  %v2040 = vmax.f32 %v1991, 0.0
  %v2041 = vmax.f32 %v1992, 0.0
  %v2042 = vmax.f32 %v1993, 0.0
  %v2043 = vmax.f32 %v1994, 0.0
  %v2044 = vmax.f32 %v1995, 0.0
  %v2045 = vmax.f32 %v1996, 0.0
  %v2046 = vmax.f32 %v1997, 0.0
  %v2047 = vmax.f32 %v1998, 0.0
  %v2048 = vmax.f32 %v1999, 0.0
  %v2049 = vmax.f32 %v2000, 0.0
  %v2050 = vmax.f32 %v2001, 0.0
  %v2051 = vmax.f32 %v2002, 0.0
  %v2052 = vmax.f32 %v2003, 0.0
  %v2053 = vmax.f32 %v2004, 0.0
  %v2054 = vmax.f32 %v2005, 0.0
  %v2055 = vmax.f32 %v2006, 0.0
  %v2056 = vmax.f32 %v2007, 0.0
  %v2057 = vmax.f32 %v2008, 0.0
  %v2058 = vmax.f32 %v2009, 0.0
  %v2059 = vmax.f32 %v2010, 0.0
  %v2060 = vmax.f32 %v2011, 0.0
  %v2061 = vmax.f32 %v2012, 0.0
  %v2062 = vmax.f32 %v2013, 0.0
  %v2063 = vmax.f32 %v2014, 0.0
  %v2064 = vmax.f32 %v2015, 0.0
  %v2065 = vmax.f32 %v2016, 0.0
  %v2066 = vmax.f32 %v2017, 0.0
  %v2067 = vmax.f32 %v2018, 0.0
  %v2068 = vmax.f32 %v2019, 0.0
  %v2069 = vmax.f32 %v2020, 0.0
  %v2070 = vmax.f32 %v2021, 0.0
  %v2071 = vmax.f32 %v2022, 0.0
  %v2072 = vmax.f32 %v2023, 0.0
  %v2073 = vmax.f32 %v2024, 0.0
  %v2074 = vmax.f32 %v2025, 0.0
  %v2075 = vmax.f32 %v2026, 0.0
  %v2076 = vmax.f32 %v2027, 0.0
  %v2077 = vmax.f32 %v2028, 0.0
  %v2078 = vmax.f32 %v2029, 0.0
  %v2079 = vmax.f32 %v2030, 0.0
  %v2080 = vmax.f32 %v2031, 0.0
  %v2081 = vmax.f32 %v2032, 0.0
  %v2082 = vmax.f32 %v2033, 0.0
  %v2083 = vmax.f32 %v2034, 0.0
  %v2084 = vmax.f32 %v2035, 0.0
  %v2085 = vmax.f32 %v2036, 0.0
  %v2086 = vmax.f32 %v2037, 0.0
  %2087 = vst [vmem:[%s3] sm:$0xff] %v2038
  %2088 = vst [vmem:[%s3 + $0x8] sm:$0xff] %v2039
  %2089 = vst [vmem:[%s3 + $0x10] sm:$0xff] %v2040
  %2090 = vst [vmem:[%s3 + $0x18] sm:$0xff] %v2041
  %2091 = vst [vmem:[%s3 + $0x20] sm:$0xff] %v2042
  %2092 = vst [vmem:[%s3 + $0x28] sm:$0xff] %v2043
  %2093 = vst [vmem:[%s3 + $0x30] sm:$0xff] %v2044
  %2094 = vst [vmem:[%s3 + $0x38] sm:$0xff] %v2045
  %2095 = vst [vmem:[%s3 + $0x40] sm:$0xff] %v2046
  %2096 = vst [vmem:[%s3 + $0x48] sm:$0xff] %v2047
  %2097 = vst [vmem:[%s3 + $0x50] sm:$0xff] %v2048
  %2098 = vst [vmem:[%s3 + $0x58] sm:$0xff] %v2049
  %2099 = vst [vmem:[%s3 + $0x60] sm:$0xff] %v2050
  %2100 = vst [vmem:[%s3 + $0x68] sm:$0xff] %v2051
  %2101 = vst [vmem:[%s3 + $0x70] sm:$0xff] %v2052
  %2102 = vst [vmem:[%s3 + $0x78] sm:$0xff] %v2053
  %2103 = vst [vmem:[%s3 + $0x80] sm:$0xff] %v2054
  %2104 = vst [vmem:[%s3 + $0x88] sm:$0xff] %v2055
  %2105 = vst [vmem:[%s3 + $0x90] sm:$0xff] %v2056
  %2106 = vst [vmem:[%s3 + $0x98] sm:$0xff] %v2057
  %2107 = vst [vmem:[%s3 + $0xa0] sm:$0xff] %v2058
  %2108 = vst [vmem:[%s3 + $0xa8] sm:$0xff] %v2059
  %2109 = vst [vmem:[%s3 + $0xb0] sm:$0xff] %v2060
  %2110 = vst [vmem:[%s3 + $0xb8] sm:$0xff] %v2061
  %2111 = vst [vmem:[%s3 + $0xc0] sm:$0xff] %v2062
  %2112 = vst [vmem:[%s3 + $0xc8] sm:$0xff] %v2063
  %2113 = vst [vmem:[%s3 + $0xd0] sm:$0xff] %v2064
  %2114 = vst [vmem:[%s3 + $0xd8] sm:$0xff] %v2065
  %2115 = vst [vmem:[%s3 + $0xe0] sm:$0xff] %v2066
  %2116 = vst [vmem:[%s3 + $0xe8] sm:$0xff] %v2067
  %2117 = vst [vmem:[%s3 + $0xf0] sm:$0xff] %v2068
  %2118 = vst [vmem:[%s3 + $0xf8] sm:$0xff] %v2069
  %2119 = vst [vmem:[%s3 + $0x100] sm:$0xff] %v2070
  %2120 = vst [vmem:[%s3 + $0x108] sm:$0xff] %v2071
  %2121 = vst [vmem:[%s3 + $0x110] sm:$0xff] %v2072
  %2122 = vst [vmem:[%s3 + $0x118] sm:$0xff] %v2073
  %2123 = vst [vmem:[%s3 + $0x120] sm:$0xff] %v2074
  %2124 = vst [vmem:[%s3 + $0x128] sm:$0xff] %v2075
  %2125 = vst [vmem:[%s3 + $0x130] sm:$0xff] %v2076
  %2126 = vst [vmem:[%s3 + $0x138] sm:$0xff] %v2077
  %2127 = vst [vmem:[%s3 + $0x140] sm:$0xff] %v2078
  %2128 = vst [vmem:[%s3 + $0x148] sm:$0xff] %v2079
  %2129 = vst [vmem:[%s3 + $0x150] sm:$0xff] %v2080
  %2130 = vst [vmem:[%s3 + $0x158] sm:$0xff] %v2081
  %2131 = vst [vmem:[%s3 + $0x160] sm:$0xff] %v2082
  %2132 = vst [vmem:[%s3 + $0x168] sm:$0xff] %v2083
  %2133 = vst [vmem:[%s3 + $0x170] sm:$0xff] %v2084
  %2134 = vst [vmem:[%s3 + $0x178] sm:$0xff] %v2085
  %2135 = vst [vmem:[%s3 + $0x180] sm:$0xff] %v2086
  // Predicated region
  $region14: #{lenet5_forward.2} parent=0 // pred_check
    _
  $region15: #{lenet5_forward.2} parent=0 // pred_check_branch
    %2137 = sbr.rel (0) target = $region17
  $region16: #{lenet5_forward.2} parent=0 // pred_region
    _
  $region17: #{lenet5_forward.2} parent=0 // pred_fallthru
    _
  // Predicated region
  $region18: #{lenet5_forward.2} parent=0 // pred_check
    _
  $region19: #{lenet5_forward.2} parent=0 // pred_check_branch
    %2139 = sbr.rel (0) target = $region21
  $region20: #{lenet5_forward.2} parent=0 // pred_region
    _
  $region21: #{lenet5_forward.2} parent=0 // pred_fallthru
    _

// kernel: lenet5_forward.3
$region0: #{lenet5_forward.3}
  #allocation0 [shape = 'u32[]', space=smem, size = 0x4, offset = 0x4, fixed_abs, tag = 'smem constant byte address 0x4 - core index']
  #allocation1 [shape = 'u32[144,128]{1,0:T(1,128)}', space=vmem, size = 0x12000, scoped, tag = 'internal scratch']
  %s0 = inlined_call_operand.vmem [shape: bf16[200,150], index: 0, kind: input, shape index: {}]
  %s1 = inlined_call_operand.vmem [shape: bf16[150,128], index: 1, kind: input, shape index: {}]
  %s2 = inlined_call_operand.vmem [shape: f32[1,128], index: 2, kind: input, shape index: {}]
  %s3 = inlined_call_operand.vmem [shape: bf16[25,16,128], index: 3, kind: input, shape index: {}]
  %s4 = inlined_call_operand.vmem [shape: f32[1,128], index: 4, kind: input, shape index: {}]
  %s5 = inlined_call_operand.vmem [shape: bf16[128,128], index: 5, kind: input, shape index: {}]
  %s6 = inlined_call_operand.vmem [shape: f32[1,128], index: 6, kind: input, shape index: {}]
  %s7 = inlined_call_operand.vmem [shape: bf16[128,128], index: 7, kind: input, shape index: {}]
  %s8 = inlined_call_operand.vmem [shape: f32[1,128], index: 8, kind: input, shape index: {}]
  %s9 = inlined_call_operand.hbm [shape: f32[2,128], index: 9, kind: output, shape index: {}]
  %s10 = sld [smem:[#allocation0]]
  $region46: #{lenet5_forward.3} parent=0
    _
  %s12 = ssub.s32 1, %s10
  %s13 = scalar_select 0, %s12, %s10
  $region1: #{lenet5_forward.3} parent=0
    #allocation2 [shape = 'u8[1024]{0}', space=vmem, size = 0x400, scoped, tag = 'output window, operand 0, single buffered']
    #allocation3 [shape = 's32[1]{0}', space=sflag, size = 0x4, scoped, tag = 'scoped memory for lenet5_forward.3']
    %14 = vsyncpa [#allocation3], 0
    // Predicated region
    $region2: #{lenet5_forward.3} parent=1 // pred_check
      _
    $region3: #{lenet5_forward.3} parent=1 // pred_check_branch
      %16 = sbr.rel (0) target = $region5
    $region4: #{lenet5_forward.3} parent=1 // pred_region
      _
    $region5: #{lenet5_forward.3} parent=1 // pred_fallthru
      _
    // Predicated region
    $region6: #{lenet5_forward.3} parent=1 // pred_check
      _
    $region7: #{lenet5_forward.3} parent=1 // pred_check_branch
      %18 = sbr.rel (0) target = $region9
    $region8: #{lenet5_forward.3} parent=1 // pred_region
      _
    $region9: #{lenet5_forward.3} parent=1 // pred_fallthru
      _
    // Predicated region
    $region10: #{lenet5_forward.3} parent=1 // pred_check
      _
    $region11: #{lenet5_forward.3} parent=1 // pred_check_branch
      %20 = sbr.rel (0) target = $region13
    $region12: #{lenet5_forward.3} parent=1 // pred_region
      _
    $region13: #{lenet5_forward.3} parent=1 // pred_fallthru
      _
    // Predicated region
    $region14: #{lenet5_forward.3} parent=1 // pred_check
      _
    $region15: #{lenet5_forward.3} parent=1 // pred_check_branch
      %22 = sbr.rel (0) target = $region17
    $region16: #{lenet5_forward.3} parent=1 // pred_region
      _
    $region17: #{lenet5_forward.3} parent=1 // pred_fallthru
      _
    // Predicated region
    $region18: #{lenet5_forward.3} parent=1 // pred_check
      _
    $region19: #{lenet5_forward.3} parent=1 // pred_check_branch
      %24 = sbr.rel (0) target = $region21
    $region20: #{lenet5_forward.3} parent=1 // pred_region
      _
    $region21: #{lenet5_forward.3} parent=1 // pred_fallthru
      _
    // Predicated region
    $region22: #{lenet5_forward.3} parent=1 // pred_check
      _
    $region23: #{lenet5_forward.3} parent=1 // pred_check_branch
      %26 = sbr.rel (0) target = $region25
    $region24: #{lenet5_forward.3} parent=1 // pred_region
      _
    $region25: #{lenet5_forward.3} parent=1 // pred_fallthru
      _
    // Predicated region
    $region26: #{lenet5_forward.3} parent=1 // pred_check
      _
    $region27: #{lenet5_forward.3} parent=1 // pred_check_branch
      %28 = sbr.rel (0) target = $region29
    $region28: #{lenet5_forward.3} parent=1 // pred_region
      _
    $region29: #{lenet5_forward.3} parent=1 // pred_fallthru
      _
    // Predicated region
    $region30: #{lenet5_forward.3} parent=1 // pred_check
      _
    $region31: #{lenet5_forward.3} parent=1 // pred_check_branch
      %30 = sbr.rel (0) target = $region33
    $region32: #{lenet5_forward.3} parent=1 // pred_region
      _
    $region33: #{lenet5_forward.3} parent=1 // pred_fallthru
      _
    // Predicated region
    $region34: #{lenet5_forward.3} parent=1 // pred_check
      _
    $region35: #{lenet5_forward.3} parent=1 // pred_check_branch
      %32 = sbr.rel (0) target = $region37
    $region36: #{lenet5_forward.3} parent=1 // pred_region
      _
    $region37: #{lenet5_forward.3} parent=1 // pred_fallthru
      _
    %v34 = vld [vmem:[%s0] sm:$0xff]
    %v35 = vld [vmem:[%s0 + $0x8] sm:$0xff]
    %v36 = vld [vmem:[%s0 + $0x10] sm:$0xff]
    %v37 = vld [vmem:[%s0 + $0x18] sm:$0xff]
    %v38 = vld [vmem:[%s0 + $0x20] sm:$0xff]
    %v39 = vld [vmem:[%s0 + $0x28] sm:$0xff]
    %v40 = vld [vmem:[%s0 + $0x30] sm:$0xff]
    %v41 = vld [vmem:[%s0 + $0x38] sm:$0xff]
    %v42 = vld [vmem:[%s0 + $0x40] sm:$0xff]
    %v43 = vld [vmem:[%s0 + $0x48] sm:$0xff]
    %v44 = vld [vmem:[%s0 + $0x50] sm:$0xff]
    %v45 = vld [vmem:[%s0 + $0x58] sm:$0xff]
    %v46 = vld [vmem:[%s0 + $0x60] sm:$0xff]
    %v47 = vld [vmem:[%s0 + $0x68] sm:$0xff]
    %v48 = vld [vmem:[%s0 + $0x70] sm:$0xff]
    %v49 = vld [vmem:[%s0 + $0x78] sm:$0xff]
    %v50 = vld [vmem:[%s0 + $0x80] sm:$0xff]
    %v51 = vld [vmem:[%s0 + $0x88] sm:$0xff]
    %v52 = vld [vmem:[%s0 + $0x90] sm:$0xff]
    %v53 = vld [vmem:[%s0 + $0x98] sm:$0xff]
    %v54 = vld [vmem:[%s0 + $0xa0] sm:$0xff]
    %v55 = vld [vmem:[%s0 + $0xa8] sm:$0xff]
    %v56 = vld [vmem:[%s0 + $0xb0] sm:$0xff]
    %v57 = vld [vmem:[%s0 + $0xb8] sm:$0xff]
    %v58 = vld [vmem:[%s0 + $0xc0] sm:$0xff]
    %v59 = vld [vmem:[%s1] sm:$0xf]
    %v60 = vld [vmem:[%s1 + $0x4] sm:$0xf]
    %v61 = vld [vmem:[%s1 + $0x8] sm:$0xf]
    %v62 = vld [vmem:[%s1 + $0xc] sm:$0xf]
    %v63 = vld [vmem:[%s1 + $0x10] sm:$0xf]
    %v64 = vld [vmem:[%s1 + $0x14] sm:$0xf]
    %v65 = vld [vmem:[%s1 + $0x18] sm:$0xf]
    %v66 = vld [vmem:[%s1 + $0x1c] sm:$0xf]
    %v67 = vld [vmem:[%s1 + $0x20] sm:$0xf]
    %v68 = vld [vmem:[%s1 + $0x24] sm:$0xf]
    %v69 = vld [vmem:[%s1 + $0x28] sm:$0xf]
    %v70 = vld [vmem:[%s1 + $0x2c] sm:$0xf]
    %v71 = vld [vmem:[%s1 + $0x30] sm:$0xf]
    %v72 = vld [vmem:[%s1 + $0x34] sm:$0xf]
    %v73 = vld [vmem:[%s1 + $0x38] sm:$0xf]
    %v74 = vld [vmem:[%s1 + $0x3c] sm:$0xf]
    %v75 = vld [vmem:[%s1 + $0x40] sm:$0xf]
    %v76 = vld [vmem:[%s1 + $0x44] sm:$0xf]
    %v77 = vld [vmem:[%s1 + $0x48] sm:$0x7]
    %v103 = vunpack.c.l.b16 %v34
    %v104 = vunpack.c.h.b16 %v34
    %v105 = vunpack.c.l.b16 %v35
    %v106 = vunpack.c.h.b16 %v35
    %v107 = vunpack.c.l.b16 %v36
    %v108 = vunpack.c.h.b16 %v36
    %v109 = vunpack.c.l.b16 %v37
    %v110 = vunpack.c.h.b16 %v37
    %v111 = vunpack.c.l.b16 %v38
    %v112 = vunpack.c.h.b16 %v38
    %v113 = vunpack.c.l.b16 %v39
    %v114 = vunpack.c.h.b16 %v39
    %v115 = vunpack.c.l.b16 %v40
    %v116 = vunpack.c.h.b16 %v40
    %v117 = vunpack.c.l.b16 %v41
    %v118 = vunpack.c.h.b16 %v41
    %v119 = vunpack.c.l.b16 %v42
    %v120 = vunpack.c.h.b16 %v42
    %v121 = vunpack.c.l.b16 %v43
    %v122 = vunpack.c.h.b16 %v43
    %v123 = vunpack.c.l.b16 %v44
    %v124 = vunpack.c.h.b16 %v44
    %v125 = vunpack.c.l.b16 %v45
    %v126 = vunpack.c.h.b16 %v45
    %v127 = vunpack.c.l.b16 %v46
    %v128 = vunpack.c.h.b16 %v46
    %v129 = vunpack.c.l.b16 %v47
    %v130 = vunpack.c.h.b16 %v47
    %v131 = vunpack.c.l.b16 %v48
    %v132 = vunpack.c.h.b16 %v48
    %v133 = vunpack.c.l.b16 %v49
    %v134 = vunpack.c.h.b16 %v49
    %v135 = vunpack.c.l.b16 %v50
    %v136 = vunpack.c.h.b16 %v50
    %v137 = vunpack.c.l.b16 %v51
    %v138 = vunpack.c.h.b16 %v51
    %v139 = vunpack.c.l.b16 %v52
    %v140 = vunpack.c.h.b16 %v52
    %v141 = vunpack.c.l.b16 %v53
    %v142 = vunpack.c.h.b16 %v53
    %v143 = vunpack.c.l.b16 %v54
    %v144 = vunpack.c.h.b16 %v54
    %v145 = vunpack.c.l.b16 %v55
    %v146 = vunpack.c.h.b16 %v55
    %v147 = vunpack.c.l.b16 %v56
    %v148 = vunpack.c.h.b16 %v56
    %v149 = vunpack.c.l.b16 %v57
    %v150 = vunpack.c.h.b16 %v57
    %v151 = vunpack.c.l.b16 %v58
    %v152 = vunpack.c.h.b16 %v58
    %v153 = vpack.c.b16 %v105, %v103
    %v154 = vpack.c.b16 %v106, %v104
    %v155 = vpack.c.b16 %v109, %v107
    %v156 = vpack.c.b16 %v110, %v108
    %v157 = vpack.c.b16 %v113, %v111
    %v158 = vpack.c.b16 %v114, %v112
    %v159 = vpack.c.b16 %v117, %v115
    %v160 = vpack.c.b16 %v118, %v116
    %v161 = vpack.c.b16 %v121, %v119
    %v162 = vpack.c.b16 %v122, %v120
    %v163 = vpack.c.b16 %v125, %v123
    %v164 = vpack.c.b16 %v126, %v124
    %v165 = vpack.c.b16 %v129, %v127
    %v166 = vpack.c.b16 %v130, %v128
    %v167 = vpack.c.b16 %v133, %v131
    %v168 = vpack.c.b16 %v134, %v132
    %v169 = vpack.c.b16 %v137, %v135
    %v170 = vpack.c.b16 %v138, %v136
    %v171 = vpack.c.b16 %v141, %v139
    %v172 = vpack.c.b16 %v142, %v140
    %v173 = vpack.c.b16 %v145, %v143
    %v174 = vpack.c.b16 %v146, %v144
    %v175 = vpack.c.b16 %v149, %v147
    %v176 = vpack.c.b16 %v150, %v148
    %v177 = vpack.c.b16 %v151, %v151
    %v178 = vpack.c.b16 %v152, %v152
    %v211 = vunpack.c.l.b16 %v59
    %v212 = vunpack.c.l.b16 %v60
    %v213 = vunpack.c.l.b16 %v61
    %v214 = vunpack.c.l.b16 %v62
    %v215 = vunpack.c.l.b16 %v63
    %v216 = vunpack.c.l.b16 %v64
    %v217 = vunpack.c.l.b16 %v65
    %v218 = vunpack.c.l.b16 %v66
    %v219 = vunpack.c.l.b16 %v67
    %v220 = vunpack.c.l.b16 %v68
    %v221 = vunpack.c.l.b16 %v69
    %v222 = vunpack.c.l.b16 %v70
    %v223 = vunpack.c.l.b16 %v71
    %v224 = vunpack.c.l.b16 %v72
    %v225 = vunpack.c.l.b16 %v73
    %v226 = vunpack.c.l.b16 %v74
    %v227 = vunpack.c.l.b16 %v75
    %v228 = vunpack.c.l.b16 %v76
    %v229 = vunpack.c.l.b16 %v77
    %v230 = vpack.c.b16 %v212, %v211
    %v231 = vpack.c.b16 %v214, %v213
    %v232 = vpack.c.b16 %v216, %v215
    %v233 = vpack.c.b16 %v218, %v217
    %v234 = vpack.c.b16 %v220, %v219
    %v235 = vpack.c.b16 %v222, %v221
    %v236 = vpack.c.b16 %v224, %v223
    %v237 = vpack.c.b16 %v226, %v225
    %v238 = vpack.c.b16 %v228, %v227
    %v239 = vpack.c.b16 %v229, %v229
    %vm249 = vcmask 179200
    %v251 = vsel %vm249, %v154, 0
    %v254 = vsel %vm249, %v156, 0
    %v257 = vsel %vm249, %v158, 0
    %v260 = vsel %vm249, %v160, 0
    %v263 = vsel %vm249, %v162, 0
    %v266 = vsel %vm249, %v164, 0
    %v269 = vsel %vm249, %v166, 0
    %v272 = vsel %vm249, %v168, 0
    %v275 = vsel %vm249, %v170, 0
    %v278 = vsel %vm249, %v172, 0
    %v281 = vsel %vm249, %v174, 0
    %v284 = vsel %vm249, %v176, 0
    %v287 = vsel %vm249, %v178, 0
    %vm289 = vcmask 1042432
    %v291 = vsel %vm289, %v239, 0
    %293 = vmatprep.subr.bf16.mxu0 0
    %294 = vmatpush1.bf16.msra.mxu0 %v230
    %295 = vmatprep.subr.bf16.mxu0 0
    %296 = vmatpush1.bf16.msra.mxu0 %v231
    %297 = vmatprep.subr.bf16.mxu0 0
    %298 = vmatpush1.bf16.msra.mxu0 %v232
    %299 = vmatprep.subr.bf16.mxu0 0
    %300 = vmatpush1.bf16.msra.mxu0 %v233
    %301 = vmatprep.subr.bf16.mxu0 0
    %302 = vmatpush1.bf16.msra.mxu0 %v234
    %303 = vmatprep.subr.bf16.mxu0 0
    %304 = vmatpush1.bf16.msra.mxu0 %v235
    %305 = vmatprep.subr.bf16.mxu0 0
    %306 = vmatpush1.bf16.msra.mxu0 %v236
    %307 = vmatprep.subr.bf16.mxu0 0
    %308 = vmatpush1.bf16.msra.mxu0 %v237
    %309 = vmatprep.subr.bf16.mxu0 0
    %310 = vmatpush1.bf16.msra.mxu0 %v238
    %311 = vmatprep.subr.bf16.mxu0 0
    %312 = vmatpush1.bf16.msra.mxu0 %v291
    %313 = vmatprep.subr.bf16.mxu0 0
    %314 = vmatpush1.bf16.msra.mxu0 0
    %315 = vmatprep.subr.bf16.mxu0 0
    %316 = vmatpush1.bf16.msra.mxu0 0
    %317 = vmatprep.subr.bf16.mxu0 0
    %318 = vmatpush1.bf16.msra.mxu0 0
    %319 = vmatprep.subr.bf16.mxu0 0
    %320 = vmatpush1.bf16.msra.mxu0 0
    %321 = vmatprep.subr.bf16.mxu0 0
    %322 = vmatpush1.bf16.msra.mxu0 0
    %323 = vmatprep.subr.bf16.mxu0 0
    %324 = vmatpush1.bf16.msra.mxu0 0
    %325 = vmatprep.mubr.bf16.mxu0 %v251
    %326 = vmatmul.mubr.bf16.gmra.mrb[0].mxu0 %v153
    %v327 = vpop.f32.mrb[0].mxu0
    %v328 = vadd.f32 0.0, %v327
    %v329 = vpop.f32.mrb[0].mxu0
    %v330 = vpop.f32.mrb[0].mxu0
    %v331 = vadd.f32 0.0, %v330
    %v332 = vpop.f32.mrb[0].mxu0
    %333 = vmatprep.mubr.bf16.mxu0 %v254
    %334 = vmatmul.mubr.bf16.gmra.mrb[0].mxu0 %v155
    %v335 = vpop.f32.mrb[0].mxu0
    %v336 = vadd.f32 0.0, %v335
    %v337 = vpop.f32.mrb[0].mxu0
    %v338 = vpop.f32.mrb[0].mxu0
    %v339 = vadd.f32 0.0, %v338
    %v340 = vpop.f32.mrb[0].mxu0
    %341 = vmatprep.mubr.bf16.mxu0 %v257
    %342 = vmatmul.mubr.bf16.gmra.mrb[0].mxu0 %v157
    %v343 = vpop.f32.mrb[0].mxu0
    %v344 = vadd.f32 0.0, %v343
    %v345 = vpop.f32.mrb[0].mxu0
    %v346 = vpop.f32.mrb[0].mxu0
    %v347 = vadd.f32 0.0, %v346
    %v348 = vpop.f32.mrb[0].mxu0
    %349 = vmatprep.mubr.bf16.mxu0 %v260
    %350 = vmatmul.mubr.bf16.gmra.mrb[0].mxu0 %v159
    %v351 = vpop.f32.mrb[0].mxu0
    %v352 = vadd.f32 0.0, %v351
    %v353 = vpop.f32.mrb[0].mxu0
    %v354 = vpop.f32.mrb[0].mxu0
    %v355 = vadd.f32 0.0, %v354
    %v356 = vpop.f32.mrb[0].mxu0
    %357 = vmatprep.mubr.bf16.mxu0 %v263
    %358 = vmatmul.mubr.bf16.gmra.mrb[0].mxu0 %v161
    %v359 = vpop.f32.mrb[0].mxu0
    %v360 = vadd.f32 0.0, %v359
    %v361 = vpop.f32.mrb[0].mxu0
    %v362 = vpop.f32.mrb[0].mxu0
    %v363 = vadd.f32 0.0, %v362
    %v364 = vpop.f32.mrb[0].mxu0
    %365 = vmatprep.mubr.bf16.mxu0 %v266
    %366 = vmatmul.mubr.bf16.gmra.mrb[0].mxu0 %v163
    %v367 = vpop.f32.mrb[0].mxu0
    %v368 = vadd.f32 0.0, %v367
    %v369 = vpop.f32.mrb[0].mxu0
    %v370 = vpop.f32.mrb[0].mxu0
    %v371 = vadd.f32 0.0, %v370
    %v372 = vpop.f32.mrb[0].mxu0
    %373 = vmatprep.mubr.bf16.mxu0 %v269
    %374 = vmatmul.mubr.bf16.gmra.mrb[0].mxu0 %v165
    %v375 = vpop.f32.mrb[0].mxu0
    %v376 = vadd.f32 0.0, %v375
    %v377 = vpop.f32.mrb[0].mxu0
    %v378 = vpop.f32.mrb[0].mxu0
    %v379 = vadd.f32 0.0, %v378
    %v380 = vpop.f32.mrb[0].mxu0
    %381 = vmatprep.mubr.bf16.mxu0 %v272
    %382 = vmatmul.mubr.bf16.gmra.mrb[0].mxu0 %v167
    %v383 = vpop.f32.mrb[0].mxu0
    %v384 = vadd.f32 0.0, %v383
    %v385 = vpop.f32.mrb[0].mxu0
    %v386 = vpop.f32.mrb[0].mxu0
    %v387 = vadd.f32 0.0, %v386
    %v388 = vpop.f32.mrb[0].mxu0
    %389 = vmatprep.mubr.bf16.mxu0 %v275
    %390 = vmatmul.mubr.bf16.gmra.mrb[0].mxu0 %v169
    %v391 = vpop.f32.mrb[0].mxu0
    %v392 = vadd.f32 0.0, %v391
    %v393 = vpop.f32.mrb[0].mxu0
    %v394 = vpop.f32.mrb[0].mxu0
    %v395 = vadd.f32 0.0, %v394
    %v396 = vpop.f32.mrb[0].mxu0
    %397 = vmatprep.mubr.bf16.mxu0 %v278
    %398 = vmatmul.mubr.bf16.gmra.mrb[0].mxu0 %v171
    %v399 = vpop.f32.mrb[0].mxu0
    %v400 = vadd.f32 0.0, %v399
    %v401 = vpop.f32.mrb[0].mxu0
    %v402 = vpop.f32.mrb[0].mxu0
    %v403 = vadd.f32 0.0, %v402
    %v404 = vpop.f32.mrb[0].mxu0
    %405 = vmatprep.mubr.bf16.mxu0 %v281
    %406 = vmatmul.mubr.bf16.gmra.mrb[0].mxu0 %v173
    %v407 = vpop.f32.mrb[0].mxu0
    %v408 = vadd.f32 0.0, %v407
    %v409 = vpop.f32.mrb[0].mxu0
    %v410 = vpop.f32.mrb[0].mxu0
    %v411 = vadd.f32 0.0, %v410
    %v412 = vpop.f32.mrb[0].mxu0
    %413 = vmatprep.mubr.bf16.mxu0 %v284
    %414 = vmatmul.mubr.bf16.gmra.mrb[0].mxu0 %v175
    %v415 = vpop.f32.mrb[0].mxu0
    %v416 = vadd.f32 0.0, %v415
    %v417 = vpop.f32.mrb[0].mxu0
    %v418 = vpop.f32.mrb[0].mxu0
    %v419 = vadd.f32 0.0, %v418
    %v420 = vpop.f32.mrb[0].mxu0
    %421 = vmatprep.mubr.bf16.mxu0 %v287
    %422 = vmatmul.mubr.bf16.gmra.mrb[0].mxu0 %v177
    %v423 = vpop.f32.mrb[0].mxu0
    %v424 = vadd.f32 0.0, %v423
    %v425 = vpop.f32.mrb[0].mxu0
    %v426 = vpop.f32.mrb[0].mxu0
    %v427 = vpop.f32.mrb[0].mxu0
    %428 = vdwg.mxu0
    %vm436 = vcmask 1045504
    %v437 = vrot.slane %v352, 2
    %v438 = vrot.slane %v355, 2
    %v439 = vsel %vm436, %v437, %v438
    %v440 = vrot.slane %v360, 2
    %v441 = vsel %vm436, %v438, %v440
    %v442 = vrot.slane %v363, 2
    %v443 = vsel %vm436, %v440, %v442
    %v444 = vrot.slane %v368, 2
    %v445 = vsel %vm436, %v442, %v444
    %v446 = vrot.slane %v371, 2
    %v447 = vsel %vm436, %v444, %v446
    %v448 = vrot.slane %v376, 2
    %v449 = vsel %vm436, %v446, %v448
    %v457 = vmax.f32 %v328, %v439
    %v458 = vmax.f32 %v331, %v441
    %v459 = vmax.f32 %v336, %v443
    %v460 = vmax.f32 %v339, %v445
    %v461 = vmax.f32 %v344, %v447
    %v462 = vmax.f32 %v347, %v449
    %v463 = vmax.f32 %v352, %v448
    %v471 = vrot.slane %v400, 2
    %v472 = vrot.slane %v403, 2
    %v473 = vsel %vm436, %v471, %v472
    %v474 = vrot.slane %v408, 2
    %v475 = vsel %vm436, %v472, %v474
    %v476 = vrot.slane %v411, 2
    %v477 = vsel %vm436, %v474, %v476
    %v478 = vrot.slane %v416, 2
    %v479 = vsel %vm436, %v476, %v478
    %v480 = vrot.slane %v419, 2
    %v481 = vsel %vm436, %v478, %v480
    %v482 = vrot.slane %v424, 2
    %v483 = vsel %vm436, %v480, %v482
    %v491 = vmax.f32 %v376, %v473
    %v492 = vmax.f32 %v379, %v475
    %v493 = vmax.f32 %v384, %v477
    %v494 = vmax.f32 %v387, %v479
    %v495 = vmax.f32 %v392, %v481
    %v496 = vmax.f32 %v395, %v483
    %v497 = vmax.f32 %v400, %v482
    %vm505 = vcmask 1043456
    %v506 = vrot.slane %v491, 4
    %v507 = vrot.slane %v492, 4
    %v508 = vsel %vm505, %v506, %v507
    %v509 = vrot.slane %v493, 4
    %v510 = vsel %vm505, %v507, %v509
    %v511 = vrot.slane %v494, 4
    %v512 = vsel %vm505, %v509, %v511
    %v513 = vrot.slane %v495, 4
    %v514 = vsel %vm505, %v511, %v513
    %v515 = vrot.slane %v496, 4
    %v516 = vsel %vm505, %v513, %v515
    %v517 = vrot.slane %v497, 4
    %v518 = vsel %vm505, %v515, %v517
    %v526 = vmax.f32 %v457, %v508
    %v527 = vmax.f32 %v458, %v510
    %v528 = vmax.f32 %v459, %v512
    %v529 = vmax.f32 %v460, %v514
    %v530 = vmax.f32 %v461, %v516
    %v531 = vmax.f32 %v462, %v518
    %v532 = vmax.f32 %v463, %v517
    %v533 = vld [vmem:[%s2] sm:$0x1]
    %v535 = vlaneseq
    %v536 = vshrl.u32 %v535, 7
    %v537 = vsub.s32 0, %v536
    %v538 = vrot.slane %v533, %v537
    %v540 = vadd.f32 %v526, %v538
    %v541 = vadd.f32 %v527, %v538
    %v542 = vadd.f32 %v528, %v538
    %v543 = vadd.f32 %v529, %v538
    %v544 = vadd.f32 %v530, %v538
    %v545 = vadd.f32 %v531, %v538
    %v546 = vadd.f32 %v532, %v538
    %v547 = vmax.f32 %v540, 0.0
    %v548 = vmax.f32 %v541, 0.0
    %v549 = vmax.f32 %v542, 0.0
    %v550 = vmax.f32 %v543, 0.0
    %v551 = vmax.f32 %v544, 0.0
    %v552 = vmax.f32 %v545, 0.0
    %v553 = vmax.f32 %v546, 0.0
    %v554 = vpack.c.bf16 %v547, %v547
    %v555 = vld [vmem:[%s3] sm:$0xf]
    %v556 = vld [vmem:[%s3 + $0x4] sm:$0xf]
    %s557 = scalar_lea.vmem %s3, 8
    %v558 = vld [vmem:[%s557] sm:$0xf]
    %v559 = vld [vmem:[%s557 + $0x4] sm:$0xf]
    %v561 = vrot.slane %v554, 1
    %v564 = vunpack.c.l.b16 %v558
    %v565 = vunpack.c.l.b16 %v559
    %v566 = vpack.c.b16 %v565, %v564
    %vm568 = vcmask 130048
    %v570 = vsel %vm568, %v561, 0
    %572 = vmatprep.subr.bf16.mxu0 0
    %573 = vmatpush1.bf16.msra.mxu0 %v566
    %574 = vmatprep.subr.bf16.mxu0 0
    %575 = vmatpush1.bf16.msra.mxu0 0
    %576 = vmatprep.subr.bf16.mxu0 0
    %577 = vmatpush1.bf16.msra.mxu0 0
    %578 = vmatprep.subr.bf16.mxu0 0
    %579 = vmatpush1.bf16.msra.mxu0 0
    %580 = vmatprep.subr.bf16.mxu0 0
    %581 = vmatpush1.bf16.msra.mxu0 0
    %582 = vmatprep.subr.bf16.mxu0 0
    %583 = vmatpush1.bf16.msra.mxu0 0
    %584 = vmatprep.subr.bf16.mxu0 0
    %585 = vmatpush1.bf16.msra.mxu0 0
    %586 = vmatprep.subr.bf16.mxu0 0
    %587 = vmatpush1.bf16.msra.mxu0 0
    %588 = vmatprep.subr.bf16.mxu0 0
    %589 = vmatpush1.bf16.msra.mxu0 0
    %590 = vmatprep.subr.bf16.mxu0 0
    %591 = vmatpush1.bf16.msra.mxu0 0
    %592 = vmatprep.subr.bf16.mxu0 0
    %593 = vmatpush1.bf16.msra.mxu0 0
    %594 = vmatprep.subr.bf16.mxu0 0
    %595 = vmatpush1.bf16.msra.mxu0 0
    %596 = vmatprep.subr.bf16.mxu0 0
    %597 = vmatpush1.bf16.msra.mxu0 0
    %598 = vmatprep.subr.bf16.mxu0 0
    %599 = vmatpush1.bf16.msra.mxu0 0
    %600 = vmatprep.subr.bf16.mxu0 0
    %601 = vmatpush1.bf16.msra.mxu0 0
    %602 = vmatprep.subr.bf16.mxu0 0
    %603 = vmatpush1.bf16.msra.mxu0 0
    %604 = vmatprep.mubr.bf16.mxu0 0
    %605 = vmatmul.mubr.bf16.gmra.mrb[0].mxu0 %v570
    %v606 = vpop.f32.mrb[0].mxu0
    %v607 = vadd.f32 0.0, %v606
    %v608 = vpop.f32.mrb[0].mxu0
    %v609 = vpop.f32.mrb[0].mxu0
    %v610 = vpop.f32.mrb[0].mxu0
    %611 = vdwg.mxu0
    %v614 = vunpack.c.l.b16 %v555
    %v615 = vunpack.c.l.b16 %v556
    %v616 = vpack.c.b16 %v615, %v614
    %v619 = vsel %vm568, %v554, 0
    %621 = vmatprep.subr.bf16.mxu0 0
    %622 = vmatpush1.bf16.msra.mxu0 %v616
    %623 = vmatprep.subr.bf16.mxu0 0
    %624 = vmatpush1.bf16.msra.mxu0 0
    %625 = vmatprep.subr.bf16.mxu0 0
    %626 = vmatpush1.bf16.msra.mxu0 0
    %627 = vmatprep.subr.bf16.mxu0 0
    %628 = vmatpush1.bf16.msra.mxu0 0
    %629 = vmatprep.subr.bf16.mxu0 0
    %630 = vmatpush1.bf16.msra.mxu0 0
    %631 = vmatprep.subr.bf16.mxu0 0
    %632 = vmatpush1.bf16.msra.mxu0 0
    %633 = vmatprep.subr.bf16.mxu0 0
    %634 = vmatpush1.bf16.msra.mxu0 0
    %635 = vmatprep.subr.bf16.mxu0 0
    %636 = vmatpush1.bf16.msra.mxu0 0
    %637 = vmatprep.subr.bf16.mxu0 0
    %638 = vmatpush1.bf16.msra.mxu0 0
    %639 = vmatprep.subr.bf16.mxu0 0
    %640 = vmatpush1.bf16.msra.mxu0 0
    %641 = vmatprep.subr.bf16.mxu0 0
    %642 = vmatpush1.bf16.msra.mxu0 0
    %643 = vmatprep.subr.bf16.mxu0 0
    %644 = vmatpush1.bf16.msra.mxu0 0
    %645 = vmatprep.subr.bf16.mxu0 0
    %646 = vmatpush1.bf16.msra.mxu0 0
    %647 = vmatprep.subr.bf16.mxu0 0
    %648 = vmatpush1.bf16.msra.mxu0 0
    %649 = vmatprep.subr.bf16.mxu0 0
    %650 = vmatpush1.bf16.msra.mxu0 0
    %651 = vmatprep.subr.bf16.mxu0 0
    %652 = vmatpush1.bf16.msra.mxu0 0
    %653 = vmatprep.mubr.bf16.mxu0 0
    %654 = vmatmul.mubr.bf16.gmra.mrb[0].mxu0 %v619
    %v655 = vpop.f32.mrb[0].mxu0
    %v656 = vadd.f32 %v607, %v655
    %v657 = vpop.f32.mrb[0].mxu0
    %v658 = vpop.f32.mrb[0].mxu0
    %v659 = vpop.f32.mrb[0].mxu0
    %660 = vdwg.mxu0
    %s661 = scalar_lea.vmem %s3, 16
    %v662 = vld [vmem:[%s661] sm:$0xf]
    %v663 = vld [vmem:[%s661 + $0x4] sm:$0xf]
    %v664 = vrot.slane %v554, 2
    %v667 = vunpack.c.l.b16 %v662
    %v668 = vunpack.c.l.b16 %v663
    %v669 = vpack.c.b16 %v668, %v667
    %v672 = vsel %vm568, %v664, 0
    %674 = vmatprep.subr.bf16.mxu0 0
    %675 = vmatpush1.bf16.msra.mxu0 %v669
    %676 = vmatprep.subr.bf16.mxu0 0
    %677 = vmatpush1.bf16.msra.mxu0 0
    %678 = vmatprep.subr.bf16.mxu0 0
    %679 = vmatpush1.bf16.msra.mxu0 0
    %680 = vmatprep.subr.bf16.mxu0 0
    %681 = vmatpush1.bf16.msra.mxu0 0
    %682 = vmatprep.subr.bf16.mxu0 0
    %683 = vmatpush1.bf16.msra.mxu0 0
    %684 = vmatprep.subr.bf16.mxu0 0
    %685 = vmatpush1.bf16.msra.mxu0 0
    %686 = vmatprep.subr.bf16.mxu0 0
    %687 = vmatpush1.bf16.msra.mxu0 0
    %688 = vmatprep.subr.bf16.mxu0 0
    %689 = vmatpush1.bf16.msra.mxu0 0
    %690 = vmatprep.subr.bf16.mxu0 0
    %691 = vmatpush1.bf16.msra.mxu0 0
    %692 = vmatprep.subr.bf16.mxu0 0
    %693 = vmatpush1.bf16.msra.mxu0 0
    %694 = vmatprep.subr.bf16.mxu0 0
    %695 = vmatpush1.bf16.msra.mxu0 0
    %696 = vmatprep.subr.bf16.mxu0 0
    %697 = vmatpush1.bf16.msra.mxu0 0
    %698 = vmatprep.subr.bf16.mxu0 0
    %699 = vmatpush1.bf16.msra.mxu0 0
    %700 = vmatprep.subr.bf16.mxu0 0
    %701 = vmatpush1.bf16.msra.mxu0 0
    %702 = vmatprep.subr.bf16.mxu0 0
    %703 = vmatpush1.bf16.msra.mxu0 0
    %704 = vmatprep.subr.bf16.mxu0 0
    %705 = vmatpush1.bf16.msra.mxu0 0
    %706 = vmatprep.mubr.bf16.mxu0 0
    %707 = vmatmul.mubr.bf16.gmra.mrb[0].mxu0 %v672
    %v708 = vpop.f32.mrb[0].mxu0
    %v709 = vadd.f32 0.0, %v708
    %v710 = vpop.f32.mrb[0].mxu0
    %v711 = vpop.f32.mrb[0].mxu0
    %v712 = vpop.f32.mrb[0].mxu0
    %713 = vdwg.mxu0
    %v714 = vadd.f32 %v656, %v709
    %s715 = scalar_lea.vmem %s3, 24
    %v716 = vld [vmem:[%s715] sm:$0xf]
    %v717 = vld [vmem:[%s715 + $0x4] sm:$0xf]
    %v718 = vrot.slane %v554, 3
    %v721 = vunpack.c.l.b16 %v716
    %v722 = vunpack.c.l.b16 %v717
    %v723 = vpack.c.b16 %v722, %v721
    %v726 = vsel %vm568, %v718, 0
    %728 = vmatprep.subr.bf16.mxu0 0
    %729 = vmatpush1.bf16.msra.mxu0 %v723
    %730 = vmatprep.subr.bf16.mxu0 0
    %731 = vmatpush1.bf16.msra.mxu0 0
    %732 = vmatprep.subr.bf16.mxu0 0
    %733 = vmatpush1.bf16.msra.mxu0 0
    %734 = vmatprep.subr.bf16.mxu0 0
    %735 = vmatpush1.bf16.msra.mxu0 0
    %736 = vmatprep.subr.bf16.mxu0 0
    %737 = vmatpush1.bf16.msra.mxu0 0
    %738 = vmatprep.subr.bf16.mxu0 0
    %739 = vmatpush1.bf16.msra.mxu0 0
    %740 = vmatprep.subr.bf16.mxu0 0
    %741 = vmatpush1.bf16.msra.mxu0 0
    %742 = vmatprep.subr.bf16.mxu0 0
    %743 = vmatpush1.bf16.msra.mxu0 0
    %744 = vmatprep.subr.bf16.mxu0 0
    %745 = vmatpush1.bf16.msra.mxu0 0
    %746 = vmatprep.subr.bf16.mxu0 0
    %747 = vmatpush1.bf16.msra.mxu0 0
    %748 = vmatprep.subr.bf16.mxu0 0
    %749 = vmatpush1.bf16.msra.mxu0 0
    %750 = vmatprep.subr.bf16.mxu0 0
    %751 = vmatpush1.bf16.msra.mxu0 0
    %752 = vmatprep.subr.bf16.mxu0 0
    %753 = vmatpush1.bf16.msra.mxu0 0
    %754 = vmatprep.subr.bf16.mxu0 0
    %755 = vmatpush1.bf16.msra.mxu0 0
    %756 = vmatprep.subr.bf16.mxu0 0
    %757 = vmatpush1.bf16.msra.mxu0 0
    %758 = vmatprep.subr.bf16.mxu0 0
    %759 = vmatpush1.bf16.msra.mxu0 0
    %760 = vmatprep.mubr.bf16.mxu0 0
    %761 = vmatmul.mubr.bf16.gmra.mrb[0].mxu0 %v726
    %v762 = vpop.f32.mrb[0].mxu0
    %v763 = vadd.f32 0.0, %v762
    %v764 = vpop.f32.mrb[0].mxu0
    %v765 = vpop.f32.mrb[0].mxu0
    %v766 = vpop.f32.mrb[0].mxu0
    %767 = vdwg.mxu0
    %v768 = vadd.f32 %v714, %v763
    %v769 = vpack.c.bf16 %v548, %v548
    %s770 = scalar_lea.vmem %s3, 32
    %v771 = vld [vmem:[%s770] sm:$0xf]
    %v772 = vld [vmem:[%s770 + $0x4] sm:$0xf]
    %v775 = vunpack.c.l.b16 %v771
    %v776 = vunpack.c.l.b16 %v772
    %v777 = vpack.c.b16 %v776, %v775
    %v780 = vsel %vm568, %v769, 0
    %782 = vmatprep.subr.bf16.mxu0 0
    %783 = vmatpush1.bf16.msra.mxu0 %v777
    %784 = vmatprep.subr.bf16.mxu0 0
    %785 = vmatpush1.bf16.msra.mxu0 0
    %786 = vmatprep.subr.bf16.mxu0 0
    %787 = vmatpush1.bf16.msra.mxu0 0
    %788 = vmatprep.subr.bf16.mxu0 0
    %789 = vmatpush1.bf16.msra.mxu0 0
    %790 = vmatprep.subr.bf16.mxu0 0
    %791 = vmatpush1.bf16.msra.mxu0 0
    %792 = vmatprep.subr.bf16.mxu0 0
    %793 = vmatpush1.bf16.msra.mxu0 0
    %794 = vmatprep.subr.bf16.mxu0 0
    %795 = vmatpush1.bf16.msra.mxu0 0
    %796 = vmatprep.subr.bf16.mxu0 0
    %797 = vmatpush1.bf16.msra.mxu0 0
    %798 = vmatprep.subr.bf16.mxu0 0
    %799 = vmatpush1.bf16.msra.mxu0 0
    %800 = vmatprep.subr.bf16.mxu0 0
    %801 = vmatpush1.bf16.msra.mxu0 0
    %802 = vmatprep.subr.bf16.mxu0 0
    %803 = vmatpush1.bf16.msra.mxu0 0
    %804 = vmatprep.subr.bf16.mxu0 0
    %805 = vmatpush1.bf16.msra.mxu0 0
    %806 = vmatprep.subr.bf16.mxu0 0
    %807 = vmatpush1.bf16.msra.mxu0 0
    %808 = vmatprep.subr.bf16.mxu0 0
    %809 = vmatpush1.bf16.msra.mxu0 0
    %810 = vmatprep.subr.bf16.mxu0 0
    %811 = vmatpush1.bf16.msra.mxu0 0
    %812 = vmatprep.subr.bf16.mxu0 0
    %813 = vmatpush1.bf16.msra.mxu0 0
    %814 = vmatprep.mubr.bf16.mxu0 0
    %815 = vmatmul.mubr.bf16.gmra.mrb[0].mxu0 %v780
    %v816 = vpop.f32.mrb[0].mxu0
    %v817 = vadd.f32 0.0, %v816
    %v818 = vpop.f32.mrb[0].mxu0
    %v819 = vpop.f32.mrb[0].mxu0
    %v820 = vpop.f32.mrb[0].mxu0
    %821 = vdwg.mxu0
    %v822 = vadd.f32 %v768, %v817
    %s823 = scalar_lea.vmem %s3, 40
    %v824 = vld [vmem:[%s823] sm:$0xf]
    %v825 = vld [vmem:[%s823 + $0x4] sm:$0xf]
    %v827 = vrot.slane %v769, 1
    %v830 = vunpack.c.l.b16 %v824
    %v831 = vunpack.c.l.b16 %v825
    %v832 = vpack.c.b16 %v831, %v830
    %v835 = vsel %vm568, %v827, 0
    %837 = vmatprep.subr.bf16.mxu0 0
    %838 = vmatpush1.bf16.msra.mxu0 %v832
    %839 = vmatprep.subr.bf16.mxu0 0
    %840 = vmatpush1.bf16.msra.mxu0 0
    %841 = vmatprep.subr.bf16.mxu0 0
    %842 = vmatpush1.bf16.msra.mxu0 0
    %843 = vmatprep.subr.bf16.mxu0 0
    %844 = vmatpush1.bf16.msra.mxu0 0
    %845 = vmatprep.subr.bf16.mxu0 0
    %846 = vmatpush1.bf16.msra.mxu0 0
    %847 = vmatprep.subr.bf16.mxu0 0
    %848 = vmatpush1.bf16.msra.mxu0 0
    %849 = vmatprep.subr.bf16.mxu0 0
    %850 = vmatpush1.bf16.msra.mxu0 0
    %851 = vmatprep.subr.bf16.mxu0 0
    %852 = vmatpush1.bf16.msra.mxu0 0
    %853 = vmatprep.subr.bf16.mxu0 0
    %854 = vmatpush1.bf16.msra.mxu0 0
    %855 = vmatprep.subr.bf16.mxu0 0
    %856 = vmatpush1.bf16.msra.mxu0 0
    %857 = vmatprep.subr.bf16.mxu0 0
    %858 = vmatpush1.bf16.msra.mxu0 0
    %859 = vmatprep.subr.bf16.mxu0 0
    %860 = vmatpush1.bf16.msra.mxu0 0
    %861 = vmatprep.subr.bf16.mxu0 0
    %862 = vmatpush1.bf16.msra.mxu0 0
    %863 = vmatprep.subr.bf16.mxu0 0
    %864 = vmatpush1.bf16.msra.mxu0 0
    %865 = vmatprep.subr.bf16.mxu0 0
    %866 = vmatpush1.bf16.msra.mxu0 0
    %867 = vmatprep.subr.bf16.mxu0 0
    %868 = vmatpush1.bf16.msra.mxu0 0
    %869 = vmatprep.mubr.bf16.mxu0 0
    %870 = vmatmul.mubr.bf16.gmra.mrb[0].mxu0 %v835
    %v871 = vpop.f32.mrb[0].mxu0
    %v872 = vadd.f32 0.0, %v871
    %v873 = vpop.f32.mrb[0].mxu0
    %v874 = vpop.f32.mrb[0].mxu0
    %v875 = vpop.f32.mrb[0].mxu0
    %876 = vdwg.mxu0
    %v877 = vadd.f32 %v822, %v872
    %s878 = scalar_lea.vmem %s3, 48
    %v879 = vld [vmem:[%s878] sm:$0xf]
    %v880 = vld [vmem:[%s878 + $0x4] sm:$0xf]
    %v881 = vrot.slane %v769, 2
    %v884 = vunpack.c.l.b16 %v879
    %v885 = vunpack.c.l.b16 %v880
    %v886 = vpack.c.b16 %v885, %v884
    %v889 = vsel %vm568, %v881, 0
    %891 = vmatprep.subr.bf16.mxu0 0
    %892 = vmatpush1.bf16.msra.mxu0 %v886
    %893 = vmatprep.subr.bf16.mxu0 0
    %894 = vmatpush1.bf16.msra.mxu0 0
    %895 = vmatprep.subr.bf16.mxu0 0
    %896 = vmatpush1.bf16.msra.mxu0 0
    %897 = vmatprep.subr.bf16.mxu0 0
    %898 = vmatpush1.bf16.msra.mxu0 0
    %899 = vmatprep.subr.bf16.mxu0 0
    %900 = vmatpush1.bf16.msra.mxu0 0
    %901 = vmatprep.subr.bf16.mxu0 0
    %902 = vmatpush1.bf16.msra.mxu0 0
    %903 = vmatprep.subr.bf16.mxu0 0
    %904 = vmatpush1.bf16.msra.mxu0 0
    %905 = vmatprep.subr.bf16.mxu0 0
    %906 = vmatpush1.bf16.msra.mxu0 0
    %907 = vmatprep.subr.bf16.mxu0 0
    %908 = vmatpush1.bf16.msra.mxu0 0
    %909 = vmatprep.subr.bf16.mxu0 0
    %910 = vmatpush1.bf16.msra.mxu0 0
    %911 = vmatprep.subr.bf16.mxu0 0
    %912 = vmatpush1.bf16.msra.mxu0 0
    %913 = vmatprep.subr.bf16.mxu0 0
    %914 = vmatpush1.bf16.msra.mxu0 0
    %915 = vmatprep.subr.bf16.mxu0 0
    %916 = vmatpush1.bf16.msra.mxu0 0
    %917 = vmatprep.subr.bf16.mxu0 0
    %918 = vmatpush1.bf16.msra.mxu0 0
    %919 = vmatprep.subr.bf16.mxu0 0
    %920 = vmatpush1.bf16.msra.mxu0 0
    %921 = vmatprep.subr.bf16.mxu0 0
    %922 = vmatpush1.bf16.msra.mxu0 0
    %923 = vmatprep.mubr.bf16.mxu0 0
    %924 = vmatmul.mubr.bf16.gmra.mrb[0].mxu0 %v889
    %v925 = vpop.f32.mrb[0].mxu0
    %v926 = vadd.f32 0.0, %v925
    %v927 = vpop.f32.mrb[0].mxu0
    %v928 = vpop.f32.mrb[0].mxu0
    %v929 = vpop.f32.mrb[0].mxu0
    %930 = vdwg.mxu0
    %v931 = vadd.f32 %v877, %v926
    %s932 = scalar_lea.vmem %s3, 56
    %v933 = vld [vmem:[%s932] sm:$0xf]
    %v934 = vld [vmem:[%s932 + $0x4] sm:$0xf]
    %v935 = vrot.slane %v769, 3
    %v938 = vunpack.c.l.b16 %v933
    %v939 = vunpack.c.l.b16 %v934
    %v940 = vpack.c.b16 %v939, %v938
    %v943 = vsel %vm568, %v935, 0
    %945 = vmatprep.subr.bf16.mxu0 0
    %946 = vmatpush1.bf16.msra.mxu0 %v940
    %947 = vmatprep.subr.bf16.mxu0 0
    %948 = vmatpush1.bf16.msra.mxu0 0
    %949 = vmatprep.subr.bf16.mxu0 0
    %950 = vmatpush1.bf16.msra.mxu0 0
    %951 = vmatprep.subr.bf16.mxu0 0
    %952 = vmatpush1.bf16.msra.mxu0 0
    %953 = vmatprep.subr.bf16.mxu0 0
    %954 = vmatpush1.bf16.msra.mxu0 0
    %955 = vmatprep.subr.bf16.mxu0 0
    %956 = vmatpush1.bf16.msra.mxu0 0
    %957 = vmatprep.subr.bf16.mxu0 0
    %958 = vmatpush1.bf16.msra.mxu0 0
    %959 = vmatprep.subr.bf16.mxu0 0
    %960 = vmatpush1.bf16.msra.mxu0 0
    %961 = vmatprep.subr.bf16.mxu0 0
    %962 = vmatpush1.bf16.msra.mxu0 0
    %963 = vmatprep.subr.bf16.mxu0 0
    %964 = vmatpush1.bf16.msra.mxu0 0
    %965 = vmatprep.subr.bf16.mxu0 0
    %966 = vmatpush1.bf16.msra.mxu0 0
    %967 = vmatprep.subr.bf16.mxu0 0
    %968 = vmatpush1.bf16.msra.mxu0 0
    %969 = vmatprep.subr.bf16.mxu0 0
    %970 = vmatpush1.bf16.msra.mxu0 0
    %971 = vmatprep.subr.bf16.mxu0 0
    %972 = vmatpush1.bf16.msra.mxu0 0
    %973 = vmatprep.subr.bf16.mxu0 0
    %974 = vmatpush1.bf16.msra.mxu0 0
    %975 = vmatprep.subr.bf16.mxu0 0
    %976 = vmatpush1.bf16.msra.mxu0 0
    %977 = vmatprep.mubr.bf16.mxu0 0
    %978 = vmatmul.mubr.bf16.gmra.mrb[0].mxu0 %v943
    %v979 = vpop.f32.mrb[0].mxu0
    %v980 = vadd.f32 0.0, %v979
    %v981 = vpop.f32.mrb[0].mxu0
    %v982 = vpop.f32.mrb[0].mxu0
    %v983 = vpop.f32.mrb[0].mxu0
    %984 = vdwg.mxu0
    %v985 = vadd.f32 %v931, %v980
    %v986 = vpack.c.bf16 %v549, %v549
    %s987 = scalar_lea.vmem %s3, 64
    %v988 = vld [vmem:[%s987] sm:$0xf]
    %v989 = vld [vmem:[%s987 + $0x4] sm:$0xf]
    %v992 = vunpack.c.l.b16 %v988
    %v993 = vunpack.c.l.b16 %v989
    %v994 = vpack.c.b16 %v993, %v992
    %v997 = vsel %vm568, %v986, 0
    %999 = vmatprep.subr.bf16.mxu0 0
    %1000 = vmatpush1.bf16.msra.mxu0 %v994
    %1001 = vmatprep.subr.bf16.mxu0 0
    %1002 = vmatpush1.bf16.msra.mxu0 0
    %1003 = vmatprep.subr.bf16.mxu0 0
    %1004 = vmatpush1.bf16.msra.mxu0 0
    %1005 = vmatprep.subr.bf16.mxu0 0
    %1006 = vmatpush1.bf16.msra.mxu0 0
    %1007 = vmatprep.subr.bf16.mxu0 0
    %1008 = vmatpush1.bf16.msra.mxu0 0
    %1009 = vmatprep.subr.bf16.mxu0 0
    %1010 = vmatpush1.bf16.msra.mxu0 0
    %1011 = vmatprep.subr.bf16.mxu0 0
    %1012 = vmatpush1.bf16.msra.mxu0 0
    %1013 = vmatprep.subr.bf16.mxu0 0
    %1014 = vmatpush1.bf16.msra.mxu0 0
    %1015 = vmatprep.subr.bf16.mxu0 0
    %1016 = vmatpush1.bf16.msra.mxu0 0
    %1017 = vmatprep.subr.bf16.mxu0 0
    %1018 = vmatpush1.bf16.msra.mxu0 0
    %1019 = vmatprep.subr.bf16.mxu0 0
    %1020 = vmatpush1.bf16.msra.mxu0 0
    %1021 = vmatprep.subr.bf16.mxu0 0
    %1022 = vmatpush1.bf16.msra.mxu0 0
    %1023 = vmatprep.subr.bf16.mxu0 0
    %1024 = vmatpush1.bf16.msra.mxu0 0
    %1025 = vmatprep.subr.bf16.mxu0 0
    %1026 = vmatpush1.bf16.msra.mxu0 0
    %1027 = vmatprep.subr.bf16.mxu0 0
    %1028 = vmatpush1.bf16.msra.mxu0 0
    %1029 = vmatprep.subr.bf16.mxu0 0
    %1030 = vmatpush1.bf16.msra.mxu0 0
    %1031 = vmatprep.mubr.bf16.mxu0 0
    %1032 = vmatmul.mubr.bf16.gmra.mrb[0].mxu0 %v997
    %v1033 = vpop.f32.mrb[0].mxu0
    %v1034 = vadd.f32 0.0, %v1033
    %v1035 = vpop.f32.mrb[0].mxu0
    %v1036 = vpop.f32.mrb[0].mxu0
    %v1037 = vpop.f32.mrb[0].mxu0
    %1038 = vdwg.mxu0
    %v1039 = vadd.f32 %v985, %v1034
    %s1040 = scalar_lea.vmem %s3, 72
    %v1041 = vld [vmem:[%s1040] sm:$0xf]
    %v1042 = vld [vmem:[%s1040 + $0x4] sm:$0xf]
    %v1044 = vrot.slane %v986, 1
    %v1047 = vunpack.c.l.b16 %v1041
    %v1048 = vunpack.c.l.b16 %v1042
    %v1049 = vpack.c.b16 %v1048, %v1047
    %v1052 = vsel %vm568, %v1044, 0
    %1054 = vmatprep.subr.bf16.mxu0 0
    %1055 = vmatpush1.bf16.msra.mxu0 %v1049
    %1056 = vmatprep.subr.bf16.mxu0 0
    %1057 = vmatpush1.bf16.msra.mxu0 0
    %1058 = vmatprep.subr.bf16.mxu0 0
    %1059 = vmatpush1.bf16.msra.mxu0 0
    %1060 = vmatprep.subr.bf16.mxu0 0
    %1061 = vmatpush1.bf16.msra.mxu0 0
    %1062 = vmatprep.subr.bf16.mxu0 0
    %1063 = vmatpush1.bf16.msra.mxu0 0
    %1064 = vmatprep.subr.bf16.mxu0 0
    %1065 = vmatpush1.bf16.msra.mxu0 0
    %1066 = vmatprep.subr.bf16.mxu0 0
    %1067 = vmatpush1.bf16.msra.mxu0 0
    %1068 = vmatprep.subr.bf16.mxu0 0
    %1069 = vmatpush1.bf16.msra.mxu0 0
    %1070 = vmatprep.subr.bf16.mxu0 0
    %1071 = vmatpush1.bf16.msra.mxu0 0
    %1072 = vmatprep.subr.bf16.mxu0 0
    %1073 = vmatpush1.bf16.msra.mxu0 0
    %1074 = vmatprep.subr.bf16.mxu0 0
    %1075 = vmatpush1.bf16.msra.mxu0 0
    %1076 = vmatprep.subr.bf16.mxu0 0
    %1077 = vmatpush1.bf16.msra.mxu0 0
    %1078 = vmatprep.subr.bf16.mxu0 0
    %1079 = vmatpush1.bf16.msra.mxu0 0
    %1080 = vmatprep.subr.bf16.mxu0 0
    %1081 = vmatpush1.bf16.msra.mxu0 0
    %1082 = vmatprep.subr.bf16.mxu0 0
    %1083 = vmatpush1.bf16.msra.mxu0 0
    %1084 = vmatprep.subr.bf16.mxu0 0
    %1085 = vmatpush1.bf16.msra.mxu0 0
    %1086 = vmatprep.mubr.bf16.mxu0 0
    %1087 = vmatmul.mubr.bf16.gmra.mrb[0].mxu0 %v1052
    %v1088 = vpop.f32.mrb[0].mxu0
    %v1089 = vadd.f32 0.0, %v1088
    %v1090 = vpop.f32.mrb[0].mxu0
    %v1091 = vpop.f32.mrb[0].mxu0
    %v1092 = vpop.f32.mrb[0].mxu0
    %1093 = vdwg.mxu0
    %v1094 = vadd.f32 %v1039, %v1089
    %s1095 = scalar_lea.vmem %s3, 80
    %v1096 = vld [vmem:[%s1095] sm:$0xf]
    %v1097 = vld [vmem:[%s1095 + $0x4] sm:$0xf]
    %v1098 = vrot.slane %v986, 2
    %v1101 = vunpack.c.l.b16 %v1096
    %v1102 = vunpack.c.l.b16 %v1097
    %v1103 = vpack.c.b16 %v1102, %v1101
    %v1106 = vsel %vm568, %v1098, 0
    %1108 = vmatprep.subr.bf16.mxu0 0
    %1109 = vmatpush1.bf16.msra.mxu0 %v1103
    %1110 = vmatprep.subr.bf16.mxu0 0
    %1111 = vmatpush1.bf16.msra.mxu0 0
    %1112 = vmatprep.subr.bf16.mxu0 0
    %1113 = vmatpush1.bf16.msra.mxu0 0
    %1114 = vmatprep.subr.bf16.mxu0 0
    %1115 = vmatpush1.bf16.msra.mxu0 0
    %1116 = vmatprep.subr.bf16.mxu0 0
    %1117 = vmatpush1.bf16.msra.mxu0 0
    %1118 = vmatprep.subr.bf16.mxu0 0
    %1119 = vmatpush1.bf16.msra.mxu0 0
    %1120 = vmatprep.subr.bf16.mxu0 0
    %1121 = vmatpush1.bf16.msra.mxu0 0
    %1122 = vmatprep.subr.bf16.mxu0 0
    %1123 = vmatpush1.bf16.msra.mxu0 0
    %1124 = vmatprep.subr.bf16.mxu0 0
    %1125 = vmatpush1.bf16.msra.mxu0 0
    %1126 = vmatprep.subr.bf16.mxu0 0
    %1127 = vmatpush1.bf16.msra.mxu0 0
    %1128 = vmatprep.subr.bf16.mxu0 0
    %1129 = vmatpush1.bf16.msra.mxu0 0
    %1130 = vmatprep.subr.bf16.mxu0 0
    %1131 = vmatpush1.bf16.msra.mxu0 0
    %1132 = vmatprep.subr.bf16.mxu0 0
    %1133 = vmatpush1.bf16.msra.mxu0 0
    %1134 = vmatprep.subr.bf16.mxu0 0
    %1135 = vmatpush1.bf16.msra.mxu0 0
    %1136 = vmatprep.subr.bf16.mxu0 0
    %1137 = vmatpush1.bf16.msra.mxu0 0
    %1138 = vmatprep.subr.bf16.mxu0 0
    %1139 = vmatpush1.bf16.msra.mxu0 0
    %1140 = vmatprep.mubr.bf16.mxu0 0
    %1141 = vmatmul.mubr.bf16.gmra.mrb[0].mxu0 %v1106
    %v1142 = vpop.f32.mrb[0].mxu0
    %v1143 = vadd.f32 0.0, %v1142
    %v1144 = vpop.f32.mrb[0].mxu0
    %v1145 = vpop.f32.mrb[0].mxu0
    %v1146 = vpop.f32.mrb[0].mxu0
    %1147 = vdwg.mxu0
    %v1148 = vadd.f32 %v1094, %v1143
    %s1149 = scalar_lea.vmem %s3, 88
    %v1150 = vld [vmem:[%s1149] sm:$0xf]
    %v1151 = vld [vmem:[%s1149 + $0x4] sm:$0xf]
    %v1152 = vrot.slane %v986, 3
    %v1155 = vunpack.c.l.b16 %v1150
    %v1156 = vunpack.c.l.b16 %v1151
    %v1157 = vpack.c.b16 %v1156, %v1155
    %v1160 = vsel %vm568, %v1152, 0
    %1162 = vmatprep.subr.bf16.mxu0 0
    %1163 = vmatpush1.bf16.msra.mxu0 %v1157
    %1164 = vmatprep.subr.bf16.mxu0 0
    %1165 = vmatpush1.bf16.msra.mxu0 0
    %1166 = vmatprep.subr.bf16.mxu0 0
    %1167 = vmatpush1.bf16.msra.mxu0 0
    %1168 = vmatprep.subr.bf16.mxu0 0
    %1169 = vmatpush1.bf16.msra.mxu0 0
    %1170 = vmatprep.subr.bf16.mxu0 0
    %1171 = vmatpush1.bf16.msra.mxu0 0
    %1172 = vmatprep.subr.bf16.mxu0 0
    %1173 = vmatpush1.bf16.msra.mxu0 0
    %1174 = vmatprep.subr.bf16.mxu0 0
    %1175 = vmatpush1.bf16.msra.mxu0 0
    %1176 = vmatprep.subr.bf16.mxu0 0
    %1177 = vmatpush1.bf16.msra.mxu0 0
    %1178 = vmatprep.subr.bf16.mxu0 0
    %1179 = vmatpush1.bf16.msra.mxu0 0
    %1180 = vmatprep.subr.bf16.mxu0 0
    %1181 = vmatpush1.bf16.msra.mxu0 0
    %1182 = vmatprep.subr.bf16.mxu0 0
    %1183 = vmatpush1.bf16.msra.mxu0 0
    %1184 = vmatprep.subr.bf16.mxu0 0
    %1185 = vmatpush1.bf16.msra.mxu0 0
    %1186 = vmatprep.subr.bf16.mxu0 0
    %1187 = vmatpush1.bf16.msra.mxu0 0
    %1188 = vmatprep.subr.bf16.mxu0 0
    %1189 = vmatpush1.bf16.msra.mxu0 0
    %1190 = vmatprep.subr.bf16.mxu0 0
    %1191 = vmatpush1.bf16.msra.mxu0 0
    %1192 = vmatprep.subr.bf16.mxu0 0
    %1193 = vmatpush1.bf16.msra.mxu0 0
    %1194 = vmatprep.mubr.bf16.mxu0 0
    %1195 = vmatmul.mubr.bf16.gmra.mrb[0].mxu0 %v1160
    %v1196 = vpop.f32.mrb[0].mxu0
    %v1197 = vadd.f32 0.0, %v1196
    %v1198 = vpop.f32.mrb[0].mxu0
    %v1199 = vpop.f32.mrb[0].mxu0
    %v1200 = vpop.f32.mrb[0].mxu0
    %1201 = vdwg.mxu0
    %v1202 = vadd.f32 %v1148, %v1197
    %v1203 = vpack.c.bf16 %v550, %v550
    %s1204 = scalar_lea.vmem %s3, 96
    %v1205 = vld [vmem:[%s1204] sm:$0xf]
    %v1206 = vld [vmem:[%s1204 + $0x4] sm:$0xf]
    %v1209 = vunpack.c.l.b16 %v1205
    %v1210 = vunpack.c.l.b16 %v1206
    %v1211 = vpack.c.b16 %v1210, %v1209
    %v1214 = vsel %vm568, %v1203, 0
    %1216 = vmatprep.subr.bf16.mxu0 0
    %1217 = vmatpush1.bf16.msra.mxu0 %v1211
    %1218 = vmatprep.subr.bf16.mxu0 0
    %1219 = vmatpush1.bf16.msra.mxu0 0
    %1220 = vmatprep.subr.bf16.mxu0 0
    %1221 = vmatpush1.bf16.msra.mxu0 0
    %1222 = vmatprep.subr.bf16.mxu0 0
    %1223 = vmatpush1.bf16.msra.mxu0 0
    %1224 = vmatprep.subr.bf16.mxu0 0
    %1225 = vmatpush1.bf16.msra.mxu0 0
    %1226 = vmatprep.subr.bf16.mxu0 0
    %1227 = vmatpush1.bf16.msra.mxu0 0
    %1228 = vmatprep.subr.bf16.mxu0 0
    %1229 = vmatpush1.bf16.msra.mxu0 0
    %1230 = vmatprep.subr.bf16.mxu0 0
    %1231 = vmatpush1.bf16.msra.mxu0 0
    %1232 = vmatprep.subr.bf16.mxu0 0
    %1233 = vmatpush1.bf16.msra.mxu0 0
    %1234 = vmatprep.subr.bf16.mxu0 0
    %1235 = vmatpush1.bf16.msra.mxu0 0
    %1236 = vmatprep.subr.bf16.mxu0 0
    %1237 = vmatpush1.bf16.msra.mxu0 0
    %1238 = vmatprep.subr.bf16.mxu0 0
    %1239 = vmatpush1.bf16.msra.mxu0 0
    %1240 = vmatprep.subr.bf16.mxu0 0
    %1241 = vmatpush1.bf16.msra.mxu0 0
    %1242 = vmatprep.subr.bf16.mxu0 0
    %1243 = vmatpush1.bf16.msra.mxu0 0
    %1244 = vmatprep.subr.bf16.mxu0 0
    %1245 = vmatpush1.bf16.msra.mxu0 0
    %1246 = vmatprep.subr.bf16.mxu0 0
    %1247 = vmatpush1.bf16.msra.mxu0 0
    %1248 = vmatprep.mubr.bf16.mxu0 0
    %1249 = vmatmul.mubr.bf16.gmra.mrb[0].mxu0 %v1214
    %v1250 = vpop.f32.mrb[0].mxu0
    %v1251 = vadd.f32 0.0, %v1250
    %v1252 = vpop.f32.mrb[0].mxu0
    %v1253 = vpop.f32.mrb[0].mxu0
    %v1254 = vpop.f32.mrb[0].mxu0
    %1255 = vdwg.mxu0
    %v1256 = vadd.f32 %v1202, %v1251
    %s1257 = scalar_lea.vmem %s3, 104
    %v1258 = vld [vmem:[%s1257] sm:$0xf]
    %v1259 = vld [vmem:[%s1257 + $0x4] sm:$0xf]
    %v1261 = vrot.slane %v1203, 1
    %v1264 = vunpack.c.l.b16 %v1258
    %v1265 = vunpack.c.l.b16 %v1259
    %v1266 = vpack.c.b16 %v1265, %v1264
    %v1269 = vsel %vm568, %v1261, 0
    %1271 = vmatprep.subr.bf16.mxu0 0
    %1272 = vmatpush1.bf16.msra.mxu0 %v1266
    %1273 = vmatprep.subr.bf16.mxu0 0
    %1274 = vmatpush1.bf16.msra.mxu0 0
    %1275 = vmatprep.subr.bf16.mxu0 0
    %1276 = vmatpush1.bf16.msra.mxu0 0
    %1277 = vmatprep.subr.bf16.mxu0 0
    %1278 = vmatpush1.bf16.msra.mxu0 0
    %1279 = vmatprep.subr.bf16.mxu0 0
    %1280 = vmatpush1.bf16.msra.mxu0 0
    %1281 = vmatprep.subr.bf16.mxu0 0
    %1282 = vmatpush1.bf16.msra.mxu0 0
    %1283 = vmatprep.subr.bf16.mxu0 0
    %1284 = vmatpush1.bf16.msra.mxu0 0
    %1285 = vmatprep.subr.bf16.mxu0 0
    %1286 = vmatpush1.bf16.msra.mxu0 0
    %1287 = vmatprep.subr.bf16.mxu0 0
    %1288 = vmatpush1.bf16.msra.mxu0 0
    %1289 = vmatprep.subr.bf16.mxu0 0
    %1290 = vmatpush1.bf16.msra.mxu0 0
    %1291 = vmatprep.subr.bf16.mxu0 0
    %1292 = vmatpush1.bf16.msra.mxu0 0
    %1293 = vmatprep.subr.bf16.mxu0 0
    %1294 = vmatpush1.bf16.msra.mxu0 0
    %1295 = vmatprep.subr.bf16.mxu0 0
    %1296 = vmatpush1.bf16.msra.mxu0 0
    %1297 = vmatprep.subr.bf16.mxu0 0
    %1298 = vmatpush1.bf16.msra.mxu0 0
    %1299 = vmatprep.subr.bf16.mxu0 0
    %1300 = vmatpush1.bf16.msra.mxu0 0
    %1301 = vmatprep.subr.bf16.mxu0 0
    %1302 = vmatpush1.bf16.msra.mxu0 0
    %1303 = vmatprep.mubr.bf16.mxu0 0
    %1304 = vmatmul.mubr.bf16.gmra.mrb[0].mxu0 %v1269
    %v1305 = vpop.f32.mrb[0].mxu0
    %v1306 = vadd.f32 0.0, %v1305
    %v1307 = vpop.f32.mrb[0].mxu0
    %v1308 = vpop.f32.mrb[0].mxu0
    %v1309 = vpop.f32.mrb[0].mxu0
    %1310 = vdwg.mxu0
    %v1311 = vadd.f32 %v1256, %v1306
    %s1312 = scalar_lea.vmem %s3, 112
    %v1313 = vld [vmem:[%s1312] sm:$0xf]
    %v1314 = vld [vmem:[%s1312 + $0x4] sm:$0xf]
    %v1315 = vrot.slane %v1203, 2
    %v1318 = vunpack.c.l.b16 %v1313
    %v1319 = vunpack.c.l.b16 %v1314
    %v1320 = vpack.c.b16 %v1319, %v1318
    %v1323 = vsel %vm568, %v1315, 0
    %1325 = vmatprep.subr.bf16.mxu0 0
    %1326 = vmatpush1.bf16.msra.mxu0 %v1320
    %1327 = vmatprep.subr.bf16.mxu0 0
    %1328 = vmatpush1.bf16.msra.mxu0 0
    %1329 = vmatprep.subr.bf16.mxu0 0
    %1330 = vmatpush1.bf16.msra.mxu0 0
    %1331 = vmatprep.subr.bf16.mxu0 0
    %1332 = vmatpush1.bf16.msra.mxu0 0
    %1333 = vmatprep.subr.bf16.mxu0 0
    %1334 = vmatpush1.bf16.msra.mxu0 0
    %1335 = vmatprep.subr.bf16.mxu0 0
    %1336 = vmatpush1.bf16.msra.mxu0 0
    %1337 = vmatprep.subr.bf16.mxu0 0
    %1338 = vmatpush1.bf16.msra.mxu0 0
    %1339 = vmatprep.subr.bf16.mxu0 0
    %1340 = vmatpush1.bf16.msra.mxu0 0
    %1341 = vmatprep.subr.bf16.mxu0 0
    %1342 = vmatpush1.bf16.msra.mxu0 0
    %1343 = vmatprep.subr.bf16.mxu0 0
    %1344 = vmatpush1.bf16.msra.mxu0 0
    %1345 = vmatprep.subr.bf16.mxu0 0
    %1346 = vmatpush1.bf16.msra.mxu0 0
    %1347 = vmatprep.subr.bf16.mxu0 0
    %1348 = vmatpush1.bf16.msra.mxu0 0
    %1349 = vmatprep.subr.bf16.mxu0 0
    %1350 = vmatpush1.bf16.msra.mxu0 0
    %1351 = vmatprep.subr.bf16.mxu0 0
    %1352 = vmatpush1.bf16.msra.mxu0 0
    %1353 = vmatprep.subr.bf16.mxu0 0
    %1354 = vmatpush1.bf16.msra.mxu0 0
    %1355 = vmatprep.subr.bf16.mxu0 0
    %1356 = vmatpush1.bf16.msra.mxu0 0
    %1357 = vmatprep.mubr.bf16.mxu0 0
    %1358 = vmatmul.mubr.bf16.gmra.mrb[0].mxu0 %v1323
    %v1359 = vpop.f32.mrb[0].mxu0
    %v1360 = vadd.f32 0.0, %v1359
    %v1361 = vpop.f32.mrb[0].mxu0
    %v1362 = vpop.f32.mrb[0].mxu0
    %v1363 = vpop.f32.mrb[0].mxu0
    %1364 = vdwg.mxu0
    %v1365 = vadd.f32 %v1311, %v1360
    %s1366 = scalar_lea.vmem %s3, 120
    %v1367 = vld [vmem:[%s1366] sm:$0xf]
    %v1368 = vld [vmem:[%s1366 + $0x4] sm:$0xf]
    %v1369 = vrot.slane %v1203, 3
    %v1372 = vunpack.c.l.b16 %v1367
    %v1373 = vunpack.c.l.b16 %v1368
    %v1374 = vpack.c.b16 %v1373, %v1372
    %v1377 = vsel %vm568, %v1369, 0
    %1379 = vmatprep.subr.bf16.mxu0 0
    %1380 = vmatpush1.bf16.msra.mxu0 %v1374
    %1381 = vmatprep.subr.bf16.mxu0 0
    %1382 = vmatpush1.bf16.msra.mxu0 0
    %1383 = vmatprep.subr.bf16.mxu0 0
    %1384 = vmatpush1.bf16.msra.mxu0 0
    %1385 = vmatprep.subr.bf16.mxu0 0
    %1386 = vmatpush1.bf16.msra.mxu0 0
    %1387 = vmatprep.subr.bf16.mxu0 0
    %1388 = vmatpush1.bf16.msra.mxu0 0
    %1389 = vmatprep.subr.bf16.mxu0 0
    %1390 = vmatpush1.bf16.msra.mxu0 0
    %1391 = vmatprep.subr.bf16.mxu0 0
    %1392 = vmatpush1.bf16.msra.mxu0 0
    %1393 = vmatprep.subr.bf16.mxu0 0
    %1394 = vmatpush1.bf16.msra.mxu0 0
    %1395 = vmatprep.subr.bf16.mxu0 0
    %1396 = vmatpush1.bf16.msra.mxu0 0
    %1397 = vmatprep.subr.bf16.mxu0 0
    %1398 = vmatpush1.bf16.msra.mxu0 0
    %1399 = vmatprep.subr.bf16.mxu0 0
    %1400 = vmatpush1.bf16.msra.mxu0 0
    %1401 = vmatprep.subr.bf16.mxu0 0
    %1402 = vmatpush1.bf16.msra.mxu0 0
    %1403 = vmatprep.subr.bf16.mxu0 0
    %1404 = vmatpush1.bf16.msra.mxu0 0
    %1405 = vmatprep.subr.bf16.mxu0 0
    %1406 = vmatpush1.bf16.msra.mxu0 0
    %1407 = vmatprep.subr.bf16.mxu0 0
    %1408 = vmatpush1.bf16.msra.mxu0 0
    %1409 = vmatprep.subr.bf16.mxu0 0
    %1410 = vmatpush1.bf16.msra.mxu0 0
    %1411 = vmatprep.mubr.bf16.mxu0 0
    %1412 = vmatmul.mubr.bf16.gmra.mrb[0].mxu0 %v1377
    %v1413 = vpop.f32.mrb[0].mxu0
    %v1414 = vadd.f32 0.0, %v1413
    %v1415 = vpop.f32.mrb[0].mxu0
    %v1416 = vpop.f32.mrb[0].mxu0
    %v1417 = vpop.f32.mrb[0].mxu0
    %1418 = vdwg.mxu0
    %v1419 = vadd.f32 %v1365, %v1414
    %v1420 = vpack.c.bf16 %v551, %v551
    %s1421 = scalar_lea.vmem %s3, 128
    %v1422 = vld [vmem:[%s1421] sm:$0xf]
    %v1423 = vld [vmem:[%s1421 + $0x4] sm:$0xf]
    %v1426 = vunpack.c.l.b16 %v1422
    %v1427 = vunpack.c.l.b16 %v1423
    %v1428 = vpack.c.b16 %v1427, %v1426
    %v1431 = vsel %vm568, %v1420, 0
    %1433 = vmatprep.subr.bf16.mxu0 0
    %1434 = vmatpush1.bf16.msra.mxu0 %v1428
    %1435 = vmatprep.subr.bf16.mxu0 0
    %1436 = vmatpush1.bf16.msra.mxu0 0
    %1437 = vmatprep.subr.bf16.mxu0 0
    %1438 = vmatpush1.bf16.msra.mxu0 0
    %1439 = vmatprep.subr.bf16.mxu0 0
    %1440 = vmatpush1.bf16.msra.mxu0 0
    %1441 = vmatprep.subr.bf16.mxu0 0
    %1442 = vmatpush1.bf16.msra.mxu0 0
    %1443 = vmatprep.subr.bf16.mxu0 0
    %1444 = vmatpush1.bf16.msra.mxu0 0
    %1445 = vmatprep.subr.bf16.mxu0 0
    %1446 = vmatpush1.bf16.msra.mxu0 0
    %1447 = vmatprep.subr.bf16.mxu0 0
    %1448 = vmatpush1.bf16.msra.mxu0 0
    %1449 = vmatprep.subr.bf16.mxu0 0
    %1450 = vmatpush1.bf16.msra.mxu0 0
    %1451 = vmatprep.subr.bf16.mxu0 0
    %1452 = vmatpush1.bf16.msra.mxu0 0
    %1453 = vmatprep.subr.bf16.mxu0 0
    %1454 = vmatpush1.bf16.msra.mxu0 0
    %1455 = vmatprep.subr.bf16.mxu0 0
    %1456 = vmatpush1.bf16.msra.mxu0 0
    %1457 = vmatprep.subr.bf16.mxu0 0
    %1458 = vmatpush1.bf16.msra.mxu0 0
    %1459 = vmatprep.subr.bf16.mxu0 0
    %1460 = vmatpush1.bf16.msra.mxu0 0
    %1461 = vmatprep.subr.bf16.mxu0 0
    %1462 = vmatpush1.bf16.msra.mxu0 0
    %1463 = vmatprep.subr.bf16.mxu0 0
    %1464 = vmatpush1.bf16.msra.mxu0 0
    %1465 = vmatprep.mubr.bf16.mxu0 0
    %1466 = vmatmul.mubr.bf16.gmra.mrb[0].mxu0 %v1431
    %v1467 = vpop.f32.mrb[0].mxu0
    %v1468 = vadd.f32 0.0, %v1467
    %v1469 = vpop.f32.mrb[0].mxu0
    %v1470 = vpop.f32.mrb[0].mxu0
    %v1471 = vpop.f32.mrb[0].mxu0
    %1472 = vdwg.mxu0
    %v1473 = vadd.f32 %v1419, %v1468
    %s1474 = scalar_lea.vmem %s3, 136
    %v1475 = vld [vmem:[%s1474] sm:$0xf]
    %v1476 = vld [vmem:[%s1474 + $0x4] sm:$0xf]
    %v1478 = vrot.slane %v1420, 1
    %v1481 = vunpack.c.l.b16 %v1475
    %v1482 = vunpack.c.l.b16 %v1476
    %v1483 = vpack.c.b16 %v1482, %v1481
    %v1486 = vsel %vm568, %v1478, 0
    %1488 = vmatprep.subr.bf16.mxu0 0
    %1489 = vmatpush1.bf16.msra.mxu0 %v1483
    %1490 = vmatprep.subr.bf16.mxu0 0
    %1491 = vmatpush1.bf16.msra.mxu0 0
    %1492 = vmatprep.subr.bf16.mxu0 0
    %1493 = vmatpush1.bf16.msra.mxu0 0
    %1494 = vmatprep.subr.bf16.mxu0 0
    %1495 = vmatpush1.bf16.msra.mxu0 0
    %1496 = vmatprep.subr.bf16.mxu0 0
    %1497 = vmatpush1.bf16.msra.mxu0 0
    %1498 = vmatprep.subr.bf16.mxu0 0
    %1499 = vmatpush1.bf16.msra.mxu0 0
    %1500 = vmatprep.subr.bf16.mxu0 0
    %1501 = vmatpush1.bf16.msra.mxu0 0
    %1502 = vmatprep.subr.bf16.mxu0 0
    %1503 = vmatpush1.bf16.msra.mxu0 0
    %1504 = vmatprep.subr.bf16.mxu0 0
    %1505 = vmatpush1.bf16.msra.mxu0 0
    %1506 = vmatprep.subr.bf16.mxu0 0
    %1507 = vmatpush1.bf16.msra.mxu0 0
    %1508 = vmatprep.subr.bf16.mxu0 0
    %1509 = vmatpush1.bf16.msra.mxu0 0
    %1510 = vmatprep.subr.bf16.mxu0 0
    %1511 = vmatpush1.bf16.msra.mxu0 0
    %1512 = vmatprep.subr.bf16.mxu0 0
    %1513 = vmatpush1.bf16.msra.mxu0 0
    %1514 = vmatprep.subr.bf16.mxu0 0
    %1515 = vmatpush1.bf16.msra.mxu0 0
    %1516 = vmatprep.subr.bf16.mxu0 0
    %1517 = vmatpush1.bf16.msra.mxu0 0
    %1518 = vmatprep.subr.bf16.mxu0 0
    %1519 = vmatpush1.bf16.msra.mxu0 0
    %1520 = vmatprep.mubr.bf16.mxu0 0
    %1521 = vmatmul.mubr.bf16.gmra.mrb[0].mxu0 %v1486
    %v1522 = vpop.f32.mrb[0].mxu0
    %v1523 = vadd.f32 0.0, %v1522
    %v1524 = vpop.f32.mrb[0].mxu0
    %v1525 = vpop.f32.mrb[0].mxu0
    %v1526 = vpop.f32.mrb[0].mxu0
    %1527 = vdwg.mxu0
    %v1528 = vadd.f32 %v1473, %v1523
    %s1529 = scalar_lea.vmem %s3, 144
    %v1530 = vld [vmem:[%s1529] sm:$0xf]
    %v1531 = vld [vmem:[%s1529 + $0x4] sm:$0xf]
    %v1532 = vrot.slane %v1420, 2
    %v1535 = vunpack.c.l.b16 %v1530
    %v1536 = vunpack.c.l.b16 %v1531
    %v1537 = vpack.c.b16 %v1536, %v1535
    %v1540 = vsel %vm568, %v1532, 0
    %1542 = vmatprep.subr.bf16.mxu0 0
    %1543 = vmatpush1.bf16.msra.mxu0 %v1537
    %1544 = vmatprep.subr.bf16.mxu0 0
    %1545 = vmatpush1.bf16.msra.mxu0 0
    %1546 = vmatprep.subr.bf16.mxu0 0
    %1547 = vmatpush1.bf16.msra.mxu0 0
    %1548 = vmatprep.subr.bf16.mxu0 0
    %1549 = vmatpush1.bf16.msra.mxu0 0
    %1550 = vmatprep.subr.bf16.mxu0 0
    %1551 = vmatpush1.bf16.msra.mxu0 0
    %1552 = vmatprep.subr.bf16.mxu0 0
    %1553 = vmatpush1.bf16.msra.mxu0 0
    %1554 = vmatprep.subr.bf16.mxu0 0
    %1555 = vmatpush1.bf16.msra.mxu0 0
    %1556 = vmatprep.subr.bf16.mxu0 0
    %1557 = vmatpush1.bf16.msra.mxu0 0
    %1558 = vmatprep.subr.bf16.mxu0 0
    %1559 = vmatpush1.bf16.msra.mxu0 0
    %1560 = vmatprep.subr.bf16.mxu0 0
    %1561 = vmatpush1.bf16.msra.mxu0 0
    %1562 = vmatprep.subr.bf16.mxu0 0
    %1563 = vmatpush1.bf16.msra.mxu0 0
    %1564 = vmatprep.subr.bf16.mxu0 0
    %1565 = vmatpush1.bf16.msra.mxu0 0
    %1566 = vmatprep.subr.bf16.mxu0 0
    %1567 = vmatpush1.bf16.msra.mxu0 0
    %1568 = vmatprep.subr.bf16.mxu0 0
    %1569 = vmatpush1.bf16.msra.mxu0 0
    %1570 = vmatprep.subr.bf16.mxu0 0
    %1571 = vmatpush1.bf16.msra.mxu0 0
    %1572 = vmatprep.subr.bf16.mxu0 0
    %1573 = vmatpush1.bf16.msra.mxu0 0
    %1574 = vmatprep.mubr.bf16.mxu0 0
    %1575 = vmatmul.mubr.bf16.gmra.mrb[0].mxu0 %v1540
    %v1576 = vpop.f32.mrb[0].mxu0
    %v1577 = vadd.f32 0.0, %v1576
    %v1578 = vpop.f32.mrb[0].mxu0
    %v1579 = vpop.f32.mrb[0].mxu0
    %v1580 = vpop.f32.mrb[0].mxu0
    %1581 = vdwg.mxu0
    %v1582 = vadd.f32 %v1528, %v1577
    %s1583 = scalar_lea.vmem %s3, 152
    %v1584 = vld [vmem:[%s1583] sm:$0xf]
    %v1585 = vld [vmem:[%s1583 + $0x4] sm:$0xf]
    %v1586 = vrot.slane %v1420, 3
    %v1589 = vunpack.c.l.b16 %v1584
    %v1590 = vunpack.c.l.b16 %v1585
    %v1591 = vpack.c.b16 %v1590, %v1589
    %v1594 = vsel %vm568, %v1586, 0
    %1596 = vmatprep.subr.bf16.mxu0 0
    %1597 = vmatpush1.bf16.msra.mxu0 %v1591
    %1598 = vmatprep.subr.bf16.mxu0 0
    %1599 = vmatpush1.bf16.msra.mxu0 0
    %1600 = vmatprep.subr.bf16.mxu0 0
    %1601 = vmatpush1.bf16.msra.mxu0 0
    %1602 = vmatprep.subr.bf16.mxu0 0
    %1603 = vmatpush1.bf16.msra.mxu0 0
    %1604 = vmatprep.subr.bf16.mxu0 0
    %1605 = vmatpush1.bf16.msra.mxu0 0
    %1606 = vmatprep.subr.bf16.mxu0 0
    %1607 = vmatpush1.bf16.msra.mxu0 0
    %1608 = vmatprep.subr.bf16.mxu0 0
    %1609 = vmatpush1.bf16.msra.mxu0 0
    %1610 = vmatprep.subr.bf16.mxu0 0
    %1611 = vmatpush1.bf16.msra.mxu0 0
    %1612 = vmatprep.subr.bf16.mxu0 0
    %1613 = vmatpush1.bf16.msra.mxu0 0
    %1614 = vmatprep.subr.bf16.mxu0 0
    %1615 = vmatpush1.bf16.msra.mxu0 0
    %1616 = vmatprep.subr.bf16.mxu0 0
    %1617 = vmatpush1.bf16.msra.mxu0 0
    %1618 = vmatprep.subr.bf16.mxu0 0
    %1619 = vmatpush1.bf16.msra.mxu0 0
    %1620 = vmatprep.subr.bf16.mxu0 0
    %1621 = vmatpush1.bf16.msra.mxu0 0
    %1622 = vmatprep.subr.bf16.mxu0 0
    %1623 = vmatpush1.bf16.msra.mxu0 0
    %1624 = vmatprep.subr.bf16.mxu0 0
    %1625 = vmatpush1.bf16.msra.mxu0 0
    %1626 = vmatprep.subr.bf16.mxu0 0
    %1627 = vmatpush1.bf16.msra.mxu0 0
    %1628 = vmatprep.mubr.bf16.mxu0 0
    %1629 = vmatmul.mubr.bf16.gmra.mrb[0].mxu0 %v1594
    %v1630 = vpop.f32.mrb[0].mxu0
    %v1631 = vadd.f32 0.0, %v1630
    %v1632 = vpop.f32.mrb[0].mxu0
    %v1633 = vpop.f32.mrb[0].mxu0
    %v1634 = vpop.f32.mrb[0].mxu0
    %1635 = vdwg.mxu0
    %v1636 = vadd.f32 %v1582, %v1631
    %v1637 = vpack.c.bf16 %v552, %v552
    %s1638 = scalar_lea.vmem %s3, 160
    %v1639 = vld [vmem:[%s1638] sm:$0xf]
    %v1640 = vld [vmem:[%s1638 + $0x4] sm:$0xf]
    %v1643 = vunpack.c.l.b16 %v1639
    %v1644 = vunpack.c.l.b16 %v1640
    %v1645 = vpack.c.b16 %v1644, %v1643
    %v1648 = vsel %vm568, %v1637, 0
    %1650 = vmatprep.subr.bf16.mxu0 0
    %1651 = vmatpush1.bf16.msra.mxu0 %v1645
    %1652 = vmatprep.subr.bf16.mxu0 0
    %1653 = vmatpush1.bf16.msra.mxu0 0
    %1654 = vmatprep.subr.bf16.mxu0 0
    %1655 = vmatpush1.bf16.msra.mxu0 0
    %1656 = vmatprep.subr.bf16.mxu0 0
    %1657 = vmatpush1.bf16.msra.mxu0 0
    %1658 = vmatprep.subr.bf16.mxu0 0
    %1659 = vmatpush1.bf16.msra.mxu0 0
    %1660 = vmatprep.subr.bf16.mxu0 0
    %1661 = vmatpush1.bf16.msra.mxu0 0
    %1662 = vmatprep.subr.bf16.mxu0 0
    %1663 = vmatpush1.bf16.msra.mxu0 0
    %1664 = vmatprep.subr.bf16.mxu0 0
    %1665 = vmatpush1.bf16.msra.mxu0 0
    %1666 = vmatprep.subr.bf16.mxu0 0
    %1667 = vmatpush1.bf16.msra.mxu0 0
    %1668 = vmatprep.subr.bf16.mxu0 0
    %1669 = vmatpush1.bf16.msra.mxu0 0
    %1670 = vmatprep.subr.bf16.mxu0 0
    %1671 = vmatpush1.bf16.msra.mxu0 0
    %1672 = vmatprep.subr.bf16.mxu0 0
    %1673 = vmatpush1.bf16.msra.mxu0 0
    %1674 = vmatprep.subr.bf16.mxu0 0
    %1675 = vmatpush1.bf16.msra.mxu0 0
    %1676 = vmatprep.subr.bf16.mxu0 0
    %1677 = vmatpush1.bf16.msra.mxu0 0
    %1678 = vmatprep.subr.bf16.mxu0 0
    %1679 = vmatpush1.bf16.msra.mxu0 0
    %1680 = vmatprep.subr.bf16.mxu0 0
    %1681 = vmatpush1.bf16.msra.mxu0 0
    %1682 = vmatprep.mubr.bf16.mxu0 0
    %1683 = vmatmul.mubr.bf16.gmra.mrb[0].mxu0 %v1648
    %v1684 = vpop.f32.mrb[0].mxu0
    %v1685 = vadd.f32 0.0, %v1684
    %v1686 = vpop.f32.mrb[0].mxu0
    %v1687 = vpop.f32.mrb[0].mxu0
    %v1688 = vpop.f32.mrb[0].mxu0
    %1689 = vdwg.mxu0
    %v1690 = vadd.f32 %v1636, %v1685
    %s1691 = scalar_lea.vmem %s3, 168
    %v1692 = vld [vmem:[%s1691] sm:$0xf]
    %v1693 = vld [vmem:[%s1691 + $0x4] sm:$0xf]
    %v1695 = vrot.slane %v1637, 1
    %v1698 = vunpack.c.l.b16 %v1692
    %v1699 = vunpack.c.l.b16 %v1693
    %v1700 = vpack.c.b16 %v1699, %v1698
    %v1703 = vsel %vm568, %v1695, 0
    %1705 = vmatprep.subr.bf16.mxu0 0
    %1706 = vmatpush1.bf16.msra.mxu0 %v1700
    %1707 = vmatprep.subr.bf16.mxu0 0
    %1708 = vmatpush1.bf16.msra.mxu0 0
    %1709 = vmatprep.subr.bf16.mxu0 0
    %1710 = vmatpush1.bf16.msra.mxu0 0
    %1711 = vmatprep.subr.bf16.mxu0 0
    %1712 = vmatpush1.bf16.msra.mxu0 0
    %1713 = vmatprep.subr.bf16.mxu0 0
    %1714 = vmatpush1.bf16.msra.mxu0 0
    %1715 = vmatprep.subr.bf16.mxu0 0
    %1716 = vmatpush1.bf16.msra.mxu0 0
    %1717 = vmatprep.subr.bf16.mxu0 0
    %1718 = vmatpush1.bf16.msra.mxu0 0
    %1719 = vmatprep.subr.bf16.mxu0 0
    %1720 = vmatpush1.bf16.msra.mxu0 0
    %1721 = vmatprep.subr.bf16.mxu0 0
    %1722 = vmatpush1.bf16.msra.mxu0 0
    %1723 = vmatprep.subr.bf16.mxu0 0
    %1724 = vmatpush1.bf16.msra.mxu0 0
    %1725 = vmatprep.subr.bf16.mxu0 0
    %1726 = vmatpush1.bf16.msra.mxu0 0
    %1727 = vmatprep.subr.bf16.mxu0 0
    %1728 = vmatpush1.bf16.msra.mxu0 0
    %1729 = vmatprep.subr.bf16.mxu0 0
    %1730 = vmatpush1.bf16.msra.mxu0 0
    %1731 = vmatprep.subr.bf16.mxu0 0
    %1732 = vmatpush1.bf16.msra.mxu0 0
    %1733 = vmatprep.subr.bf16.mxu0 0
    %1734 = vmatpush1.bf16.msra.mxu0 0
    %1735 = vmatprep.subr.bf16.mxu0 0
    %1736 = vmatpush1.bf16.msra.mxu0 0
    %1737 = vmatprep.mubr.bf16.mxu0 0
    %1738 = vmatmul.mubr.bf16.gmra.mrb[0].mxu0 %v1703
    %v1739 = vpop.f32.mrb[0].mxu0
    %v1740 = vadd.f32 0.0, %v1739
    %v1741 = vpop.f32.mrb[0].mxu0
    %v1742 = vpop.f32.mrb[0].mxu0
    %v1743 = vpop.f32.mrb[0].mxu0
    %1744 = vdwg.mxu0
    %v1745 = vadd.f32 %v1690, %v1740
    %s1746 = scalar_lea.vmem %s3, 176
    %v1747 = vld [vmem:[%s1746] sm:$0xf]
    %v1748 = vld [vmem:[%s1746 + $0x4] sm:$0xf]
    %v1749 = vrot.slane %v1637, 2
    %v1752 = vunpack.c.l.b16 %v1747
    %v1753 = vunpack.c.l.b16 %v1748
    %v1754 = vpack.c.b16 %v1753, %v1752
    %v1757 = vsel %vm568, %v1749, 0
    %1759 = vmatprep.subr.bf16.mxu0 0
    %1760 = vmatpush1.bf16.msra.mxu0 %v1754
    %1761 = vmatprep.subr.bf16.mxu0 0
    %1762 = vmatpush1.bf16.msra.mxu0 0
    %1763 = vmatprep.subr.bf16.mxu0 0
    %1764 = vmatpush1.bf16.msra.mxu0 0
    %1765 = vmatprep.subr.bf16.mxu0 0
    %1766 = vmatpush1.bf16.msra.mxu0 0
    %1767 = vmatprep.subr.bf16.mxu0 0
    %1768 = vmatpush1.bf16.msra.mxu0 0
    %1769 = vmatprep.subr.bf16.mxu0 0
    %1770 = vmatpush1.bf16.msra.mxu0 0
    %1771 = vmatprep.subr.bf16.mxu0 0
    %1772 = vmatpush1.bf16.msra.mxu0 0
    %1773 = vmatprep.subr.bf16.mxu0 0
    %1774 = vmatpush1.bf16.msra.mxu0 0
    %1775 = vmatprep.subr.bf16.mxu0 0
    %1776 = vmatpush1.bf16.msra.mxu0 0
    %1777 = vmatprep.subr.bf16.mxu0 0
    %1778 = vmatpush1.bf16.msra.mxu0 0
    %1779 = vmatprep.subr.bf16.mxu0 0
    %1780 = vmatpush1.bf16.msra.mxu0 0
    %1781 = vmatprep.subr.bf16.mxu0 0
    %1782 = vmatpush1.bf16.msra.mxu0 0
    %1783 = vmatprep.subr.bf16.mxu0 0
    %1784 = vmatpush1.bf16.msra.mxu0 0
    %1785 = vmatprep.subr.bf16.mxu0 0
    %1786 = vmatpush1.bf16.msra.mxu0 0
    %1787 = vmatprep.subr.bf16.mxu0 0
    %1788 = vmatpush1.bf16.msra.mxu0 0
    %1789 = vmatprep.subr.bf16.mxu0 0
    %1790 = vmatpush1.bf16.msra.mxu0 0
    %1791 = vmatprep.mubr.bf16.mxu0 0
    %1792 = vmatmul.mubr.bf16.gmra.mrb[0].mxu0 %v1757
    %v1793 = vpop.f32.mrb[0].mxu0
    %v1794 = vadd.f32 0.0, %v1793
    %v1795 = vpop.f32.mrb[0].mxu0
    %v1796 = vpop.f32.mrb[0].mxu0
    %v1797 = vpop.f32.mrb[0].mxu0
    %1798 = vdwg.mxu0
    %v1799 = vadd.f32 %v1745, %v1794
    %s1800 = scalar_lea.vmem %s3, 184
    %v1801 = vld [vmem:[%s1800] sm:$0xf]
    %v1802 = vld [vmem:[%s1800 + $0x4] sm:$0xf]
    %v1803 = vrot.slane %v1637, 3
    %v1806 = vunpack.c.l.b16 %v1801
    %v1807 = vunpack.c.l.b16 %v1802
    %v1808 = vpack.c.b16 %v1807, %v1806
    %v1811 = vsel %vm568, %v1803, 0
    %1813 = vmatprep.subr.bf16.mxu0 0
    %1814 = vmatpush1.bf16.msra.mxu0 %v1808
    %1815 = vmatprep.subr.bf16.mxu0 0
    %1816 = vmatpush1.bf16.msra.mxu0 0
    %1817 = vmatprep.subr.bf16.mxu0 0
    %1818 = vmatpush1.bf16.msra.mxu0 0
    %1819 = vmatprep.subr.bf16.mxu0 0
    %1820 = vmatpush1.bf16.msra.mxu0 0
    %1821 = vmatprep.subr.bf16.mxu0 0
    %1822 = vmatpush1.bf16.msra.mxu0 0
    %1823 = vmatprep.subr.bf16.mxu0 0
    %1824 = vmatpush1.bf16.msra.mxu0 0
    %1825 = vmatprep.subr.bf16.mxu0 0
    %1826 = vmatpush1.bf16.msra.mxu0 0
    %1827 = vmatprep.subr.bf16.mxu0 0
    %1828 = vmatpush1.bf16.msra.mxu0 0
    %1829 = vmatprep.subr.bf16.mxu0 0
    %1830 = vmatpush1.bf16.msra.mxu0 0
    %1831 = vmatprep.subr.bf16.mxu0 0
    %1832 = vmatpush1.bf16.msra.mxu0 0
    %1833 = vmatprep.subr.bf16.mxu0 0
    %1834 = vmatpush1.bf16.msra.mxu0 0
    %1835 = vmatprep.subr.bf16.mxu0 0
    %1836 = vmatpush1.bf16.msra.mxu0 0
    %1837 = vmatprep.subr.bf16.mxu0 0
    %1838 = vmatpush1.bf16.msra.mxu0 0
    %1839 = vmatprep.subr.bf16.mxu0 0
    %1840 = vmatpush1.bf16.msra.mxu0 0
    %1841 = vmatprep.subr.bf16.mxu0 0
    %1842 = vmatpush1.bf16.msra.mxu0 0
    %1843 = vmatprep.subr.bf16.mxu0 0
    %1844 = vmatpush1.bf16.msra.mxu0 0
    %1845 = vmatprep.mubr.bf16.mxu0 0
    %1846 = vmatmul.mubr.bf16.gmra.mrb[0].mxu0 %v1811
    %v1847 = vpop.f32.mrb[0].mxu0
    %v1848 = vadd.f32 0.0, %v1847
    %v1849 = vpop.f32.mrb[0].mxu0
    %v1850 = vpop.f32.mrb[0].mxu0
    %v1851 = vpop.f32.mrb[0].mxu0
    %1852 = vdwg.mxu0
    %v1853 = vadd.f32 %v1799, %v1848
    %v1854 = vpack.c.bf16 %v553, %v553
    %s1855 = scalar_lea.vmem %s3, 192
    %v1856 = vld [vmem:[%s1855] sm:$0xf]
    %v1857 = vld [vmem:[%s1855 + $0x4] sm:$0xf]
    %v1860 = vunpack.c.l.b16 %v1856
    %v1861 = vunpack.c.l.b16 %v1857
    %v1862 = vpack.c.b16 %v1861, %v1860
    %v1865 = vsel %vm568, %v1854, 0
    %1867 = vmatprep.subr.bf16.mxu0 0
    %1868 = vmatpush1.bf16.msra.mxu0 %v1862
    %1869 = vmatprep.subr.bf16.mxu0 0
    %1870 = vmatpush1.bf16.msra.mxu0 0
    %1871 = vmatprep.subr.bf16.mxu0 0
    %1872 = vmatpush1.bf16.msra.mxu0 0
    %1873 = vmatprep.subr.bf16.mxu0 0
    %1874 = vmatpush1.bf16.msra.mxu0 0
    %1875 = vmatprep.subr.bf16.mxu0 0
    %1876 = vmatpush1.bf16.msra.mxu0 0
    %1877 = vmatprep.subr.bf16.mxu0 0
    %1878 = vmatpush1.bf16.msra.mxu0 0
    %1879 = vmatprep.subr.bf16.mxu0 0
    %1880 = vmatpush1.bf16.msra.mxu0 0
    %1881 = vmatprep.subr.bf16.mxu0 0
    %1882 = vmatpush1.bf16.msra.mxu0 0
    %1883 = vmatprep.subr.bf16.mxu0 0
    %1884 = vmatpush1.bf16.msra.mxu0 0
    %1885 = vmatprep.subr.bf16.mxu0 0
    %1886 = vmatpush1.bf16.msra.mxu0 0
    %1887 = vmatprep.subr.bf16.mxu0 0
    %1888 = vmatpush1.bf16.msra.mxu0 0
    %1889 = vmatprep.subr.bf16.mxu0 0
    %1890 = vmatpush1.bf16.msra.mxu0 0
    %1891 = vmatprep.subr.bf16.mxu0 0
    %1892 = vmatpush1.bf16.msra.mxu0 0
    %1893 = vmatprep.subr.bf16.mxu0 0
    %1894 = vmatpush1.bf16.msra.mxu0 0
    %1895 = vmatprep.subr.bf16.mxu0 0
    %1896 = vmatpush1.bf16.msra.mxu0 0
    %1897 = vmatprep.subr.bf16.mxu0 0
    %1898 = vmatpush1.bf16.msra.mxu0 0
    %1899 = vmatprep.mubr.bf16.mxu0 0
    %1900 = vmatmul.mubr.bf16.gmra.mrb[0].mxu0 %v1865
    %v1901 = vpop.f32.mrb[0].mxu0
    %v1902 = vadd.f32 0.0, %v1901
    %v1903 = vpop.f32.mrb[0].mxu0
    %v1904 = vpop.f32.mrb[0].mxu0
    %v1905 = vpop.f32.mrb[0].mxu0
    %1906 = vdwg.mxu0
    %v1907 = vadd.f32 %v1853, %v1902
    %v1908 = vld [vmem:[%s4] sm:$0x1]
    %v1910 = vlaneseq
    %v1911 = vshrl.u32 %v1910, 7
    %v1912 = vsub.s32 0, %v1911
    %v1913 = vrot.slane %v1908, %v1912
    %v1915 = vadd.f32 %v1907, %v1913
    %v1916 = vmax.f32 %v1915, 0.0
    %v1917 = vpack.c.bf16 %v1916, %v1916
    %v1918 = vld [vmem:[%s5] sm:$0xf]
    %v1919 = vld [vmem:[%s5 + $0x4] sm:$0xf]
    %v1920 = vld [vmem:[%s5 + $0x8] sm:$0xf]
    %v1921 = vld [vmem:[%s5 + $0xc] sm:$0xf]
    %v1922 = vld [vmem:[%s5 + $0x10] sm:$0xf]
    %v1923 = vld [vmem:[%s5 + $0x14] sm:$0xf]
    %v1924 = vld [vmem:[%s5 + $0x18] sm:$0xf]
    %v1925 = vld [vmem:[%s5 + $0x1c] sm:$0xf]
    %v1926 = vld [vmem:[%s5 + $0x20] sm:$0xf]
    %v1927 = vld [vmem:[%s5 + $0x24] sm:$0xf]
    %v1928 = vld [vmem:[%s5 + $0x28] sm:$0xf]
    %v1929 = vld [vmem:[%s5 + $0x2c] sm:$0xf]
    %v1930 = vld [vmem:[%s5 + $0x30] sm:$0xf]
    %v1931 = vld [vmem:[%s5 + $0x34] sm:$0xf]
    %v1932 = vld [vmem:[%s5 + $0x38] sm:$0xf]
    %v1933 = vld [vmem:[%s5 + $0x3c] sm:$0xf]
    %v1934 = vld [vmem:[%s6] sm:$0x1]
    %v1936 = vlaneseq
    %v1937 = vshrl.u32 %v1936, 7
    %v1938 = vsub.s32 0, %v1937
    %v1939 = vrot.slane %v1934, %v1938
    %v1957 = vunpack.c.l.b16 %v1918
    %v1958 = vunpack.c.l.b16 %v1919
    %v1959 = vunpack.c.l.b16 %v1920
    %v1960 = vunpack.c.l.b16 %v1921
    %v1961 = vunpack.c.l.b16 %v1922
    %v1962 = vunpack.c.l.b16 %v1923
    %v1963 = vunpack.c.l.b16 %v1924
    %v1964 = vunpack.c.l.b16 %v1925
    %v1965 = vunpack.c.l.b16 %v1926
    %v1966 = vunpack.c.l.b16 %v1927
    %v1967 = vunpack.c.l.b16 %v1928
    %v1968 = vunpack.c.l.b16 %v1929
    %v1969 = vunpack.c.l.b16 %v1930
    %v1970 = vunpack.c.l.b16 %v1931
    %v1971 = vunpack.c.l.b16 %v1932
    %v1972 = vunpack.c.l.b16 %v1933
    %v1973 = vpack.c.b16 %v1958, %v1957
    %v1974 = vpack.c.b16 %v1960, %v1959
    %v1975 = vpack.c.b16 %v1962, %v1961
    %v1976 = vpack.c.b16 %v1964, %v1963
    %v1977 = vpack.c.b16 %v1966, %v1965
    %v1978 = vpack.c.b16 %v1968, %v1967
    %v1979 = vpack.c.b16 %v1970, %v1969
    %v1980 = vpack.c.b16 %v1972, %v1971
    %1989 = vmatprep.subr.bf16.mxu0 0
    %1990 = vmatpush1.bf16.msra.mxu0 %v1973
    %1991 = vmatprep.subr.bf16.mxu0 0
    %1992 = vmatpush1.bf16.msra.mxu0 %v1974
    %1993 = vmatprep.subr.bf16.mxu0 0
    %1994 = vmatpush1.bf16.msra.mxu0 %v1975
    %1995 = vmatprep.subr.bf16.mxu0 0
    %1996 = vmatpush1.bf16.msra.mxu0 %v1976
    %1997 = vmatprep.subr.bf16.mxu0 0
    %1998 = vmatpush1.bf16.msra.mxu0 %v1977
    %1999 = vmatprep.subr.bf16.mxu0 0
    %2000 = vmatpush1.bf16.msra.mxu0 %v1978
    %2001 = vmatprep.subr.bf16.mxu0 0
    %2002 = vmatpush1.bf16.msra.mxu0 %v1979
    %2003 = vmatprep.subr.bf16.mxu0 0
    %2004 = vmatpush1.bf16.msra.mxu0 %v1980
    %2005 = vmatprep.subr.bf16.mxu0 0
    %2006 = vmatpush1.bf16.msra.mxu0 0
    %2007 = vmatprep.subr.bf16.mxu0 0
    %2008 = vmatpush1.bf16.msra.mxu0 0
    %2009 = vmatprep.subr.bf16.mxu0 0
    %2010 = vmatpush1.bf16.msra.mxu0 0
    %2011 = vmatprep.subr.bf16.mxu0 0
    %2012 = vmatpush1.bf16.msra.mxu0 0
    %2013 = vmatprep.subr.bf16.mxu0 0
    %2014 = vmatpush1.bf16.msra.mxu0 0
    %2015 = vmatprep.subr.bf16.mxu0 0
    %2016 = vmatpush1.bf16.msra.mxu0 0
    %2017 = vmatprep.subr.bf16.mxu0 0
    %2018 = vmatpush1.bf16.msra.mxu0 0
    %2019 = vmatprep.subr.bf16.mxu0 0
    %2020 = vmatpush1.bf16.msra.mxu0 0
    %2021 = vmatprep.mubr.bf16.mxu0 0
    %2022 = vmatmul.mubr.bf16.gmra.mrb[0].mxu0 %v1917
    %v2023 = vpop.f32.mrb[0].mxu0
    %v2024 = vadd.f32 %v1939, %v2023
    %v2025 = vpop.f32.mrb[0].mxu0
    %v2026 = vpop.f32.mrb[0].mxu0
    %v2027 = vpop.f32.mrb[0].mxu0
    %2028 = vdwg.mxu0
    %v2029 = vmax.f32 %v2024, 0.0
    %v2030 = vpack.c.bf16 %v2029, %v2029
    %v2031 = vld [vmem:[%s7] sm:$0xf]
    %v2032 = vld [vmem:[%s7 + $0x4] sm:$0xf]
    %v2033 = vld [vmem:[%s7 + $0x8] sm:$0xf]
    %v2034 = vld [vmem:[%s7 + $0xc] sm:$0xf]
    %v2035 = vld [vmem:[%s7 + $0x10] sm:$0xf]
    %v2036 = vld [vmem:[%s7 + $0x14] sm:$0xf]
    %v2037 = vld [vmem:[%s7 + $0x18] sm:$0xf]
    %v2038 = vld [vmem:[%s7 + $0x1c] sm:$0xf]
    %v2039 = vld [vmem:[%s7 + $0x20] sm:$0xf]
    %v2040 = vld [vmem:[%s7 + $0x24] sm:$0xf]
    %v2041 = vld [vmem:[%s7 + $0x28] sm:$0xf]
    %v2042 = vld [vmem:[%s7 + $0x2c] sm:$0xf]
    %v2043 = vld [vmem:[%s7 + $0x30] sm:$0xf]
    %v2044 = vld [vmem:[%s7 + $0x34] sm:$0xf]
    %v2045 = vld [vmem:[%s7 + $0x38] sm:$0xf]
    %v2046 = vld [vmem:[%s7 + $0x3c] sm:$0xf]
    %v2047 = vld [vmem:[%s8] sm:$0x1]
    %v2049 = vlaneseq
    %v2050 = vshrl.u32 %v2049, 7
    %v2051 = vsub.s32 0, %v2050
    %v2052 = vrot.slane %v2047, %v2051
    %v2070 = vunpack.c.l.b16 %v2031
    %v2071 = vunpack.c.l.b16 %v2032
    %v2072 = vunpack.c.l.b16 %v2033
    %v2073 = vunpack.c.l.b16 %v2034
    %v2074 = vunpack.c.l.b16 %v2035
    %v2075 = vunpack.c.l.b16 %v2036
    %v2076 = vunpack.c.l.b16 %v2037
    %v2077 = vunpack.c.l.b16 %v2038
    %v2078 = vunpack.c.l.b16 %v2039
    %v2079 = vunpack.c.l.b16 %v2040
    %v2080 = vunpack.c.l.b16 %v2041
    %v2081 = vunpack.c.l.b16 %v2042
    %v2082 = vunpack.c.l.b16 %v2043
    %v2083 = vunpack.c.l.b16 %v2044
    %v2084 = vunpack.c.l.b16 %v2045
    %v2085 = vunpack.c.l.b16 %v2046
    %v2086 = vpack.c.b16 %v2071, %v2070
    %v2087 = vpack.c.b16 %v2073, %v2072
    %v2088 = vpack.c.b16 %v2075, %v2074
    %v2089 = vpack.c.b16 %v2077, %v2076
    %v2090 = vpack.c.b16 %v2079, %v2078
    %v2091 = vpack.c.b16 %v2081, %v2080
    %v2092 = vpack.c.b16 %v2083, %v2082
    %v2093 = vpack.c.b16 %v2085, %v2084
    %2102 = vmatprep.subr.bf16.mxu0 0
    %2103 = vmatpush1.bf16.msra.mxu0 %v2086
    %2104 = vmatprep.subr.bf16.mxu0 0
    %2105 = vmatpush1.bf16.msra.mxu0 %v2087
    %2106 = vmatprep.subr.bf16.mxu0 0
    %2107 = vmatpush1.bf16.msra.mxu0 %v2088
    %2108 = vmatprep.subr.bf16.mxu0 0
    %2109 = vmatpush1.bf16.msra.mxu0 %v2089
    %2110 = vmatprep.subr.bf16.mxu0 0
    %2111 = vmatpush1.bf16.msra.mxu0 %v2090
    %2112 = vmatprep.subr.bf16.mxu0 0
    %2113 = vmatpush1.bf16.msra.mxu0 %v2091
    %2114 = vmatprep.subr.bf16.mxu0 0
    %2115 = vmatpush1.bf16.msra.mxu0 %v2092
    %2116 = vmatprep.subr.bf16.mxu0 0
    %2117 = vmatpush1.bf16.msra.mxu0 %v2093
    %2118 = vmatprep.subr.bf16.mxu0 0
    %2119 = vmatpush1.bf16.msra.mxu0 0
    %2120 = vmatprep.subr.bf16.mxu0 0
    %2121 = vmatpush1.bf16.msra.mxu0 0
    %2122 = vmatprep.subr.bf16.mxu0 0
    %2123 = vmatpush1.bf16.msra.mxu0 0
    %2124 = vmatprep.subr.bf16.mxu0 0
    %2125 = vmatpush1.bf16.msra.mxu0 0
    %2126 = vmatprep.subr.bf16.mxu0 0
    %2127 = vmatpush1.bf16.msra.mxu0 0
    %2128 = vmatprep.subr.bf16.mxu0 0
    %2129 = vmatpush1.bf16.msra.mxu0 0
    %2130 = vmatprep.subr.bf16.mxu0 0
    %2131 = vmatpush1.bf16.msra.mxu0 0
    %2132 = vmatprep.subr.bf16.mxu0 0
    %2133 = vmatpush1.bf16.msra.mxu0 0
    %2134 = vmatprep.mubr.bf16.mxu0 0
    %2135 = vmatmul.mubr.bf16.gmra.mrb[0].mxu0 %v2030
    %v2136 = vpop.f32.mrb[0].mxu0
    %v2137 = vadd.f32 %v2052, %v2136
    %v2138 = vpop.f32.mrb[0].mxu0
    %v2139 = vpop.f32.mrb[0].mxu0
    %v2140 = vpop.f32.mrb[0].mxu0
    %2141 = vdwg.mxu0
    %2142 = vst [vmem:[#allocation2] sm:$0x3] %v2137
    // Predicated region
    $region38: #{lenet5_forward.3} parent=1 // pred_check
      _
    $region39: #{lenet5_forward.3} parent=1 // pred_check_branch
      %2144 = sbr.rel (0) target = $region41
    $region40: #{lenet5_forward.3} parent=1 // pred_region
      %s2146 = ssub.s32 32, 32
      %2147 = vsyncadd [#allocation3], %s2146
      %s2149 = sshll.u32 [#allocation2], 4
      %s2150 = int_to_ptr.vmem [resolvable:$true] %s2149
      %2152 = dma.vmem_to_hbm [thread:$0]  %s2150, 32, %s9, [#allocation3]
    $region41: #{lenet5_forward.3} parent=1 // pred_fallthru
      _
    // Predicated region
    $region42: #{lenet5_forward.3} parent=1 // pred_check
      _
    $region43: #{lenet5_forward.3} parent=1 // pred_check_branch
      %2154 = sbr.rel (0) target = $region45
    $region44: #{lenet5_forward.3} parent=1 // pred_region
      %2155 = dma.done [#allocation3], 32
    $region45: #{lenet5_forward.3} parent=1 // pred_fallthru
      _
    %2156 = vsyncpa [#allocation3], 1

</llo_original>
